<compile_context>
chip_gen: v5e
topology: v5e:2x2
jax: 0.10.0
libtpu: 0.0.40
codegen_flags: <defaults>
</compile_context>

<pallas_src>
import functools
import math

import jax
import jax.numpy as jnp
from jax import lax
from jax.experimental import pallas as pl
from jax.experimental.pallas import tpu as pltpu


_LANES_PER_IMAGE = 512        # flattened (H+4)*(W+4) = 400 canvas, padded to 4 full vregs


# ----------------------------------------------------------------------------
# In-kernel math helpers
# ----------------------------------------------------------------------------
_ERF_P = 0.3275911
_ERF_A = (0.254829592, -0.284496736, 1.421413741, -1.453152027, 1.061405429)


def _erf(x):
    # Abramowitz & Stegun 7.1.26 rational approximation (|err| < 1.5e-7).  The
    # 1/(1 + p|x|) uses the EUP approximate reciprocal (perf feedback).
    sign = jnp.where(x < 0.0, -1.0, 1.0)
    ax = jnp.abs(x)
    t = pl.reciprocal(1.0 + _ERF_P * ax, approx=True)
    a1, a2, a3, a4, a5 = _ERF_A
    poly = ((((a5 * t + a4) * t + a3) * t + a2) * t + a1) * t
    return sign * (1.0 - poly * jnp.exp(-ax * ax))


def _gelu(x):
    # Exact (erf-form) GELU matching torch.nn.GELU().  _gelu(0) == 0 exactly (leading x),
    # which keeps the zero borders / zero pad tails of every canvas exactly zero.
    return 0.5 * x * (1.0 + _erf(x * (1.0 / math.sqrt(2.0))))


# ----------------------------------------------------------------------------
# Fully fused network kernel: one grid step = `nb` lane-packed images, all layers.
# ----------------------------------------------------------------------------
def _denoiser_kernel(x_ref, w_ref, corr_ref, mask_ref, o_ref, col_ref, hist_ref, *,
                     meta, tap_pairs, n_lanes, rw):
    # x_ref    : (1, 8, L)   f32   lane-packed zero-bordered canvases (L = nb * 512)
    # w_ref    : (Ly, 8, 80) bf16  BN-folded weights, tap-blocked columns
    # corr_ref : (Ly, 8, L)  f32   exact BN-shift + bias correction maps
    # mask_ref : (n_enc, 8, L) f32 encoder output-content masks (pre-broadcast)
    # col_ref  : (80, L)     bf16  im2col scratch (10 tap row-blocks of 8 channels)
    # hist_ref : (n_hist, 8, L) f32 residual-skip activations
    #
    # Tap shifts use pltpu.roll over the full packed block.  The wrap-around only ever
    # lands on the zero pad tail / zero canvas border of a neighbouring image (guard-ring
    # asserts in pack_for_kernel), so every content-region output is exact.
    a = x_ref[0]                                       # (8, L) f32

    for l, m in enumerate(meta):
        if m["residual"] is not None:                  # decoder skip connection
            a = a + rw * hist_ref[m["residual"]]

        # Build the tap-stacked (im2col) RHS: row block [16i, 16i+16) = taps 2i, 2i+1
        # shifted on the lane axis, cast to bf16.  Each rotate is paid exactly once;
        # the centre tap (shift 0) and the dummy 10th tap need no rotate at all.
        for i, (d0, d1) in enumerate(tap_pairs):
            s0 = a if d0 == 0 else pltpu.roll(a, (-d0) % n_lanes, axis=1)
            s1 = a if d1 == 0 else pltpu.roll(a, (-d1) % n_lanes, axis=1)
            pair = jnp.concatenate([s0, s1], axis=0).astype(col_ref.dtype)
            col_ref[i * 16:(i + 1) * 16, :] = pair

        # One lane-dense bf16 MXU matmul per layer, seeded by the exact correction map.
        acc = corr_ref[l] + jnp.dot(w_ref[l], col_ref[...],
                                    preferred_element_type=jnp.float32)

        if m["act"]:
            acc = _gelu(acc)
        if m["mask"] is not None:                      # "valid" conv: zero the ring + pad tail
            acc = acc * mask_ref[m["mask"]]

        a = acc
        if m["hist"] is not None:                      # park skip activation in VMEM
            hist_ref[m["hist"]] = a

    o_ref[0] = a


# ----------------------------------------------------------------------------
# Parameter construction (deterministic, synthetic) -- mirrors the PyTorch module
# ----------------------------------------------------------------------------
def _uniform(key, shape, bound):
    return jax.random.uniform(key, shape, jnp.float32, -bound, bound)


def build_params(key, shape, channels, kernel_size=3, padding=0):
    c0 = shape[0]
    chans = [c0, *list(channels), c0]
    n_layers = len(chans) - 1
    k = kernel_size
    eps = 1e-5
    keys = iter(jax.random.split(key, n_layers * 8))

    encoder = []
    for i in range(n_layers):
        cin, cout = chans[i], chans[i + 1]
        gamma = 1.0 + 0.1 * jax.random.normal(next(keys), (cin,), jnp.float32)
        beta = 0.1 * jax.random.normal(next(keys), (cin,), jnp.float32)
        scale = gamma / jnp.sqrt(1.0 + eps)            # eval-mode BN: mean=0, var=1
        shift = beta
        bound = 1.0 / math.sqrt(cin * k * k)
        w_oihw = _uniform(next(keys), (cout, cin, k, k), bound)   # torch Conv2d layout
        bias = _uniform(next(keys), (cout,), bound)
        encoder.append(dict(
            bn_scale=scale.reshape(1, cin), bn_shift=shift.reshape(1, cin),
            w=jnp.transpose(w_oihw, (2, 3, 1, 0)),                # -> HWIO
            b=bias.reshape(1, cout), pad=padding, act=True))

    decoder = []
    rchans = list(reversed(chans))
    for i in range(n_layers):
        cin, cout = rchans[i], rchans[i + 1]
        gamma = 1.0 + 0.1 * jax.random.normal(next(keys), (cin,), jnp.float32)
        beta = 0.1 * jax.random.normal(next(keys), (cin,), jnp.float32)
        scale = gamma / jnp.sqrt(1.0 + eps)
        shift = beta
        bound = 1.0 / math.sqrt(cout * k * k)
        w_t = _uniform(next(keys), (cin, cout, k, k), bound)      # torch ConvTranspose2d layout
        bias = _uniform(next(keys), (cout,), bound)
        # ConvTranspose2d(stride=1, padding=p) == full conv with the flipped kernel.
        w_conv = jnp.transpose(jnp.flip(w_t, axis=(2, 3)), (2, 3, 0, 1))  # -> HWIO
        decoder.append(dict(
            bn_scale=scale.reshape(1, cin), bn_shift=shift.reshape(1, cin),
            w=w_conv, b=bias.reshape(1, cout),
            pad=k - 1 - padding,
            act=(i < n_layers - 1)))
    return dict(encoder=encoder, decoder=decoder)


# ----------------------------------------------------------------------------
# Host-side packing: fold BN, precompute border-exact corrections, masks, weights.
# ----------------------------------------------------------------------------
def _content_mask(hc, wc, oy, ox, h, w):
    ys = jnp.arange(hc)
    xs = jnp.arange(wc)
    my = ((ys >= oy) & (ys < oy + h)).astype(jnp.float32)
    mx = ((xs >= ox) & (xs < ox + w)).astype(jnp.float32)
    return my[:, None] * mx[None, :]                    # (hc, wc)


def pack_for_kernel(params, shape, p_img=_LANES_PER_IMAGE):
    c0, h0, w0 = shape
    layers = list(params["encoder"]) + list(params["decoder"])
    n_enc = len(params["encoder"])

    assert all(l["w"].shape[0] == 3 and l["w"].shape[1] == 3 for l in layers), \
        "only 3x3 kernels supported"
    assert max(max(l["w"].shape[2], l["w"].shape[3]) for l in layers) <= 8, \
        "channel counts > 8 need channel blocking"

    hc, wc = h0 + 4, w0 + 4
    p_flat = hc * wc
    assert p_flat <= p_img and p_img % 128 == 0

    # Content-region geometry of every layer's input / output on the fixed canvas.
    geoms_in, geoms_out = [], []
    h, w, oy, ox = h0, w0, 2, 2
    for lay in layers:
        p = int(lay["pad"])
        geoms_in.append((h, w, oy, ox))
        h, w = h + 2 * p - 2, w + 2 * p - 2
        oy, ox = oy + 1 - p, ox + 1 - p
        geoms_out.append((h, w, oy, ox))
    for (hh, ww, yy, xx) in geoms_in:                   # guard ring >= 2 around every input
        assert yy >= 2 and xx >= 2 and yy + hh <= hc - 2 and xx + ww <= wc - 2
    for (hh, ww, yy, xx) in geoms_out:                  # guard ring >= 1 around every output
        assert yy >= 1 and xx >= 1 and yy + hh <= hc - 1 and xx + ww <= wc - 1
    assert geoms_out[-1] == (h0, w0, 2, 2)

    # 3x3 tap lane offsets on the flattened canvas, padded to 10 taps (last has zero weight)
    # and grouped in pairs so im2col stores are 16-sublane (bf16 tile) aligned.
    taps = tuple((ky - 1) * wc + (kx - 1) for ky in range(3) for kx in range(3))
    tap_ext = taps + (0,)
    tap_pairs = tuple((tap_ext[2 * i], tap_ext[2 * i + 1]) for i in range(5))

    w_all, corr_all, masks, meta = [], [], [], []
    for l, lay in enumerate(layers):
        w_hwio = lay["w"]                               # (3,3,cin,cout)
        cin, cout = w_hwio.shape[2], w_hwio.shape[3]
        scale = lay["bn_scale"].reshape(-1)
        shift = lay["bn_shift"].reshape(-1)
        bias = lay["b"].reshape(-1)

        # Fold BN scale into the weights (exact); tap t lives at weight columns
        # [(t//2)*16 + (t%2)*8, ...), matching the kernel's im2col sublane layout.
        w_s = w_hwio * scale.reshape(1, 1, cin, 1)
        wt = jnp.transpose(w_s, (0, 1, 3, 2)).reshape(9, cout, cin)      # (tap, cout, cin)
        wpk = jnp.zeros((8, 80), jnp.float32)
        for t in range(9):
            col = (t // 2) * 16 + (t % 2) * 8
            wpk = wpk.at[:cout, col:col + cin].set(wt[t])
        w_all.append(wpk)

        hin, win, oyi, oxi = geoms_in[l]
        hou, wou, oyo, oxo = geoms_out[l]
        in_mask = _content_mask(hc, wc, oyi, oxi, hin, win)
        out_mask = _content_mask(hc, wc, oyo, oxo, hou, wou)

        # Exact data-independent part of the layer: conv(BN shift on the input content)
        # plus the conv bias on the output content.  Computed in full f32 host-side.
        shift_map = in_mask[None, :, :, None] * shift.reshape(1, 1, 1, cin)
        c = lax.conv_general_dilated(shift_map, w_hwio, (1, 1), [(1, 1), (1, 1)],
                                     dimension_numbers=("NHWC", "HWIO", "NHWC"))
        c = c + bias.reshape(1, 1, 1, cout) * out_mask[None, :, :, None]
        corr = jnp.transpose(c[0], (2, 0, 1)).reshape(cout, p_flat)
        corr_all.append(jnp.zeros((8, p_img), jnp.float32).at[:cout, :p_flat].set(corr))

        is_enc = l < n_enc
        j = l - n_enc
        mask_idx = None
        if is_enc:
            mask_idx = len(masks)
            m8 = jnp.zeros((8, p_img), jnp.float32).at[:, :p_flat].set(
                jnp.broadcast_to(out_mask.reshape(1, p_flat), (8, p_flat)))
            masks.append(m8)
        meta.append(dict(
            residual=(None if (is_enc or j == 0) else n_enc - 1 - j),
            act=bool(lay["act"]),
            mask=mask_idx,
            hist=(l if (is_enc and l < n_enc - 1) else None),
        ))

    return dict(
        w=jnp.stack(w_all).astype(jnp.bfloat16),        # (Ly, 8, 80) bf16 -> 1-pass MXU
        corr=jnp.stack(corr_all),                       # (Ly, 8, p_img) f32
        masks=jnp.stack(masks),                         # (n_enc, 8, p_img) f32
        meta=tuple(meta), tap_pairs=tap_pairs,
        hc=hc, wc=wc, p_img=p_img, n_hist=max(n_enc - 1, 1),
    )


# ----------------------------------------------------------------------------
# Full forward pass: one fused pallas_call for the whole network.
# ----------------------------------------------------------------------------
def conv_denoiser_forward(x_nchw, params, residual_weight=0.1, images_per_block=None):
    n, c0, h0, w0 = x_nchw.shape
    packed = pack_for_kernel(params, (c0, h0, w0))
    hc, wc, p_img = packed["hc"], packed["wc"], packed["p_img"]
    p_flat = hc * wc

    # Lane-pack `nb` images per grid step.  Default packs the whole (small) batch so the
    # single-TC v5e/v6e pay every per-layer fixed cost once; on v7x pass images_per_block
    # = ceil(n/2) to get >= 2 parallel grid steps for its two TensorCores.
    nb = images_per_block if images_per_block else min(n, 8)
    n_blocks = pl.cdiv(n, nb)
    n_pad = n_blocks * nb
    n_lanes = nb * p_img

    # Place each image on a zero-bordered canvas: (Np, 8, Hc, Wc) -> (Np, 8, 512) -> blocks.
    canv = jnp.zeros((n_pad, 8, hc, wc), jnp.float32)
    canv = canv.at[:n, :c0, 2:2 + h0, 2:2 + w0].set(x_nchw.astype(jnp.float32))
    canv = canv.reshape(n_pad, 8, p_flat)
    canv = jnp.pad(canv, ((0, 0), (0, 0), (0, p_img - p_flat)))
    x_packed = canv.reshape(n_blocks, nb, 8, p_img).transpose(0, 2, 1, 3).reshape(
        n_blocks, 8, n_lanes)

    corr = jnp.tile(packed["corr"], (1, 1, nb))         # (Ly, 8, nb*512)
    masks = jnp.tile(packed["masks"], (1, 1, nb))       # (n_enc, 8, nb*512)

    n_layers = packed["w"].shape[0]
    n_enc = masks.shape[0]
    kernel = functools.partial(
        _denoiser_kernel, meta=packed["meta"], tap_pairs=packed["tap_pairs"],
        n_lanes=n_lanes, rw=float(residual_weight))

    out = pl.pallas_call(
        kernel,
        out_shape=jax.ShapeDtypeStruct((n_blocks, 8, n_lanes), jnp.float32),
        grid=(n_blocks,),
        in_specs=[
            pl.BlockSpec((1, 8, n_lanes), lambda i: (i, 0, 0)),
            pl.BlockSpec((n_layers, 8, 80), lambda i: (0, 0, 0)),
            pl.BlockSpec((n_layers, 8, n_lanes), lambda i: (0, 0, 0)),
            pl.BlockSpec((n_enc, 8, n_lanes), lambda i: (0, 0, 0)),
        ],
        out_specs=pl.BlockSpec((1, 8, n_lanes), lambda i: (i, 0, 0)),
        scratch_shapes=[
            pltpu.VMEM((80, n_lanes), jnp.bfloat16),               # im2col RHS
            pltpu.VMEM((packed["n_hist"], 8, n_lanes), jnp.float32),  # skip activations
        ],
        compiler_params=pltpu.CompilerParams(dimension_semantics=("parallel",)),
    )(x_packed, packed["w"], corr, masks)

    # Unpack lanes back to images and crop the canvas to the (C, H, W) content.
    out = out.reshape(n_blocks, 8, nb, p_img).transpose(0, 2, 1, 3).reshape(n_pad, 8, p_img)
    out = out[:n, :, :p_flat].reshape(n, 8, hc, wc)
    return out[:, :c0, 2:2 + h0, 2:2 + w0]


# ----------------------------------------------------------------------------
# Pure-JAX reference (correctness check of the fused kernel)
# ----------------------------------------------------------------------------
def reference_forward(x_nchw, params, residual_weight=0.1):
    def layer(x, lay):
        xb = x * lay["bn_scale"].reshape(1, 1, 1, -1) + lay["bn_shift"].reshape(1, 1, 1, -1)
        p = lay["pad"]
        y = lax.conv_general_dilated(
            xb, lay["w"], window_strides=(1, 1), padding=[(p, p), (p, p)],
            dimension_numbers=("NHWC", "HWIO", "NHWC"))
        y = y + lay["b"].reshape(1, 1, 1, -1)
        if lay["act"]:
            y = 0.5 * y * (1.0 + jax.scipy.special.erf(y / jnp.sqrt(2.0)))
        return y

    state = jnp.transpose(x_nchw, (0, 2, 3, 1))
    hist = []
    for lay in params["encoder"]:
        state = layer(state, lay)
        hist.append(state)
    for i, lay in enumerate(params["decoder"]):
        if i > 0:
            state = state + residual_weight * hist[-(i + 1)]
        state = layer(state, lay)
    return jnp.transpose(state, (0, 3, 1, 2))


if __name__ == "__main__":
    key = jax.random.PRNGKey(0)
    kx, kp = jax.random.split(key)

    shape = (4, 16, 16)        # (C, H, W), matching the PyTorch module's `shape`
    channels = (8, 8)          # hidden channel stack -> _channels = [4, 8, 8, 4]
    x = jax.random.normal(kx, (2, *shape), dtype=jnp.float32)   # NCHW input

    params = build_params(kp, shape, channels, kernel_size=3, padding=0)

    out = jax.block_until_ready(conv_denoiser_forward(x, params, residual_weight=0.1))
    assert out.shape == x.shape, out.shape

    ref = reference_forward(x, params, residual_weight=0.1)
    max_err = float(jnp.max(jnp.abs(out - ref)))
    # bf16 MXU inputs (per perf review): tolerance relaxed to 1e-2; observed error ~2-4e-3.
    assert jnp.allclose(out, ref, atol=1e-2, rtol=1e-2), max_err

    print("KERNEL_OK")
</pallas_src>

<mosaic_0001>
module attributes {stable_mosaic.version = 11 : i64} {
  func.func @_denoiser_kernel(%arg0: i32, %arg1: memref<1x8x1024xf32, #tpu.memory_space<vmem>>, %arg2: memref<6x8x80xbf16, #tpu.memory_space<vmem>>, %arg3: memref<6x8x1024xf32, #tpu.memory_space<vmem>>, %arg4: memref<3x8x1024xf32, #tpu.memory_space<vmem>>, %arg5: memref<1x8x1024xf32, #tpu.memory_space<vmem>>, %arg6: memref<80x1024xbf16, #tpu.memory_space<vmem>>, %arg7: memref<2x8x1024xf32, #tpu.memory_space<vmem>>) attributes {dimension_semantics = [#tpu.dimension_semantics<parallel>], iteration_bounds = array<i64: 1>, scalar_prefetch = 0 : i64, scratch_operands = 2 : i64, tpu.core_type = #tpu.core_type<tc>, window_params = [{transform_indices = @transform_0, window_bounds = array<i64: 1, 8, 1024>}, {pipeline_mode = #tpu.pipeline_mode<synchronous>, transform_indices = @transform_1, window_bounds = array<i64: 6, 8, 80>}, {pipeline_mode = #tpu.pipeline_mode<synchronous>, transform_indices = @transform_2, window_bounds = array<i64: 6, 8, 1024>}, {pipeline_mode = #tpu.pipeline_mode<synchronous>, transform_indices = @transform_3, window_bounds = array<i64: 3, 8, 1024>}, {transform_indices = @transform_4, window_bounds = array<i64: 1, 8, 1024>}]} {
    %c0 = arith.constant 0 : index
    %c0_0 = arith.constant 0 : index
    %c0_1 = arith.constant 0 : index
    %0 = vector.load %arg1[%c0, %c0_0, %c0_1] : memref<1x8x1024xf32, #tpu.memory_space<vmem>>, vector<1x8x1024xf32>
    %1 = vector.shape_cast %0 : vector<1x8x1024xf32> to vector<8x1024xf32>
    %c21_i32 = arith.constant 21 : i32
    %2 = tpu.dynamic_rotate %1 by %c21_i32 dim 1 : vector<8x1024xf32>, i32 -> vector<8x1024xf32>
    %c20_i32 = arith.constant 20 : i32
    %3 = tpu.dynamic_rotate %1 by %c20_i32 dim 1 : vector<8x1024xf32>, i32 -> vector<8x1024xf32>
    %4 = tpu.concatenate %2, %3 in 0 : vector<8x1024xf32>, vector<8x1024xf32> -> vector<16x1024xf32>
    %5 = arith.truncf %4 : vector<16x1024xf32> to vector<16x1024xbf16>
    %c0_2 = arith.constant 0 : index
    %c0_3 = arith.constant 0 : index
    %6 = vector.load %arg6[%c0_2, %c0_3] : memref<80x1024xbf16, #tpu.memory_space<vmem>>, vector<16x1024xbf16>
    tpu.vector_store %arg6[%c0_2, %c0_3], %5 {strides = array<i32>} : memref<80x1024xbf16, #tpu.memory_space<vmem>>, vector<16x1024xbf16>,
    %c19_i32 = arith.constant 19 : i32
    %7 = tpu.dynamic_rotate %1 by %c19_i32 dim 1 : vector<8x1024xf32>, i32 -> vector<8x1024xf32>
    %c1_i32 = arith.constant 1 : i32
    %8 = tpu.dynamic_rotate %1 by %c1_i32 dim 1 : vector<8x1024xf32>, i32 -> vector<8x1024xf32>
    %9 = tpu.concatenate %7, %8 in 0 : vector<8x1024xf32>, vector<8x1024xf32> -> vector<16x1024xf32>
    %10 = arith.truncf %9 : vector<16x1024xf32> to vector<16x1024xbf16>
    %c16 = arith.constant 16 : index
    %c0_4 = arith.constant 0 : index
    %11 = vector.load %arg6[%c16, %c0_4] : memref<80x1024xbf16, #tpu.memory_space<vmem>>, vector<16x1024xbf16>
    tpu.vector_store %arg6[%c16, %c0_4], %10 {strides = array<i32>} : memref<80x1024xbf16, #tpu.memory_space<vmem>>, vector<16x1024xbf16>,
    %c1023_i32 = arith.constant 1023 : i32
    %12 = tpu.dynamic_rotate %1 by %c1023_i32 dim 1 : vector<8x1024xf32>, i32 -> vector<8x1024xf32>
    %13 = tpu.concatenate %1, %12 in 0 : vector<8x1024xf32>, vector<8x1024xf32> -> vector<16x1024xf32>
    %14 = arith.truncf %13 : vector<16x1024xf32> to vector<16x1024xbf16>
    %c32 = arith.constant 32 : index
    %c0_5 = arith.constant 0 : index
    %15 = vector.load %arg6[%c32, %c0_5] : memref<80x1024xbf16, #tpu.memory_space<vmem>>, vector<16x1024xbf16>
    tpu.vector_store %arg6[%c32, %c0_5], %14 {strides = array<i32>} : memref<80x1024xbf16, #tpu.memory_space<vmem>>, vector<16x1024xbf16>,
    %c1005_i32 = arith.constant 1005 : i32
    %16 = tpu.dynamic_rotate %1 by %c1005_i32 dim 1 : vector<8x1024xf32>, i32 -> vector<8x1024xf32>
    %c1004_i32 = arith.constant 1004 : i32
    %17 = tpu.dynamic_rotate %1 by %c1004_i32 dim 1 : vector<8x1024xf32>, i32 -> vector<8x1024xf32>
    %18 = tpu.concatenate %16, %17 in 0 : vector<8x1024xf32>, vector<8x1024xf32> -> vector<16x1024xf32>
    %19 = arith.truncf %18 : vector<16x1024xf32> to vector<16x1024xbf16>
    %c48 = arith.constant 48 : index
    %c0_6 = arith.constant 0 : index
    %20 = vector.load %arg6[%c48, %c0_6] : memref<80x1024xbf16, #tpu.memory_space<vmem>>, vector<16x1024xbf16>
    tpu.vector_store %arg6[%c48, %c0_6], %19 {strides = array<i32>} : memref<80x1024xbf16, #tpu.memory_space<vmem>>, vector<16x1024xbf16>,
    %c1003_i32 = arith.constant 1003 : i32
    %21 = tpu.dynamic_rotate %1 by %c1003_i32 dim 1 : vector<8x1024xf32>, i32 -> vector<8x1024xf32>
    %22 = tpu.concatenate %21, %1 in 0 : vector<8x1024xf32>, vector<8x1024xf32> -> vector<16x1024xf32>
    %23 = arith.truncf %22 : vector<16x1024xf32> to vector<16x1024xbf16>
    %c64 = arith.constant 64 : index
    %c0_7 = arith.constant 0 : index
    %24 = vector.load %arg6[%c64, %c0_7] : memref<80x1024xbf16, #tpu.memory_space<vmem>>, vector<16x1024xbf16>
    tpu.vector_store %arg6[%c64, %c0_7], %23 {strides = array<i32>} : memref<80x1024xbf16, #tpu.memory_space<vmem>>, vector<16x1024xbf16>,
    %c0_8 = arith.constant 0 : index
    %c0_9 = arith.constant 0 : index
    %c0_10 = arith.constant 0 : index
    %25 = vector.load %arg3[%c0_8, %c0_9, %c0_10] : memref<6x8x1024xf32, #tpu.memory_space<vmem>>, vector<1x8x1024xf32>
    %26 = vector.shape_cast %25 : vector<1x8x1024xf32> to vector<8x1024xf32>
    %c0_11 = arith.constant 0 : index
    %c0_12 = arith.constant 0 : index
    %c0_13 = arith.constant 0 : index
    %27 = vector.load %arg2[%c0_11, %c0_12, %c0_13] : memref<6x8x80xbf16, #tpu.memory_space<vmem>>, vector<1x8x80xbf16>
    %28 = vector.shape_cast %27 : vector<1x8x80xbf16> to vector<8x80xbf16>
    %c0_14 = arith.constant 0 : index
    %c0_15 = arith.constant 0 : index
    %29 = vector.load %arg6[%c0_14, %c0_15] : memref<80x1024xbf16, #tpu.memory_space<vmem>>, vector<80x1024xbf16>
    %cst = arith.constant dense<0.000000e+00> : vector<8x1024xf32>
    %30 = tpu.matmul %28, %29, %cst {dimension_numbers = #tpu.dot_dimension_numbers<[1], [0], [0], [1], [0, 0, 1, 1], [], []>} : vector<8x80xbf16>, vector<80x1024xbf16>, vector<8x1024xf32> -> vector<8x1024xf32>
    %31 = arith.addf %26, %30 : vector<8x1024xf32>
    %cst_16 = arith.constant 5.000000e-01 : f32
    %32 = vector.broadcast %cst_16 : f32 to vector<8x1024xf32>
    %33 = arith.mulf %32, %31 : vector<8x1024xf32>
    %cst_17 = arith.constant 0.707106769 : f32
    %34 = vector.broadcast %cst_17 : f32 to vector<8x1024xf32>
    %35 = arith.mulf %31, %34 : vector<8x1024xf32>
    %cst_18 = arith.constant 0.000000e+00 : f32
    %36 = vector.broadcast %cst_18 : f32 to vector<8x1024xf32>
    %37 = arith.cmpf olt, %35, %36 : vector<8x1024xf32>
    %cst_19 = arith.constant -1.000000e+00 : f32
    %cst_20 = arith.constant 1.000000e+00 : f32
    %38 = vector.broadcast %cst_19 : f32 to vector<8x1024xf32>
    %39 = vector.broadcast %cst_20 : f32 to vector<8x1024xf32>
    %40 = arith.select %37, %38, %39 : vector<8x1024xi1>, vector<8x1024xf32>
    %41 = math.absf %35 : vector<8x1024xf32>
    %cst_21 = arith.constant 0.327591091 : f32
    %42 = vector.broadcast %cst_21 : f32 to vector<8x1024xf32>
    %43 = arith.mulf %42, %41 : vector<8x1024xf32>
    %cst_22 = arith.constant 1.000000e+00 : f32
    %44 = vector.broadcast %cst_22 : f32 to vector<8x1024xf32>
    %45 = arith.addf %44, %43 : vector<8x1024xf32>
    %46 = tpu.reciprocal %45 {approx = true} : vector<8x1024xf32> -> vector<8x1024xf32>
    %cst_23 = arith.constant 1.06140542 : f32
    %47 = vector.broadcast %cst_23 : f32 to vector<8x1024xf32>
    %48 = arith.mulf %47, %46 : vector<8x1024xf32>
    %cst_24 = arith.constant -1.45315206 : f32
    %49 = vector.broadcast %cst_24 : f32 to vector<8x1024xf32>
    %50 = arith.addf %48, %49 : vector<8x1024xf32>
    %51 = arith.mulf %50, %46 : vector<8x1024xf32>
    %cst_25 = arith.constant 1.42141378 : f32
    %52 = vector.broadcast %cst_25 : f32 to vector<8x1024xf32>
    %53 = arith.addf %51, %52 : vector<8x1024xf32>
    %54 = arith.mulf %53, %46 : vector<8x1024xf32>
    %cst_26 = arith.constant -0.284496725 : f32
    %55 = vector.broadcast %cst_26 : f32 to vector<8x1024xf32>
    %56 = arith.addf %54, %55 : vector<8x1024xf32>
    %57 = arith.mulf %56, %46 : vector<8x1024xf32>
    %cst_27 = arith.constant 0.254829586 : f32
    %58 = vector.broadcast %cst_27 : f32 to vector<8x1024xf32>
    %59 = arith.addf %57, %58 : vector<8x1024xf32>
    %60 = arith.mulf %59, %46 : vector<8x1024xf32>
    %cst_28 = arith.constant 0.000000e+00 : f32
    %61 = vector.broadcast %cst_28 : f32 to vector<8x1024xf32>
    %62 = arith.subf %61, %41 : vector<8x1024xf32>
    %63 = arith.mulf %62, %41 : vector<8x1024xf32>
    %64 = math.exp %63 : vector<8x1024xf32>
    %65 = arith.mulf %60, %64 : vector<8x1024xf32>
    %cst_29 = arith.constant 1.000000e+00 : f32
    %66 = vector.broadcast %cst_29 : f32 to vector<8x1024xf32>
    %67 = arith.subf %66, %65 : vector<8x1024xf32>
    %68 = arith.mulf %40, %67 : vector<8x1024xf32>
    %cst_30 = arith.constant 1.000000e+00 : f32
    %69 = vector.broadcast %cst_30 : f32 to vector<8x1024xf32>
    %70 = arith.addf %69, %68 : vector<8x1024xf32>
    %71 = arith.mulf %33, %70 : vector<8x1024xf32>
    %c0_31 = arith.constant 0 : index
    %c0_32 = arith.constant 0 : index
    %c0_33 = arith.constant 0 : index
    %72 = vector.load %arg4[%c0_31, %c0_32, %c0_33] : memref<3x8x1024xf32, #tpu.memory_space<vmem>>, vector<1x8x1024xf32>
    %73 = vector.shape_cast %72 : vector<1x8x1024xf32> to vector<8x1024xf32>
    %74 = arith.mulf %71, %73 : vector<8x1024xf32>
    %c0_34 = arith.constant 0 : index
    %c0_35 = arith.constant 0 : index
    %c0_36 = arith.constant 0 : index
    %75 = vector.load %arg7[%c0_34, %c0_35, %c0_36] : memref<2x8x1024xf32, #tpu.memory_space<vmem>>, vector<1x8x1024xf32>
    %76 = vector.shape_cast %75 : vector<1x8x1024xf32> to vector<8x1024xf32>
    %77 = vector.shape_cast %74 : vector<8x1024xf32> to vector<1x8x1024xf32>
    tpu.vector_store %arg7[%c0_34, %c0_35, %c0_36], %77 {strides = array<i32>} : memref<2x8x1024xf32, #tpu.memory_space<vmem>>, vector<1x8x1024xf32>,
    %c21_i32_37 = arith.constant 21 : i32
    %78 = tpu.dynamic_rotate %74 by %c21_i32_37 dim 1 : vector<8x1024xf32>, i32 -> vector<8x1024xf32>
    %c20_i32_38 = arith.constant 20 : i32
    %79 = tpu.dynamic_rotate %74 by %c20_i32_38 dim 1 : vector<8x1024xf32>, i32 -> vector<8x1024xf32>
    %80 = tpu.concatenate %78, %79 in 0 : vector<8x1024xf32>, vector<8x1024xf32> -> vector<16x1024xf32>
    %81 = arith.truncf %80 : vector<16x1024xf32> to vector<16x1024xbf16>
    %c0_39 = arith.constant 0 : index
    %c0_40 = arith.constant 0 : index
    %82 = vector.load %arg6[%c0_39, %c0_40] : memref<80x1024xbf16, #tpu.memory_space<vmem>>, vector<16x1024xbf16>
    tpu.vector_store %arg6[%c0_39, %c0_40], %81 {strides = array<i32>} : memref<80x1024xbf16, #tpu.memory_space<vmem>>, vector<16x1024xbf16>,
    %c19_i32_41 = arith.constant 19 : i32
    %83 = tpu.dynamic_rotate %74 by %c19_i32_41 dim 1 : vector<8x1024xf32>, i32 -> vector<8x1024xf32>
    %c1_i32_42 = arith.constant 1 : i32
    %84 = tpu.dynamic_rotate %74 by %c1_i32_42 dim 1 : vector<8x1024xf32>, i32 -> vector<8x1024xf32>
    %85 = tpu.concatenate %83, %84 in 0 : vector<8x1024xf32>, vector<8x1024xf32> -> vector<16x1024xf32>
    %86 = arith.truncf %85 : vector<16x1024xf32> to vector<16x1024xbf16>
    %c16_43 = arith.constant 16 : index
    %c0_44 = arith.constant 0 : index
    %87 = vector.load %arg6[%c16_43, %c0_44] : memref<80x1024xbf16, #tpu.memory_space<vmem>>, vector<16x1024xbf16>
    tpu.vector_store %arg6[%c16_43, %c0_44], %86 {strides = array<i32>} : memref<80x1024xbf16, #tpu.memory_space<vmem>>, vector<16x1024xbf16>,
    %c1023_i32_45 = arith.constant 1023 : i32
    %88 = tpu.dynamic_rotate %74 by %c1023_i32_45 dim 1 : vector<8x1024xf32>, i32 -> vector<8x1024xf32>
    %89 = tpu.concatenate %74, %88 in 0 : vector<8x1024xf32>, vector<8x1024xf32> -> vector<16x1024xf32>
    %90 = arith.truncf %89 : vector<16x1024xf32> to vector<16x1024xbf16>
    %c32_46 = arith.constant 32 : index
    %c0_47 = arith.constant 0 : index
    %91 = vector.load %arg6[%c32_46, %c0_47] : memref<80x1024xbf16, #tpu.memory_space<vmem>>, vector<16x1024xbf16>
    tpu.vector_store %arg6[%c32_46, %c0_47], %90 {strides = array<i32>} : memref<80x1024xbf16, #tpu.memory_space<vmem>>, vector<16x1024xbf16>,
    %c1005_i32_48 = arith.constant 1005 : i32
    %92 = tpu.dynamic_rotate %74 by %c1005_i32_48 dim 1 : vector<8x1024xf32>, i32 -> vector<8x1024xf32>
    %c1004_i32_49 = arith.constant 1004 : i32
    %93 = tpu.dynamic_rotate %74 by %c1004_i32_49 dim 1 : vector<8x1024xf32>, i32 -> vector<8x1024xf32>
    %94 = tpu.concatenate %92, %93 in 0 : vector<8x1024xf32>, vector<8x1024xf32> -> vector<16x1024xf32>
    %95 = arith.truncf %94 : vector<16x1024xf32> to vector<16x1024xbf16>
    %c48_50 = arith.constant 48 : index
    %c0_51 = arith.constant 0 : index
    %96 = vector.load %arg6[%c48_50, %c0_51] : memref<80x1024xbf16, #tpu.memory_space<vmem>>, vector<16x1024xbf16>
    tpu.vector_store %arg6[%c48_50, %c0_51], %95 {strides = array<i32>} : memref<80x1024xbf16, #tpu.memory_space<vmem>>, vector<16x1024xbf16>,
    %c1003_i32_52 = arith.constant 1003 : i32
    %97 = tpu.dynamic_rotate %74 by %c1003_i32_52 dim 1 : vector<8x1024xf32>, i32 -> vector<8x1024xf32>
    %98 = tpu.concatenate %97, %74 in 0 : vector<8x1024xf32>, vector<8x1024xf32> -> vector<16x1024xf32>
    %99 = arith.truncf %98 : vector<16x1024xf32> to vector<16x1024xbf16>
    %c64_53 = arith.constant 64 : index
    %c0_54 = arith.constant 0 : index
    %100 = vector.load %arg6[%c64_53, %c0_54] : memref<80x1024xbf16, #tpu.memory_space<vmem>>, vector<16x1024xbf16>
    tpu.vector_store %arg6[%c64_53, %c0_54], %99 {strides = array<i32>} : memref<80x1024xbf16, #tpu.memory_space<vmem>>, vector<16x1024xbf16>,
    %c1 = arith.constant 1 : index
    %c0_55 = arith.constant 0 : index
    %c0_56 = arith.constant 0 : index
    %101 = vector.load %arg3[%c1, %c0_55, %c0_56] : memref<6x8x1024xf32, #tpu.memory_space<vmem>>, vector<1x8x1024xf32>
    %102 = vector.shape_cast %101 : vector<1x8x1024xf32> to vector<8x1024xf32>
    %c1_57 = arith.constant 1 : index
    %c0_58 = arith.constant 0 : index
    %c0_59 = arith.constant 0 : index
    %103 = vector.load %arg2[%c1_57, %c0_58, %c0_59] : memref<6x8x80xbf16, #tpu.memory_space<vmem>>, vector<1x8x80xbf16>
    %104 = vector.shape_cast %103 : vector<1x8x80xbf16> to vector<8x80xbf16>
    %c0_60 = arith.constant 0 : index
    %c0_61 = arith.constant 0 : index
    %105 = vector.load %arg6[%c0_60, %c0_61] : memref<80x1024xbf16, #tpu.memory_space<vmem>>, vector<80x1024xbf16>
    %cst_62 = arith.constant dense<0.000000e+00> : vector<8x1024xf32>
    %106 = tpu.matmul %104, %105, %cst_62 {dimension_numbers = #tpu.dot_dimension_numbers<[1], [0], [0], [1], [0, 0, 1, 1], [], []>} : vector<8x80xbf16>, vector<80x1024xbf16>, vector<8x1024xf32> -> vector<8x1024xf32>
    %107 = arith.addf %102, %106 : vector<8x1024xf32>
    %cst_63 = arith.constant 5.000000e-01 : f32
    %108 = vector.broadcast %cst_63 : f32 to vector<8x1024xf32>
    %109 = arith.mulf %108, %107 : vector<8x1024xf32>
    %cst_64 = arith.constant 0.707106769 : f32
    %110 = vector.broadcast %cst_64 : f32 to vector<8x1024xf32>
    %111 = arith.mulf %107, %110 : vector<8x1024xf32>
    %cst_65 = arith.constant 0.000000e+00 : f32
    %112 = vector.broadcast %cst_65 : f32 to vector<8x1024xf32>
    %113 = arith.cmpf olt, %111, %112 : vector<8x1024xf32>
    %cst_66 = arith.constant -1.000000e+00 : f32
    %cst_67 = arith.constant 1.000000e+00 : f32
    %114 = vector.broadcast %cst_66 : f32 to vector<8x1024xf32>
    %115 = vector.broadcast %cst_67 : f32 to vector<8x1024xf32>
    %116 = arith.select %113, %114, %115 : vector<8x1024xi1>, vector<8x1024xf32>
    %117 = math.absf %111 : vector<8x1024xf32>
    %cst_68 = arith.constant 0.327591091 : f32
    %118 = vector.broadcast %cst_68 : f32 to vector<8x1024xf32>
    %119 = arith.mulf %118, %117 : vector<8x1024xf32>
    %cst_69 = arith.constant 1.000000e+00 : f32
    %120 = vector.broadcast %cst_69 : f32 to vector<8x1024xf32>
    %121 = arith.addf %120, %119 : vector<8x1024xf32>
    %122 = tpu.reciprocal %121 {approx = true} : vector<8x1024xf32> -> vector<8x1024xf32>
    %cst_70 = arith.constant 1.06140542 : f32
    %123 = vector.broadcast %cst_70 : f32 to vector<8x1024xf32>
    %124 = arith.mulf %123, %122 : vector<8x1024xf32>
    %cst_71 = arith.constant -1.45315206 : f32
    %125 = vector.broadcast %cst_71 : f32 to vector<8x1024xf32>
    %126 = arith.addf %124, %125 : vector<8x1024xf32>
    %127 = arith.mulf %126, %122 : vector<8x1024xf32>
    %cst_72 = arith.constant 1.42141378 : f32
    %128 = vector.broadcast %cst_72 : f32 to vector<8x1024xf32>
    %129 = arith.addf %127, %128 : vector<8x1024xf32>
    %130 = arith.mulf %129, %122 : vector<8x1024xf32>
    %cst_73 = arith.constant -0.284496725 : f32
    %131 = vector.broadcast %cst_73 : f32 to vector<8x1024xf32>
    %132 = arith.addf %130, %131 : vector<8x1024xf32>
    %133 = arith.mulf %132, %122 : vector<8x1024xf32>
    %cst_74 = arith.constant 0.254829586 : f32
    %134 = vector.broadcast %cst_74 : f32 to vector<8x1024xf32>
    %135 = arith.addf %133, %134 : vector<8x1024xf32>
    %136 = arith.mulf %135, %122 : vector<8x1024xf32>
    %cst_75 = arith.constant 0.000000e+00 : f32
    %137 = vector.broadcast %cst_75 : f32 to vector<8x1024xf32>
    %138 = arith.subf %137, %117 : vector<8x1024xf32>
    %139 = arith.mulf %138, %117 : vector<8x1024xf32>
    %140 = math.exp %139 : vector<8x1024xf32>
    %141 = arith.mulf %136, %140 : vector<8x1024xf32>
    %cst_76 = arith.constant 1.000000e+00 : f32
    %142 = vector.broadcast %cst_76 : f32 to vector<8x1024xf32>
    %143 = arith.subf %142, %141 : vector<8x1024xf32>
    %144 = arith.mulf %116, %143 : vector<8x1024xf32>
    %cst_77 = arith.constant 1.000000e+00 : f32
    %145 = vector.broadcast %cst_77 : f32 to vector<8x1024xf32>
    %146 = arith.addf %145, %144 : vector<8x1024xf32>
    %147 = arith.mulf %109, %146 : vector<8x1024xf32>
    %c1_78 = arith.constant 1 : index
    %c0_79 = arith.constant 0 : index
    %c0_80 = arith.constant 0 : index
    %148 = vector.load %arg4[%c1_78, %c0_79, %c0_80] : memref<3x8x1024xf32, #tpu.memory_space<vmem>>, vector<1x8x1024xf32>
    %149 = vector.shape_cast %148 : vector<1x8x1024xf32> to vector<8x1024xf32>
    %150 = arith.mulf %147, %149 : vector<8x1024xf32>
    %c1_81 = arith.constant 1 : index
    %c0_82 = arith.constant 0 : index
    %c0_83 = arith.constant 0 : index
    %151 = vector.load %arg7[%c1_81, %c0_82, %c0_83] : memref<2x8x1024xf32, #tpu.memory_space<vmem>>, vector<1x8x1024xf32>
    %152 = vector.shape_cast %151 : vector<1x8x1024xf32> to vector<8x1024xf32>
    %153 = vector.shape_cast %150 : vector<8x1024xf32> to vector<1x8x1024xf32>
    tpu.vector_store %arg7[%c1_81, %c0_82, %c0_83], %153 {strides = array<i32>} : memref<2x8x1024xf32, #tpu.memory_space<vmem>>, vector<1x8x1024xf32>,
    %c21_i32_84 = arith.constant 21 : i32
    %154 = tpu.dynamic_rotate %150 by %c21_i32_84 dim 1 : vector<8x1024xf32>, i32 -> vector<8x1024xf32>
    %c20_i32_85 = arith.constant 20 : i32
    %155 = tpu.dynamic_rotate %150 by %c20_i32_85 dim 1 : vector<8x1024xf32>, i32 -> vector<8x1024xf32>
    %156 = tpu.concatenate %154, %155 in 0 : vector<8x1024xf32>, vector<8x1024xf32> -> vector<16x1024xf32>
    %157 = arith.truncf %156 : vector<16x1024xf32> to vector<16x1024xbf16>
    %c0_86 = arith.constant 0 : index
    %c0_87 = arith.constant 0 : index
    %158 = vector.load %arg6[%c0_86, %c0_87] : memref<80x1024xbf16, #tpu.memory_space<vmem>>, vector<16x1024xbf16>
    tpu.vector_store %arg6[%c0_86, %c0_87], %157 {strides = array<i32>} : memref<80x1024xbf16, #tpu.memory_space<vmem>>, vector<16x1024xbf16>,
    %c19_i32_88 = arith.constant 19 : i32
    %159 = tpu.dynamic_rotate %150 by %c19_i32_88 dim 1 : vector<8x1024xf32>, i32 -> vector<8x1024xf32>
    %c1_i32_89 = arith.constant 1 : i32
    %160 = tpu.dynamic_rotate %150 by %c1_i32_89 dim 1 : vector<8x1024xf32>, i32 -> vector<8x1024xf32>
    %161 = tpu.concatenate %159, %160 in 0 : vector<8x1024xf32>, vector<8x1024xf32> -> vector<16x1024xf32>
    %162 = arith.truncf %161 : vector<16x1024xf32> to vector<16x1024xbf16>
    %c16_90 = arith.constant 16 : index
    %c0_91 = arith.constant 0 : index
    %163 = vector.load %arg6[%c16_90, %c0_91] : memref<80x1024xbf16, #tpu.memory_space<vmem>>, vector<16x1024xbf16>
    tpu.vector_store %arg6[%c16_90, %c0_91], %162 {strides = array<i32>} : memref<80x1024xbf16, #tpu.memory_space<vmem>>, vector<16x1024xbf16>,
    %c1023_i32_92 = arith.constant 1023 : i32
    %164 = tpu.dynamic_rotate %150 by %c1023_i32_92 dim 1 : vector<8x1024xf32>, i32 -> vector<8x1024xf32>
    %165 = tpu.concatenate %150, %164 in 0 : vector<8x1024xf32>, vector<8x1024xf32> -> vector<16x1024xf32>
    %166 = arith.truncf %165 : vector<16x1024xf32> to vector<16x1024xbf16>
    %c32_93 = arith.constant 32 : index
    %c0_94 = arith.constant 0 : index
    %167 = vector.load %arg6[%c32_93, %c0_94] : memref<80x1024xbf16, #tpu.memory_space<vmem>>, vector<16x1024xbf16>
    tpu.vector_store %arg6[%c32_93, %c0_94], %166 {strides = array<i32>} : memref<80x1024xbf16, #tpu.memory_space<vmem>>, vector<16x1024xbf16>,
    %c1005_i32_95 = arith.constant 1005 : i32
    %168 = tpu.dynamic_rotate %150 by %c1005_i32_95 dim 1 : vector<8x1024xf32>, i32 -> vector<8x1024xf32>
    %c1004_i32_96 = arith.constant 1004 : i32
    %169 = tpu.dynamic_rotate %150 by %c1004_i32_96 dim 1 : vector<8x1024xf32>, i32 -> vector<8x1024xf32>
    %170 = tpu.concatenate %168, %169 in 0 : vector<8x1024xf32>, vector<8x1024xf32> -> vector<16x1024xf32>
    %171 = arith.truncf %170 : vector<16x1024xf32> to vector<16x1024xbf16>
    %c48_97 = arith.constant 48 : index
    %c0_98 = arith.constant 0 : index
    %172 = vector.load %arg6[%c48_97, %c0_98] : memref<80x1024xbf16, #tpu.memory_space<vmem>>, vector<16x1024xbf16>
    tpu.vector_store %arg6[%c48_97, %c0_98], %171 {strides = array<i32>} : memref<80x1024xbf16, #tpu.memory_space<vmem>>, vector<16x1024xbf16>,
    %c1003_i32_99 = arith.constant 1003 : i32
    %173 = tpu.dynamic_rotate %150 by %c1003_i32_99 dim 1 : vector<8x1024xf32>, i32 -> vector<8x1024xf32>
    %174 = tpu.concatenate %173, %150 in 0 : vector<8x1024xf32>, vector<8x1024xf32> -> vector<16x1024xf32>
    %175 = arith.truncf %174 : vector<16x1024xf32> to vector<16x1024xbf16>
    %c64_100 = arith.constant 64 : index
    %c0_101 = arith.constant 0 : index
    %176 = vector.load %arg6[%c64_100, %c0_101] : memref<80x1024xbf16, #tpu.memory_space<vmem>>, vector<16x1024xbf16>
    tpu.vector_store %arg6[%c64_100, %c0_101], %175 {strides = array<i32>} : memref<80x1024xbf16, #tpu.memory_space<vmem>>, vector<16x1024xbf16>,
    %c2 = arith.constant 2 : index
    %c0_102 = arith.constant 0 : index
    %c0_103 = arith.constant 0 : index
    %177 = vector.load %arg3[%c2, %c0_102, %c0_103] : memref<6x8x1024xf32, #tpu.memory_space<vmem>>, vector<1x8x1024xf32>
    %178 = vector.shape_cast %177 : vector<1x8x1024xf32> to vector<8x1024xf32>
    %c2_104 = arith.constant 2 : index
    %c0_105 = arith.constant 0 : index
    %c0_106 = arith.constant 0 : index
    %179 = vector.load %arg2[%c2_104, %c0_105, %c0_106] : memref<6x8x80xbf16, #tpu.memory_space<vmem>>, vector<1x8x80xbf16>
    %180 = vector.shape_cast %179 : vector<1x8x80xbf16> to vector<8x80xbf16>
    %c0_107 = arith.constant 0 : index
    %c0_108 = arith.constant 0 : index
    %181 = vector.load %arg6[%c0_107, %c0_108] : memref<80x1024xbf16, #tpu.memory_space<vmem>>, vector<80x1024xbf16>
    %cst_109 = arith.constant dense<0.000000e+00> : vector<8x1024xf32>
    %182 = tpu.matmul %180, %181, %cst_109 {dimension_numbers = #tpu.dot_dimension_numbers<[1], [0], [0], [1], [0, 0, 1, 1], [], []>} : vector<8x80xbf16>, vector<80x1024xbf16>, vector<8x1024xf32> -> vector<8x1024xf32>
    %183 = arith.addf %178, %182 : vector<8x1024xf32>
    %cst_110 = arith.constant 5.000000e-01 : f32
    %184 = vector.broadcast %cst_110 : f32 to vector<8x1024xf32>
    %185 = arith.mulf %184, %183 : vector<8x1024xf32>
    %cst_111 = arith.constant 0.707106769 : f32
    %186 = vector.broadcast %cst_111 : f32 to vector<8x1024xf32>
    %187 = arith.mulf %183, %186 : vector<8x1024xf32>
    %cst_112 = arith.constant 0.000000e+00 : f32
    %188 = vector.broadcast %cst_112 : f32 to vector<8x1024xf32>
    %189 = arith.cmpf olt, %187, %188 : vector<8x1024xf32>
    %cst_113 = arith.constant -1.000000e+00 : f32
    %cst_114 = arith.constant 1.000000e+00 : f32
    %190 = vector.broadcast %cst_113 : f32 to vector<8x1024xf32>
    %191 = vector.broadcast %cst_114 : f32 to vector<8x1024xf32>
    %192 = arith.select %189, %190, %191 : vector<8x1024xi1>, vector<8x1024xf32>
    %193 = math.absf %187 : vector<8x1024xf32>
    %cst_115 = arith.constant 0.327591091 : f32
    %194 = vector.broadcast %cst_115 : f32 to vector<8x1024xf32>
    %195 = arith.mulf %194, %193 : vector<8x1024xf32>
    %cst_116 = arith.constant 1.000000e+00 : f32
    %196 = vector.broadcast %cst_116 : f32 to vector<8x1024xf32>
    %197 = arith.addf %196, %195 : vector<8x1024xf32>
    %198 = tpu.reciprocal %197 {approx = true} : vector<8x1024xf32> -> vector<8x1024xf32>
    %cst_117 = arith.constant 1.06140542 : f32
    %199 = vector.broadcast %cst_117 : f32 to vector<8x1024xf32>
    %200 = arith.mulf %199, %198 : vector<8x1024xf32>
    %cst_118 = arith.constant -1.45315206 : f32
    %201 = vector.broadcast %cst_118 : f32 to vector<8x1024xf32>
    %202 = arith.addf %200, %201 : vector<8x1024xf32>
    %203 = arith.mulf %202, %198 : vector<8x1024xf32>
    %cst_119 = arith.constant 1.42141378 : f32
    %204 = vector.broadcast %cst_119 : f32 to vector<8x1024xf32>
    %205 = arith.addf %203, %204 : vector<8x1024xf32>
    %206 = arith.mulf %205, %198 : vector<8x1024xf32>
    %cst_120 = arith.constant -0.284496725 : f32
    %207 = vector.broadcast %cst_120 : f32 to vector<8x1024xf32>
    %208 = arith.addf %206, %207 : vector<8x1024xf32>
    %209 = arith.mulf %208, %198 : vector<8x1024xf32>
    %cst_121 = arith.constant 0.254829586 : f32
    %210 = vector.broadcast %cst_121 : f32 to vector<8x1024xf32>
    %211 = arith.addf %209, %210 : vector<8x1024xf32>
    %212 = arith.mulf %211, %198 : vector<8x1024xf32>
    %cst_122 = arith.constant 0.000000e+00 : f32
    %213 = vector.broadcast %cst_122 : f32 to vector<8x1024xf32>
    %214 = arith.subf %213, %193 : vector<8x1024xf32>
    %215 = arith.mulf %214, %193 : vector<8x1024xf32>
    %216 = math.exp %215 : vector<8x1024xf32>
    %217 = arith.mulf %212, %216 : vector<8x1024xf32>
    %cst_123 = arith.constant 1.000000e+00 : f32
    %218 = vector.broadcast %cst_123 : f32 to vector<8x1024xf32>
    %219 = arith.subf %218, %217 : vector<8x1024xf32>
    %220 = arith.mulf %192, %219 : vector<8x1024xf32>
    %cst_124 = arith.constant 1.000000e+00 : f32
    %221 = vector.broadcast %cst_124 : f32 to vector<8x1024xf32>
    %222 = arith.addf %221, %220 : vector<8x1024xf32>
    %223 = arith.mulf %185, %222 : vector<8x1024xf32>
    %c2_125 = arith.constant 2 : index
    %c0_126 = arith.constant 0 : index
    %c0_127 = arith.constant 0 : index
    %224 = vector.load %arg4[%c2_125, %c0_126, %c0_127] : memref<3x8x1024xf32, #tpu.memory_space<vmem>>, vector<1x8x1024xf32>
    %225 = vector.shape_cast %224 : vector<1x8x1024xf32> to vector<8x1024xf32>
    %226 = arith.mulf %223, %225 : vector<8x1024xf32>
    %c21_i32_128 = arith.constant 21 : i32
    %227 = tpu.dynamic_rotate %226 by %c21_i32_128 dim 1 : vector<8x1024xf32>, i32 -> vector<8x1024xf32>
    %c20_i32_129 = arith.constant 20 : i32
    %228 = tpu.dynamic_rotate %226 by %c20_i32_129 dim 1 : vector<8x1024xf32>, i32 -> vector<8x1024xf32>
    %229 = tpu.concatenate %227, %228 in 0 : vector<8x1024xf32>, vector<8x1024xf32> -> vector<16x1024xf32>
    %230 = arith.truncf %229 : vector<16x1024xf32> to vector<16x1024xbf16>
    %c0_130 = arith.constant 0 : index
    %c0_131 = arith.constant 0 : index
    %231 = vector.load %arg6[%c0_130, %c0_131] : memref<80x1024xbf16, #tpu.memory_space<vmem>>, vector<16x1024xbf16>
    tpu.vector_store %arg6[%c0_130, %c0_131], %230 {strides = array<i32>} : memref<80x1024xbf16, #tpu.memory_space<vmem>>, vector<16x1024xbf16>,
    %c19_i32_132 = arith.constant 19 : i32
    %232 = tpu.dynamic_rotate %226 by %c19_i32_132 dim 1 : vector<8x1024xf32>, i32 -> vector<8x1024xf32>
    %c1_i32_133 = arith.constant 1 : i32
    %233 = tpu.dynamic_rotate %226 by %c1_i32_133 dim 1 : vector<8x1024xf32>, i32 -> vector<8x1024xf32>
    %234 = tpu.concatenate %232, %233 in 0 : vector<8x1024xf32>, vector<8x1024xf32> -> vector<16x1024xf32>
    %235 = arith.truncf %234 : vector<16x1024xf32> to vector<16x1024xbf16>
    %c16_134 = arith.constant 16 : index
    %c0_135 = arith.constant 0 : index
    %236 = vector.load %arg6[%c16_134, %c0_135] : memref<80x1024xbf16, #tpu.memory_space<vmem>>, vector<16x1024xbf16>
    tpu.vector_store %arg6[%c16_134, %c0_135], %235 {strides = array<i32>} : memref<80x1024xbf16, #tpu.memory_space<vmem>>, vector<16x1024xbf16>,
    %c1023_i32_136 = arith.constant 1023 : i32
    %237 = tpu.dynamic_rotate %226 by %c1023_i32_136 dim 1 : vector<8x1024xf32>, i32 -> vector<8x1024xf32>
    %238 = tpu.concatenate %226, %237 in 0 : vector<8x1024xf32>, vector<8x1024xf32> -> vector<16x1024xf32>
    %239 = arith.truncf %238 : vector<16x1024xf32> to vector<16x1024xbf16>
    %c32_137 = arith.constant 32 : index
    %c0_138 = arith.constant 0 : index
    %240 = vector.load %arg6[%c32_137, %c0_138] : memref<80x1024xbf16, #tpu.memory_space<vmem>>, vector<16x1024xbf16>
    tpu.vector_store %arg6[%c32_137, %c0_138], %239 {strides = array<i32>} : memref<80x1024xbf16, #tpu.memory_space<vmem>>, vector<16x1024xbf16>,
    %c1005_i32_139 = arith.constant 1005 : i32
    %241 = tpu.dynamic_rotate %226 by %c1005_i32_139 dim 1 : vector<8x1024xf32>, i32 -> vector<8x1024xf32>
    %c1004_i32_140 = arith.constant 1004 : i32
    %242 = tpu.dynamic_rotate %226 by %c1004_i32_140 dim 1 : vector<8x1024xf32>, i32 -> vector<8x1024xf32>
    %243 = tpu.concatenate %241, %242 in 0 : vector<8x1024xf32>, vector<8x1024xf32> -> vector<16x1024xf32>
    %244 = arith.truncf %243 : vector<16x1024xf32> to vector<16x1024xbf16>
    %c48_141 = arith.constant 48 : index
    %c0_142 = arith.constant 0 : index
    %245 = vector.load %arg6[%c48_141, %c0_142] : memref<80x1024xbf16, #tpu.memory_space<vmem>>, vector<16x1024xbf16>
    tpu.vector_store %arg6[%c48_141, %c0_142], %244 {strides = array<i32>} : memref<80x1024xbf16, #tpu.memory_space<vmem>>, vector<16x1024xbf16>,
    %c1003_i32_143 = arith.constant 1003 : i32
    %246 = tpu.dynamic_rotate %226 by %c1003_i32_143 dim 1 : vector<8x1024xf32>, i32 -> vector<8x1024xf32>
    %247 = tpu.concatenate %246, %226 in 0 : vector<8x1024xf32>, vector<8x1024xf32> -> vector<16x1024xf32>
    %248 = arith.truncf %247 : vector<16x1024xf32> to vector<16x1024xbf16>
    %c64_144 = arith.constant 64 : index
    %c0_145 = arith.constant 0 : index
    %249 = vector.load %arg6[%c64_144, %c0_145] : memref<80x1024xbf16, #tpu.memory_space<vmem>>, vector<16x1024xbf16>
    tpu.vector_store %arg6[%c64_144, %c0_145], %248 {strides = array<i32>} : memref<80x1024xbf16, #tpu.memory_space<vmem>>, vector<16x1024xbf16>,
    %c3 = arith.constant 3 : index
    %c0_146 = arith.constant 0 : index
    %c0_147 = arith.constant 0 : index
    %250 = vector.load %arg3[%c3, %c0_146, %c0_147] : memref<6x8x1024xf32, #tpu.memory_space<vmem>>, vector<1x8x1024xf32>
    %251 = vector.shape_cast %250 : vector<1x8x1024xf32> to vector<8x1024xf32>
    %c3_148 = arith.constant 3 : index
    %c0_149 = arith.constant 0 : index
    %c0_150 = arith.constant 0 : index
    %252 = vector.load %arg2[%c3_148, %c0_149, %c0_150] : memref<6x8x80xbf16, #tpu.memory_space<vmem>>, vector<1x8x80xbf16>
    %253 = vector.shape_cast %252 : vector<1x8x80xbf16> to vector<8x80xbf16>
    %c0_151 = arith.constant 0 : index
    %c0_152 = arith.constant 0 : index
    %254 = vector.load %arg6[%c0_151, %c0_152] : memref<80x1024xbf16, #tpu.memory_space<vmem>>, vector<80x1024xbf16>
    %cst_153 = arith.constant dense<0.000000e+00> : vector<8x1024xf32>
    %255 = tpu.matmul %253, %254, %cst_153 {dimension_numbers = #tpu.dot_dimension_numbers<[1], [0], [0], [1], [0, 0, 1, 1], [], []>} : vector<8x80xbf16>, vector<80x1024xbf16>, vector<8x1024xf32> -> vector<8x1024xf32>
    %256 = arith.addf %251, %255 : vector<8x1024xf32>
    %cst_154 = arith.constant 5.000000e-01 : f32
    %257 = vector.broadcast %cst_154 : f32 to vector<8x1024xf32>
    %258 = arith.mulf %257, %256 : vector<8x1024xf32>
    %cst_155 = arith.constant 0.707106769 : f32
    %259 = vector.broadcast %cst_155 : f32 to vector<8x1024xf32>
    %260 = arith.mulf %256, %259 : vector<8x1024xf32>
    %cst_156 = arith.constant 0.000000e+00 : f32
    %261 = vector.broadcast %cst_156 : f32 to vector<8x1024xf32>
    %262 = arith.cmpf olt, %260, %261 : vector<8x1024xf32>
    %cst_157 = arith.constant -1.000000e+00 : f32
    %cst_158 = arith.constant 1.000000e+00 : f32
    %263 = vector.broadcast %cst_157 : f32 to vector<8x1024xf32>
    %264 = vector.broadcast %cst_158 : f32 to vector<8x1024xf32>
    %265 = arith.select %262, %263, %264 : vector<8x1024xi1>, vector<8x1024xf32>
    %266 = math.absf %260 : vector<8x1024xf32>
    %cst_159 = arith.constant 0.327591091 : f32
    %267 = vector.broadcast %cst_159 : f32 to vector<8x1024xf32>
    %268 = arith.mulf %267, %266 : vector<8x1024xf32>
    %cst_160 = arith.constant 1.000000e+00 : f32
    %269 = vector.broadcast %cst_160 : f32 to vector<8x1024xf32>
    %270 = arith.addf %269, %268 : vector<8x1024xf32>
    %271 = tpu.reciprocal %270 {approx = true} : vector<8x1024xf32> -> vector<8x1024xf32>
    %cst_161 = arith.constant 1.06140542 : f32
    %272 = vector.broadcast %cst_161 : f32 to vector<8x1024xf32>
    %273 = arith.mulf %272, %271 : vector<8x1024xf32>
    %cst_162 = arith.constant -1.45315206 : f32
    %274 = vector.broadcast %cst_162 : f32 to vector<8x1024xf32>
    %275 = arith.addf %273, %274 : vector<8x1024xf32>
    %276 = arith.mulf %275, %271 : vector<8x1024xf32>
    %cst_163 = arith.constant 1.42141378 : f32
    %277 = vector.broadcast %cst_163 : f32 to vector<8x1024xf32>
    %278 = arith.addf %276, %277 : vector<8x1024xf32>
    %279 = arith.mulf %278, %271 : vector<8x1024xf32>
    %cst_164 = arith.constant -0.284496725 : f32
    %280 = vector.broadcast %cst_164 : f32 to vector<8x1024xf32>
    %281 = arith.addf %279, %280 : vector<8x1024xf32>
    %282 = arith.mulf %281, %271 : vector<8x1024xf32>
    %cst_165 = arith.constant 0.254829586 : f32
    %283 = vector.broadcast %cst_165 : f32 to vector<8x1024xf32>
    %284 = arith.addf %282, %283 : vector<8x1024xf32>
    %285 = arith.mulf %284, %271 : vector<8x1024xf32>
    %cst_166 = arith.constant 0.000000e+00 : f32
    %286 = vector.broadcast %cst_166 : f32 to vector<8x1024xf32>
    %287 = arith.subf %286, %266 : vector<8x1024xf32>
    %288 = arith.mulf %287, %266 : vector<8x1024xf32>
    %289 = math.exp %288 : vector<8x1024xf32>
    %290 = arith.mulf %285, %289 : vector<8x1024xf32>
    %cst_167 = arith.constant 1.000000e+00 : f32
    %291 = vector.broadcast %cst_167 : f32 to vector<8x1024xf32>
    %292 = arith.subf %291, %290 : vector<8x1024xf32>
    %293 = arith.mulf %265, %292 : vector<8x1024xf32>
    %cst_168 = arith.constant 1.000000e+00 : f32
    %294 = vector.broadcast %cst_168 : f32 to vector<8x1024xf32>
    %295 = arith.addf %294, %293 : vector<8x1024xf32>
    %296 = arith.mulf %258, %295 : vector<8x1024xf32>
    %c1_169 = arith.constant 1 : index
    %c0_170 = arith.constant 0 : index
    %c0_171 = arith.constant 0 : index
    %297 = vector.load %arg7[%c1_169, %c0_170, %c0_171] : memref<2x8x1024xf32, #tpu.memory_space<vmem>>, vector<1x8x1024xf32>
    %298 = vector.shape_cast %297 : vector<1x8x1024xf32> to vector<8x1024xf32>
    %cst_172 = arith.constant 1.000000e-01 : f32
    %299 = vector.broadcast %cst_172 : f32 to vector<8x1024xf32>
    %300 = arith.mulf %299, %298 : vector<8x1024xf32>
    %301 = arith.addf %296, %300 : vector<8x1024xf32>
    %c21_i32_173 = arith.constant 21 : i32
    %302 = tpu.dynamic_rotate %301 by %c21_i32_173 dim 1 : vector<8x1024xf32>, i32 -> vector<8x1024xf32>
    %c20_i32_174 = arith.constant 20 : i32
    %303 = tpu.dynamic_rotate %301 by %c20_i32_174 dim 1 : vector<8x1024xf32>, i32 -> vector<8x1024xf32>
    %304 = tpu.concatenate %302, %303 in 0 : vector<8x1024xf32>, vector<8x1024xf32> -> vector<16x1024xf32>
    %305 = arith.truncf %304 : vector<16x1024xf32> to vector<16x1024xbf16>
    %c0_175 = arith.constant 0 : index
    %c0_176 = arith.constant 0 : index
    %306 = vector.load %arg6[%c0_175, %c0_176] : memref<80x1024xbf16, #tpu.memory_space<vmem>>, vector<16x1024xbf16>
    tpu.vector_store %arg6[%c0_175, %c0_176], %305 {strides = array<i32>} : memref<80x1024xbf16, #tpu.memory_space<vmem>>, vector<16x1024xbf16>,
    %c19_i32_177 = arith.constant 19 : i32
    %307 = tpu.dynamic_rotate %301 by %c19_i32_177 dim 1 : vector<8x1024xf32>, i32 -> vector<8x1024xf32>
    %c1_i32_178 = arith.constant 1 : i32
    %308 = tpu.dynamic_rotate %301 by %c1_i32_178 dim 1 : vector<8x1024xf32>, i32 -> vector<8x1024xf32>
    %309 = tpu.concatenate %307, %308 in 0 : vector<8x1024xf32>, vector<8x1024xf32> -> vector<16x1024xf32>
    %310 = arith.truncf %309 : vector<16x1024xf32> to vector<16x1024xbf16>
    %c16_179 = arith.constant 16 : index
    %c0_180 = arith.constant 0 : index
    %311 = vector.load %arg6[%c16_179, %c0_180] : memref<80x1024xbf16, #tpu.memory_space<vmem>>, vector<16x1024xbf16>
    tpu.vector_store %arg6[%c16_179, %c0_180], %310 {strides = array<i32>} : memref<80x1024xbf16, #tpu.memory_space<vmem>>, vector<16x1024xbf16>,
    %c1023_i32_181 = arith.constant 1023 : i32
    %312 = tpu.dynamic_rotate %301 by %c1023_i32_181 dim 1 : vector<8x1024xf32>, i32 -> vector<8x1024xf32>
    %313 = tpu.concatenate %301, %312 in 0 : vector<8x1024xf32>, vector<8x1024xf32> -> vector<16x1024xf32>
    %314 = arith.truncf %313 : vector<16x1024xf32> to vector<16x1024xbf16>
    %c32_182 = arith.constant 32 : index
    %c0_183 = arith.constant 0 : index
    %315 = vector.load %arg6[%c32_182, %c0_183] : memref<80x1024xbf16, #tpu.memory_space<vmem>>, vector<16x1024xbf16>
    tpu.vector_store %arg6[%c32_182, %c0_183], %314 {strides = array<i32>} : memref<80x1024xbf16, #tpu.memory_space<vmem>>, vector<16x1024xbf16>,
    %c1005_i32_184 = arith.constant 1005 : i32
    %316 = tpu.dynamic_rotate %301 by %c1005_i32_184 dim 1 : vector<8x1024xf32>, i32 -> vector<8x1024xf32>
    %c1004_i32_185 = arith.constant 1004 : i32
    %317 = tpu.dynamic_rotate %301 by %c1004_i32_185 dim 1 : vector<8x1024xf32>, i32 -> vector<8x1024xf32>
    %318 = tpu.concatenate %316, %317 in 0 : vector<8x1024xf32>, vector<8x1024xf32> -> vector<16x1024xf32>
    %319 = arith.truncf %318 : vector<16x1024xf32> to vector<16x1024xbf16>
    %c48_186 = arith.constant 48 : index
    %c0_187 = arith.constant 0 : index
    %320 = vector.load %arg6[%c48_186, %c0_187] : memref<80x1024xbf16, #tpu.memory_space<vmem>>, vector<16x1024xbf16>
    tpu.vector_store %arg6[%c48_186, %c0_187], %319 {strides = array<i32>} : memref<80x1024xbf16, #tpu.memory_space<vmem>>, vector<16x1024xbf16>,
    %c1003_i32_188 = arith.constant 1003 : i32
    %321 = tpu.dynamic_rotate %301 by %c1003_i32_188 dim 1 : vector<8x1024xf32>, i32 -> vector<8x1024xf32>
    %322 = tpu.concatenate %321, %301 in 0 : vector<8x1024xf32>, vector<8x1024xf32> -> vector<16x1024xf32>
    %323 = arith.truncf %322 : vector<16x1024xf32> to vector<16x1024xbf16>
    %c64_189 = arith.constant 64 : index
    %c0_190 = arith.constant 0 : index
    %324 = vector.load %arg6[%c64_189, %c0_190] : memref<80x1024xbf16, #tpu.memory_space<vmem>>, vector<16x1024xbf16>
    tpu.vector_store %arg6[%c64_189, %c0_190], %323 {strides = array<i32>} : memref<80x1024xbf16, #tpu.memory_space<vmem>>, vector<16x1024xbf16>,
    %c4 = arith.constant 4 : index
    %c0_191 = arith.constant 0 : index
    %c0_192 = arith.constant 0 : index
    %325 = vector.load %arg3[%c4, %c0_191, %c0_192] : memref<6x8x1024xf32, #tpu.memory_space<vmem>>, vector<1x8x1024xf32>
    %326 = vector.shape_cast %325 : vector<1x8x1024xf32> to vector<8x1024xf32>
    %c4_193 = arith.constant 4 : index
    %c0_194 = arith.constant 0 : index
    %c0_195 = arith.constant 0 : index
    %327 = vector.load %arg2[%c4_193, %c0_194, %c0_195] : memref<6x8x80xbf16, #tpu.memory_space<vmem>>, vector<1x8x80xbf16>
    %328 = vector.shape_cast %327 : vector<1x8x80xbf16> to vector<8x80xbf16>
    %c0_196 = arith.constant 0 : index
    %c0_197 = arith.constant 0 : index
    %329 = vector.load %arg6[%c0_196, %c0_197] : memref<80x1024xbf16, #tpu.memory_space<vmem>>, vector<80x1024xbf16>
    %cst_198 = arith.constant dense<0.000000e+00> : vector<8x1024xf32>
    %330 = tpu.matmul %328, %329, %cst_198 {dimension_numbers = #tpu.dot_dimension_numbers<[1], [0], [0], [1], [0, 0, 1, 1], [], []>} : vector<8x80xbf16>, vector<80x1024xbf16>, vector<8x1024xf32> -> vector<8x1024xf32>
    %331 = arith.addf %326, %330 : vector<8x1024xf32>
    %cst_199 = arith.constant 5.000000e-01 : f32
    %332 = vector.broadcast %cst_199 : f32 to vector<8x1024xf32>
    %333 = arith.mulf %332, %331 : vector<8x1024xf32>
    %cst_200 = arith.constant 0.707106769 : f32
    %334 = vector.broadcast %cst_200 : f32 to vector<8x1024xf32>
    %335 = arith.mulf %331, %334 : vector<8x1024xf32>
    %cst_201 = arith.constant 0.000000e+00 : f32
    %336 = vector.broadcast %cst_201 : f32 to vector<8x1024xf32>
    %337 = arith.cmpf olt, %335, %336 : vector<8x1024xf32>
    %cst_202 = arith.constant -1.000000e+00 : f32
    %cst_203 = arith.constant 1.000000e+00 : f32
    %338 = vector.broadcast %cst_202 : f32 to vector<8x1024xf32>
    %339 = vector.broadcast %cst_203 : f32 to vector<8x1024xf32>
    %340 = arith.select %337, %338, %339 : vector<8x1024xi1>, vector<8x1024xf32>
    %341 = math.absf %335 : vector<8x1024xf32>
    %cst_204 = arith.constant 0.327591091 : f32
    %342 = vector.broadcast %cst_204 : f32 to vector<8x1024xf32>
    %343 = arith.mulf %342, %341 : vector<8x1024xf32>
    %cst_205 = arith.constant 1.000000e+00 : f32
    %344 = vector.broadcast %cst_205 : f32 to vector<8x1024xf32>
    %345 = arith.addf %344, %343 : vector<8x1024xf32>
    %346 = tpu.reciprocal %345 {approx = true} : vector<8x1024xf32> -> vector<8x1024xf32>
    %cst_206 = arith.constant 1.06140542 : f32
    %347 = vector.broadcast %cst_206 : f32 to vector<8x1024xf32>
    %348 = arith.mulf %347, %346 : vector<8x1024xf32>
    %cst_207 = arith.constant -1.45315206 : f32
    %349 = vector.broadcast %cst_207 : f32 to vector<8x1024xf32>
    %350 = arith.addf %348, %349 : vector<8x1024xf32>
    %351 = arith.mulf %350, %346 : vector<8x1024xf32>
    %cst_208 = arith.constant 1.42141378 : f32
    %352 = vector.broadcast %cst_208 : f32 to vector<8x1024xf32>
    %353 = arith.addf %351, %352 : vector<8x1024xf32>
    %354 = arith.mulf %353, %346 : vector<8x1024xf32>
    %cst_209 = arith.constant -0.284496725 : f32
    %355 = vector.broadcast %cst_209 : f32 to vector<8x1024xf32>
    %356 = arith.addf %354, %355 : vector<8x1024xf32>
    %357 = arith.mulf %356, %346 : vector<8x1024xf32>
    %cst_210 = arith.constant 0.254829586 : f32
    %358 = vector.broadcast %cst_210 : f32 to vector<8x1024xf32>
    %359 = arith.addf %357, %358 : vector<8x1024xf32>
    %360 = arith.mulf %359, %346 : vector<8x1024xf32>
    %cst_211 = arith.constant 0.000000e+00 : f32
    %361 = vector.broadcast %cst_211 : f32 to vector<8x1024xf32>
    %362 = arith.subf %361, %341 : vector<8x1024xf32>
    %363 = arith.mulf %362, %341 : vector<8x1024xf32>
    %364 = math.exp %363 : vector<8x1024xf32>
    %365 = arith.mulf %360, %364 : vector<8x1024xf32>
    %cst_212 = arith.constant 1.000000e+00 : f32
    %366 = vector.broadcast %cst_212 : f32 to vector<8x1024xf32>
    %367 = arith.subf %366, %365 : vector<8x1024xf32>
    %368 = arith.mulf %340, %367 : vector<8x1024xf32>
    %cst_213 = arith.constant 1.000000e+00 : f32
    %369 = vector.broadcast %cst_213 : f32 to vector<8x1024xf32>
    %370 = arith.addf %369, %368 : vector<8x1024xf32>
    %371 = arith.mulf %333, %370 : vector<8x1024xf32>
    %c0_214 = arith.constant 0 : index
    %c0_215 = arith.constant 0 : index
    %c0_216 = arith.constant 0 : index
    %372 = vector.load %arg7[%c0_214, %c0_215, %c0_216] : memref<2x8x1024xf32, #tpu.memory_space<vmem>>, vector<1x8x1024xf32>
    %373 = vector.shape_cast %372 : vector<1x8x1024xf32> to vector<8x1024xf32>
    %cst_217 = arith.constant 1.000000e-01 : f32
    %374 = vector.broadcast %cst_217 : f32 to vector<8x1024xf32>
    %375 = arith.mulf %374, %373 : vector<8x1024xf32>
    %376 = arith.addf %371, %375 : vector<8x1024xf32>
    %c21_i32_218 = arith.constant 21 : i32
    %377 = tpu.dynamic_rotate %376 by %c21_i32_218 dim 1 : vector<8x1024xf32>, i32 -> vector<8x1024xf32>
    %c20_i32_219 = arith.constant 20 : i32
    %378 = tpu.dynamic_rotate %376 by %c20_i32_219 dim 1 : vector<8x1024xf32>, i32 -> vector<8x1024xf32>
    %379 = tpu.concatenate %377, %378 in 0 : vector<8x1024xf32>, vector<8x1024xf32> -> vector<16x1024xf32>
    %380 = arith.truncf %379 : vector<16x1024xf32> to vector<16x1024xbf16>
    %c0_220 = arith.constant 0 : index
    %c0_221 = arith.constant 0 : index
    %381 = vector.load %arg6[%c0_220, %c0_221] : memref<80x1024xbf16, #tpu.memory_space<vmem>>, vector<16x1024xbf16>
    tpu.vector_store %arg6[%c0_220, %c0_221], %380 {strides = array<i32>} : memref<80x1024xbf16, #tpu.memory_space<vmem>>, vector<16x1024xbf16>,
    %c19_i32_222 = arith.constant 19 : i32
    %382 = tpu.dynamic_rotate %376 by %c19_i32_222 dim 1 : vector<8x1024xf32>, i32 -> vector<8x1024xf32>
    %c1_i32_223 = arith.constant 1 : i32
    %383 = tpu.dynamic_rotate %376 by %c1_i32_223 dim 1 : vector<8x1024xf32>, i32 -> vector<8x1024xf32>
    %384 = tpu.concatenate %382, %383 in 0 : vector<8x1024xf32>, vector<8x1024xf32> -> vector<16x1024xf32>
    %385 = arith.truncf %384 : vector<16x1024xf32> to vector<16x1024xbf16>
    %c16_224 = arith.constant 16 : index
    %c0_225 = arith.constant 0 : index
    %386 = vector.load %arg6[%c16_224, %c0_225] : memref<80x1024xbf16, #tpu.memory_space<vmem>>, vector<16x1024xbf16>
    tpu.vector_store %arg6[%c16_224, %c0_225], %385 {strides = array<i32>} : memref<80x1024xbf16, #tpu.memory_space<vmem>>, vector<16x1024xbf16>,
    %c1023_i32_226 = arith.constant 1023 : i32
    %387 = tpu.dynamic_rotate %376 by %c1023_i32_226 dim 1 : vector<8x1024xf32>, i32 -> vector<8x1024xf32>
    %388 = tpu.concatenate %376, %387 in 0 : vector<8x1024xf32>, vector<8x1024xf32> -> vector<16x1024xf32>
    %389 = arith.truncf %388 : vector<16x1024xf32> to vector<16x1024xbf16>
    %c32_227 = arith.constant 32 : index
    %c0_228 = arith.constant 0 : index
    %390 = vector.load %arg6[%c32_227, %c0_228] : memref<80x1024xbf16, #tpu.memory_space<vmem>>, vector<16x1024xbf16>
    tpu.vector_store %arg6[%c32_227, %c0_228], %389 {strides = array<i32>} : memref<80x1024xbf16, #tpu.memory_space<vmem>>, vector<16x1024xbf16>,
    %c1005_i32_229 = arith.constant 1005 : i32
    %391 = tpu.dynamic_rotate %376 by %c1005_i32_229 dim 1 : vector<8x1024xf32>, i32 -> vector<8x1024xf32>
    %c1004_i32_230 = arith.constant 1004 : i32
    %392 = tpu.dynamic_rotate %376 by %c1004_i32_230 dim 1 : vector<8x1024xf32>, i32 -> vector<8x1024xf32>
    %393 = tpu.concatenate %391, %392 in 0 : vector<8x1024xf32>, vector<8x1024xf32> -> vector<16x1024xf32>
    %394 = arith.truncf %393 : vector<16x1024xf32> to vector<16x1024xbf16>
    %c48_231 = arith.constant 48 : index
    %c0_232 = arith.constant 0 : index
    %395 = vector.load %arg6[%c48_231, %c0_232] : memref<80x1024xbf16, #tpu.memory_space<vmem>>, vector<16x1024xbf16>
    tpu.vector_store %arg6[%c48_231, %c0_232], %394 {strides = array<i32>} : memref<80x1024xbf16, #tpu.memory_space<vmem>>, vector<16x1024xbf16>,
    %c1003_i32_233 = arith.constant 1003 : i32
    %396 = tpu.dynamic_rotate %376 by %c1003_i32_233 dim 1 : vector<8x1024xf32>, i32 -> vector<8x1024xf32>
    %397 = tpu.concatenate %396, %376 in 0 : vector<8x1024xf32>, vector<8x1024xf32> -> vector<16x1024xf32>
    %398 = arith.truncf %397 : vector<16x1024xf32> to vector<16x1024xbf16>
    %c64_234 = arith.constant 64 : index
    %c0_235 = arith.constant 0 : index
    %399 = vector.load %arg6[%c64_234, %c0_235] : memref<80x1024xbf16, #tpu.memory_space<vmem>>, vector<16x1024xbf16>
    tpu.vector_store %arg6[%c64_234, %c0_235], %398 {strides = array<i32>} : memref<80x1024xbf16, #tpu.memory_space<vmem>>, vector<16x1024xbf16>,
    %c5 = arith.constant 5 : index
    %c0_236 = arith.constant 0 : index
    %c0_237 = arith.constant 0 : index
    %400 = vector.load %arg3[%c5, %c0_236, %c0_237] : memref<6x8x1024xf32, #tpu.memory_space<vmem>>, vector<1x8x1024xf32>
    %401 = vector.shape_cast %400 : vector<1x8x1024xf32> to vector<8x1024xf32>
    %c5_238 = arith.constant 5 : index
    %c0_239 = arith.constant 0 : index
    %c0_240 = arith.constant 0 : index
    %402 = vector.load %arg2[%c5_238, %c0_239, %c0_240] : memref<6x8x80xbf16, #tpu.memory_space<vmem>>, vector<1x8x80xbf16>
    %403 = vector.shape_cast %402 : vector<1x8x80xbf16> to vector<8x80xbf16>
    %c0_241 = arith.constant 0 : index
    %c0_242 = arith.constant 0 : index
    %404 = vector.load %arg6[%c0_241, %c0_242] : memref<80x1024xbf16, #tpu.memory_space<vmem>>, vector<80x1024xbf16>
    %cst_243 = arith.constant dense<0.000000e+00> : vector<8x1024xf32>
    %405 = tpu.matmul %403, %404, %cst_243 {dimension_numbers = #tpu.dot_dimension_numbers<[1], [0], [0], [1], [0, 0, 1, 1], [], []>} : vector<8x80xbf16>, vector<80x1024xbf16>, vector<8x1024xf32> -> vector<8x1024xf32>
    %406 = arith.addf %401, %405 : vector<8x1024xf32>
    %c0_244 = arith.constant 0 : index
    %c0_245 = arith.constant 0 : index
    %c0_246 = arith.constant 0 : index
    %407 = vector.load %arg5[%c0_244, %c0_245, %c0_246] : memref<1x8x1024xf32, #tpu.memory_space<vmem>>, vector<1x8x1024xf32>
    %408 = vector.shape_cast %407 : vector<1x8x1024xf32> to vector<8x1024xf32>
    %409 = vector.shape_cast %406 : vector<8x1024xf32> to vector<1x8x1024xf32>
    tpu.vector_store %arg5[%c0_244, %c0_245, %c0_246], %409 {strides = array<i32>} : memref<1x8x1024xf32, #tpu.memory_space<vmem>>, vector<1x8x1024xf32>,
    return
  }
  func.func @transform_0(%arg0: i32) -> (i32, i32, i32) {
    %c0_i32 = arith.constant 0 : i32
    %c0_i32_0 = arith.constant 0 : i32
    %c0_i32_1 = arith.constant 0 : i32
    return %arg0, %c0_i32, %c0_i32_0 : i32, i32, i32
  }
  func.func @transform_1(%arg0: i32) -> (i32, i32, i32) {
    %c0_i32 = arith.constant 0 : i32
    %c0_i32_0 = arith.constant 0 : i32
    %c0_i32_1 = arith.constant 0 : i32
    %c0_i32_2 = arith.constant 0 : i32
    return %c0_i32, %c0_i32_0, %c0_i32_1 : i32, i32, i32
  }
  func.func @transform_2(%arg0: i32) -> (i32, i32, i32) {
    %c0_i32 = arith.constant 0 : i32
    %c0_i32_0 = arith.constant 0 : i32
    %c0_i32_1 = arith.constant 0 : i32
    %c0_i32_2 = arith.constant 0 : i32
    return %c0_i32, %c0_i32_0, %c0_i32_1 : i32, i32, i32
  }
  func.func @transform_3(%arg0: i32) -> (i32, i32, i32) {
    %c0_i32 = arith.constant 0 : i32
    %c0_i32_0 = arith.constant 0 : i32
    %c0_i32_1 = arith.constant 0 : i32
    %c0_i32_2 = arith.constant 0 : i32
    return %c0_i32, %c0_i32_0, %c0_i32_1 : i32, i32, i32
  }
  func.func @transform_4(%arg0: i32) -> (i32, i32, i32) {
    %c0_i32 = arith.constant 0 : i32
    %c0_i32_0 = arith.constant 0 : i32
    %c0_i32_1 = arith.constant 0 : i32
    return %arg0, %c0_i32, %c0_i32_0 : i32, i32, i32
  }
}

</mosaic_0001>

<llo_original>
// kernel: tpu_custom_call.1
$region0: #{tpu_custom_call.1}
  #allocation0 [shape = 'u32[]', space=smem, size = 0x4, offset = 0x4, fixed_abs, tag = 'smem constant byte address 0x4 - core index']
  #allocation1 [shape = 'u32[72,128]{1,0:T(1,128)}', space=vmem, size = 0x9000, scoped, tag = 'internal scratch']
  #allocation2 [shape = 'bf16[80,1024]{1,0:T(8,128)(2,1)}', space=vmem, size = 0x28000, scoped, tag = 'scratch operand']
  #allocation3 [shape = 'f32[2,8,1024]{2,1,0:T(8,128)}', space=vmem, size = 0x10000, scoped, tag = 'scratch operand']
  %s0 = inlined_call_operand.hbm [shape: f32[1,8,1024], index: 0, kind: input, shape index: {}]
  %s1 = inlined_call_operand.hbm [shape: bf16[6,8,80], index: 1, kind: input, shape index: {}]
  %s2 = inlined_call_operand.hbm [shape: f32[6,8,1024], index: 2, kind: input, shape index: {}]
  %s3 = inlined_call_operand.hbm [shape: f32[3,8,1024], index: 3, kind: input, shape index: {}]
  %s4 = inlined_call_operand.hbm [shape: f32[1,8,1024], index: 4, kind: output, shape index: {}]
  %s5 = sld [smem:[#allocation0]]
  $region42: #{tpu_custom_call.1} parent=0
    _
  %s7 = ssub.s32 1, %s5
  %s8 = scalar_select 0, %s7, %s5
  $region1: #{tpu_custom_call.1} parent=0
    #allocation4 [shape = 'u8[32768]{0}', space=vmem, size = 0x8000, scoped, tag = 'input window, operand 0, single buffered']
    #allocation5 [shape = 's32[1]{0}', space=sflag, size = 0x4, scoped, tag = 'scoped memory for tpu_custom_call.1']
    #allocation6 [shape = 's32[1]{0}', space=sflag, size = 0x4, scoped, tag = 'scoped memory for tpu_custom_call.1']
    #allocation7 [shape = 'u8[12288]{0}', space=vmem, size = 0x3000, scoped, tag = 'input window, operand 1, single buffered']
    #allocation8 [shape = 's32[1]{0}', space=sflag, size = 0x4, scoped, tag = 'scoped memory for tpu_custom_call.1']
    #allocation9 [shape = 'u8[196608]{0}', space=vmem, size = 0x30000, scoped, tag = 'input window, operand 2, single buffered']
    #allocation10 [shape = 'u8[98304]{0}', space=vmem, size = 0x18000, scoped, tag = 'input window, operand 3, single buffered']
    #allocation11 [shape = 's32[1]{0}', space=sflag, size = 0x4, scoped, tag = 'scoped memory for tpu_custom_call.1']
    #allocation12 [shape = 'u8[32768]{0}', space=vmem, size = 0x8000, scoped, tag = 'output window, operand 0, single buffered']
    %9 = vsyncpa [#allocation5], 0
    %10 = vsyncpa [#allocation8], 0
    %11 = vsyncpa [#allocation11], 0
    %12 = vsyncpa [#allocation6], 0
    // Predicated region
    $region2: #{tpu_custom_call.1} parent=1 // pred_check
      _
    $region3: #{tpu_custom_call.1} parent=1 // pred_check_branch
      %14 = sbr.rel (0) target = $region5
    $region4: #{tpu_custom_call.1} parent=1 // pred_region
      %16 = vsyncadd [#allocation5], 0
      %s18 = sshll.u32 %s0, 4
      %s19 = int_to_ptr.hbm [resolvable:$true] %s18
      %s20 = sshll.u32 [#allocation4], 4
      %s21 = int_to_ptr.vmem [resolvable:$true] %s20
      %23 = dma.hbm_to_vmem [thread:$0]  %s19, 1024, %s21, [#allocation5]
    $region5: #{tpu_custom_call.1} parent=1 // pred_fallthru
      _
    // Predicated region
    $region6: #{tpu_custom_call.1} parent=1 // pred_check
      _
    $region7: #{tpu_custom_call.1} parent=1 // pred_check_branch
      %25 = sbr.rel (0) target = $region9
    $region8: #{tpu_custom_call.1} parent=1 // pred_region
      %27 = vsyncadd [#allocation8], 0
      %s28 = sshll.u32 %s1, 4
      %s29 = int_to_ptr.hbm [resolvable:$true] %s28
      %s30 = sshll.u32 [#allocation7], 4
      %s31 = int_to_ptr.vmem [resolvable:$true] %s30
      %36 = dma.hbm_to_vmem [thread:$0]  %s29, 384, %s31, [#allocation8], 64, 64, 4
    $region9: #{tpu_custom_call.1} parent=1 // pred_fallthru
      _
    // Predicated region
    $region10: #{tpu_custom_call.1} parent=1 // pred_check
      _
    $region11: #{tpu_custom_call.1} parent=1 // pred_check_branch
      %38 = sbr.rel (0) target = $region13
    $region12: #{tpu_custom_call.1} parent=1 // pred_region
      %40 = vsyncadd [#allocation8], 0
      %s41 = sshll.u32 %s2, 4
      %s42 = int_to_ptr.hbm [resolvable:$true] %s41
      %s43 = sshll.u32 [#allocation9], 4
      %s44 = int_to_ptr.vmem [resolvable:$true] %s43
      %49 = dma.hbm_to_vmem [thread:$0]  %s42, 6144, %s44, [#allocation8], 1024, 1024, 64
    $region13: #{tpu_custom_call.1} parent=1 // pred_fallthru
      _
    // Predicated region
    $region14: #{tpu_custom_call.1} parent=1 // pred_check
      _
    $region15: #{tpu_custom_call.1} parent=1 // pred_check_branch
      %51 = sbr.rel (0) target = $region17
    $region16: #{tpu_custom_call.1} parent=1 // pred_region
      %53 = vsyncadd [#allocation11], 0
      %s54 = sshll.u32 %s3, 4
      %s55 = int_to_ptr.hbm [resolvable:$true] %s54
      %s56 = sshll.u32 [#allocation10], 4
      %s57 = int_to_ptr.vmem [resolvable:$true] %s56
      %62 = dma.hbm_to_vmem [thread:$0]  %s55, 3072, %s57, [#allocation11], 1024, 1024, 64
    $region17: #{tpu_custom_call.1} parent=1 // pred_fallthru
      _
    // Predicated region
    $region18: #{tpu_custom_call.1} parent=1 // pred_check
      _
    $region19: #{tpu_custom_call.1} parent=1 // pred_check_branch
      %64 = sbr.rel (0) target = $region21
    $region20: #{tpu_custom_call.1} parent=1 // pred_region
      %66 = dma.done [#allocation5], 1024
    $region21: #{tpu_custom_call.1} parent=1 // pred_fallthru
      _
    // Predicated region
    $region22: #{tpu_custom_call.1} parent=1 // pred_check
      _
    $region23: #{tpu_custom_call.1} parent=1 // pred_check_branch
      %68 = sbr.rel (0) target = $region25
    $region24: #{tpu_custom_call.1} parent=1 // pred_region
      %70 = dma.done [#allocation8], 384
    $region25: #{tpu_custom_call.1} parent=1 // pred_fallthru
      _
    // Predicated region
    $region26: #{tpu_custom_call.1} parent=1 // pred_check
      _
    $region27: #{tpu_custom_call.1} parent=1 // pred_check_branch
      %72 = sbr.rel (0) target = $region29
    $region28: #{tpu_custom_call.1} parent=1 // pred_region
      %74 = dma.done [#allocation8], 6144
    $region29: #{tpu_custom_call.1} parent=1 // pred_fallthru
      _
    // Predicated region
    $region30: #{tpu_custom_call.1} parent=1 // pred_check
      _
    $region31: #{tpu_custom_call.1} parent=1 // pred_check_branch
      %76 = sbr.rel (0) target = $region33
    $region32: #{tpu_custom_call.1} parent=1 // pred_region
      %78 = dma.done [#allocation11], 3072
    $region33: #{tpu_custom_call.1} parent=1 // pred_fallthru
      _
    %v80 = vld [vmem:[#allocation4] sm:$0xff]
    %v81 = vld [vmem:[#allocation4 + $0x8] sm:$0xff]
    %v82 = vld [vmem:[#allocation4 + $0x10] sm:$0xff]
    %v83 = vld [vmem:[#allocation4 + $0x18] sm:$0xff]
    %v84 = vld [vmem:[#allocation4 + $0x20] sm:$0xff]
    %v85 = vld [vmem:[#allocation4 + $0x28] sm:$0xff]
    %v86 = vld [vmem:[#allocation4 + $0x30] sm:$0xff]
    %v87 = vld [vmem:[#allocation4 + $0x38] sm:$0xff]
    %88 = vrot.lane.b32.xlu0 %v80, 21
    %v89 = vpop.permute.xlu0 %88
    %90 = vrot.lane.b32.xlu0 %v81, 21
    %v91 = vpop.permute.xlu0 %90
    %92 = vrot.lane.b32.xlu0 %v82, 21
    %v93 = vpop.permute.xlu0 %92
    %94 = vrot.lane.b32.xlu0 %v83, 21
    %v95 = vpop.permute.xlu0 %94
    %96 = vrot.lane.b32.xlu0 %v84, 21
    %v97 = vpop.permute.xlu0 %96
    %98 = vrot.lane.b32.xlu0 %v85, 21
    %v99 = vpop.permute.xlu0 %98
    %100 = vrot.lane.b32.xlu0 %v86, 21
    %v101 = vpop.permute.xlu0 %100
    %102 = vrot.lane.b32.xlu0 %v87, 21
    %v103 = vpop.permute.xlu0 %102
    %v104 = vlaneseq
    %v105 = vand.u32 %v104, 127
    %vm106 = vcmp.lt.s32.totalorder %v105, 21
    %v107 = vsel %vm106, %v101, %v103
    %v108 = vsel %vm106, %v99, %v101
    %v109 = vsel %vm106, %v97, %v99
    %v110 = vsel %vm106, %v95, %v97
    %v111 = vsel %vm106, %v93, %v95
    %v112 = vsel %vm106, %v91, %v93
    %v113 = vsel %vm106, %v89, %v91
    %v114 = vsel %vm106, %v103, %v89
    %115 = vrot.lane.b32.xlu0 %v80, 20
    %v116 = vpop.permute.xlu0 %115
    %117 = vrot.lane.b32.xlu0 %v81, 20
    %v118 = vpop.permute.xlu0 %117
    %119 = vrot.lane.b32.xlu0 %v82, 20
    %v120 = vpop.permute.xlu0 %119
    %121 = vrot.lane.b32.xlu0 %v83, 20
    %v122 = vpop.permute.xlu0 %121
    %123 = vrot.lane.b32.xlu0 %v84, 20
    %v124 = vpop.permute.xlu0 %123
    %125 = vrot.lane.b32.xlu0 %v85, 20
    %v126 = vpop.permute.xlu0 %125
    %127 = vrot.lane.b32.xlu0 %v86, 20
    %v128 = vpop.permute.xlu0 %127
    %129 = vrot.lane.b32.xlu0 %v87, 20
    %v130 = vpop.permute.xlu0 %129
    %vm131 = vcmp.lt.s32.totalorder %v105, 20
    %v132 = vsel %vm131, %v128, %v130
    %v133 = vsel %vm131, %v126, %v128
    %v134 = vsel %vm131, %v124, %v126
    %v135 = vsel %vm131, %v122, %v124
    %v136 = vsel %vm131, %v120, %v122
    %v137 = vsel %vm131, %v118, %v120
    %v138 = vsel %vm131, %v116, %v118
    %v139 = vsel %vm131, %v130, %v116
    %v140 = vpack.c.bf16 %v113, %v114
    %v141 = vpack.c.bf16 %v111, %v112
    %v142 = vpack.c.bf16 %v109, %v110
    %v143 = vpack.c.bf16 %v107, %v108
    %v144 = vpack.c.bf16 %v138, %v139
    %v145 = vpack.c.bf16 %v136, %v137
    %v146 = vpack.c.bf16 %v134, %v135
    %v147 = vpack.c.bf16 %v132, %v133
    %148 = vst [vmem:[#allocation2] sm:$0xff] %v140
    %149 = vst [vmem:[#allocation2 + $0x8] sm:$0xff] %v141
    %150 = vst [vmem:[#allocation2 + $0x10] sm:$0xff] %v142
    %151 = vst [vmem:[#allocation2 + $0x18] sm:$0xff] %v143
    %152 = vst [vmem:[#allocation2 + $0x20] sm:$0xff] %v144
    %153 = vst [vmem:[#allocation2 + $0x28] sm:$0xff] %v145
    %154 = vst [vmem:[#allocation2 + $0x30] sm:$0xff] %v146
    %155 = vst [vmem:[#allocation2 + $0x38] sm:$0xff] %v147
    %156 = vrot.lane.b32.xlu0 %v80, 19
    %v157 = vpop.permute.xlu0 %156
    %158 = vrot.lane.b32.xlu0 %v81, 19
    %v159 = vpop.permute.xlu0 %158
    %160 = vrot.lane.b32.xlu0 %v82, 19
    %v161 = vpop.permute.xlu0 %160
    %162 = vrot.lane.b32.xlu0 %v83, 19
    %v163 = vpop.permute.xlu0 %162
    %164 = vrot.lane.b32.xlu0 %v84, 19
    %v165 = vpop.permute.xlu0 %164
    %166 = vrot.lane.b32.xlu0 %v85, 19
    %v167 = vpop.permute.xlu0 %166
    %168 = vrot.lane.b32.xlu0 %v86, 19
    %v169 = vpop.permute.xlu0 %168
    %170 = vrot.lane.b32.xlu0 %v87, 19
    %v171 = vpop.permute.xlu0 %170
    %vm172 = vcmp.lt.s32.totalorder %v105, 19
    %v173 = vsel %vm172, %v169, %v171
    %v174 = vsel %vm172, %v167, %v169
    %v175 = vsel %vm172, %v165, %v167
    %v176 = vsel %vm172, %v163, %v165
    %v177 = vsel %vm172, %v161, %v163
    %v178 = vsel %vm172, %v159, %v161
    %v179 = vsel %vm172, %v157, %v159
    %v180 = vsel %vm172, %v171, %v157
    %181 = vrot.lane.b32.xlu0 %v80, 1
    %v182 = vpop.permute.xlu0 %181
    %183 = vrot.lane.b32.xlu0 %v81, 1
    %v184 = vpop.permute.xlu0 %183
    %185 = vrot.lane.b32.xlu0 %v82, 1
    %v186 = vpop.permute.xlu0 %185
    %187 = vrot.lane.b32.xlu0 %v83, 1
    %v188 = vpop.permute.xlu0 %187
    %189 = vrot.lane.b32.xlu0 %v84, 1
    %v190 = vpop.permute.xlu0 %189
    %191 = vrot.lane.b32.xlu0 %v85, 1
    %v192 = vpop.permute.xlu0 %191
    %193 = vrot.lane.b32.xlu0 %v86, 1
    %v194 = vpop.permute.xlu0 %193
    %195 = vrot.lane.b32.xlu0 %v87, 1
    %v196 = vpop.permute.xlu0 %195
    %vm197 = vcmp.lt.s32.totalorder %v105, 1
    %v198 = vsel %vm197, %v194, %v196
    %v199 = vsel %vm197, %v192, %v194
    %v200 = vsel %vm197, %v190, %v192
    %v201 = vsel %vm197, %v188, %v190
    %v202 = vsel %vm197, %v186, %v188
    %v203 = vsel %vm197, %v184, %v186
    %v204 = vsel %vm197, %v182, %v184
    %v205 = vsel %vm197, %v196, %v182
    %v206 = vpack.c.bf16 %v179, %v180
    %v207 = vpack.c.bf16 %v177, %v178
    %v208 = vpack.c.bf16 %v175, %v176
    %v209 = vpack.c.bf16 %v173, %v174
    %v210 = vpack.c.bf16 %v204, %v205
    %v211 = vpack.c.bf16 %v202, %v203
    %v212 = vpack.c.bf16 %v200, %v201
    %v213 = vpack.c.bf16 %v198, %v199
    %214 = vst [vmem:[#allocation2 + $0x40] sm:$0xff] %v206
    %215 = vst [vmem:[#allocation2 + $0x48] sm:$0xff] %v207
    %216 = vst [vmem:[#allocation2 + $0x50] sm:$0xff] %v208
    %217 = vst [vmem:[#allocation2 + $0x58] sm:$0xff] %v209
    %218 = vst [vmem:[#allocation2 + $0x60] sm:$0xff] %v210
    %219 = vst [vmem:[#allocation2 + $0x68] sm:$0xff] %v211
    %220 = vst [vmem:[#allocation2 + $0x70] sm:$0xff] %v212
    %221 = vst [vmem:[#allocation2 + $0x78] sm:$0xff] %v213
    %222 = vrot.lane.b32.xlu0 %v80, 127
    %v223 = vpop.permute.xlu0 %222
    %224 = vrot.lane.b32.xlu0 %v81, 127
    %v225 = vpop.permute.xlu0 %224
    %226 = vrot.lane.b32.xlu0 %v82, 127
    %v227 = vpop.permute.xlu0 %226
    %228 = vrot.lane.b32.xlu0 %v83, 127
    %v229 = vpop.permute.xlu0 %228
    %230 = vrot.lane.b32.xlu0 %v84, 127
    %v231 = vpop.permute.xlu0 %230
    %232 = vrot.lane.b32.xlu0 %v85, 127
    %v233 = vpop.permute.xlu0 %232
    %234 = vrot.lane.b32.xlu0 %v86, 127
    %v235 = vpop.permute.xlu0 %234
    %236 = vrot.lane.b32.xlu0 %v87, 127
    %v237 = vpop.permute.xlu0 %236
    %vm238 = vcmp.lt.s32.totalorder %v105, 127
    %v239 = vsel %vm238, %v235, %v237
    %v240 = vsel %vm238, %v233, %v235
    %v241 = vsel %vm238, %v231, %v233
    %v242 = vsel %vm238, %v229, %v231
    %v243 = vsel %vm238, %v227, %v229
    %v244 = vsel %vm238, %v225, %v227
    %v245 = vsel %vm238, %v223, %v225
    %v246 = vsel %vm238, %v237, %v223
    %v247 = vpack.c.bf16 %v81, %v80
    %v248 = vpack.c.bf16 %v83, %v82
    %v249 = vpack.c.bf16 %v85, %v84
    %v250 = vpack.c.bf16 %v87, %v86
    %v251 = vpack.c.bf16 %v244, %v245
    %v252 = vpack.c.bf16 %v242, %v243
    %v253 = vpack.c.bf16 %v240, %v241
    %v254 = vpack.c.bf16 %v246, %v239
    %255 = vst [vmem:[#allocation2 + $0x80] sm:$0xff] %v247
    %256 = vst [vmem:[#allocation2 + $0x88] sm:$0xff] %v248
    %257 = vst [vmem:[#allocation2 + $0x90] sm:$0xff] %v249
    %258 = vst [vmem:[#allocation2 + $0x98] sm:$0xff] %v250
    %259 = vst [vmem:[#allocation2 + $0xa0] sm:$0xff] %v251
    %260 = vst [vmem:[#allocation2 + $0xa8] sm:$0xff] %v252
    %261 = vst [vmem:[#allocation2 + $0xb0] sm:$0xff] %v253
    %262 = vst [vmem:[#allocation2 + $0xb8] sm:$0xff] %v254
    %263 = vrot.lane.b32.xlu0 %v80, 109
    %v264 = vpop.permute.xlu0 %263
    %265 = vrot.lane.b32.xlu0 %v81, 109
    %v266 = vpop.permute.xlu0 %265
    %267 = vrot.lane.b32.xlu0 %v82, 109
    %v268 = vpop.permute.xlu0 %267
    %269 = vrot.lane.b32.xlu0 %v83, 109
    %v270 = vpop.permute.xlu0 %269
    %271 = vrot.lane.b32.xlu0 %v84, 109
    %v272 = vpop.permute.xlu0 %271
    %273 = vrot.lane.b32.xlu0 %v85, 109
    %v274 = vpop.permute.xlu0 %273
    %275 = vrot.lane.b32.xlu0 %v86, 109
    %v276 = vpop.permute.xlu0 %275
    %277 = vrot.lane.b32.xlu0 %v87, 109
    %v278 = vpop.permute.xlu0 %277
    %vm279 = vcmp.lt.s32.totalorder %v105, 109
    %v280 = vsel %vm279, %v276, %v278
    %v281 = vsel %vm279, %v274, %v276
    %v282 = vsel %vm279, %v272, %v274
    %v283 = vsel %vm279, %v270, %v272
    %v284 = vsel %vm279, %v268, %v270
    %v285 = vsel %vm279, %v266, %v268
    %v286 = vsel %vm279, %v264, %v266
    %v287 = vsel %vm279, %v278, %v264
    %288 = vrot.lane.b32.xlu0 %v80, 108
    %v289 = vpop.permute.xlu0 %288
    %290 = vrot.lane.b32.xlu0 %v81, 108
    %v291 = vpop.permute.xlu0 %290
    %292 = vrot.lane.b32.xlu0 %v82, 108
    %v293 = vpop.permute.xlu0 %292
    %294 = vrot.lane.b32.xlu0 %v83, 108
    %v295 = vpop.permute.xlu0 %294
    %296 = vrot.lane.b32.xlu0 %v84, 108
    %v297 = vpop.permute.xlu0 %296
    %298 = vrot.lane.b32.xlu0 %v85, 108
    %v299 = vpop.permute.xlu0 %298
    %300 = vrot.lane.b32.xlu0 %v86, 108
    %v301 = vpop.permute.xlu0 %300
    %302 = vrot.lane.b32.xlu0 %v87, 108
    %v303 = vpop.permute.xlu0 %302
    %vm304 = vcmp.lt.s32.totalorder %v105, 108
    %v305 = vsel %vm304, %v301, %v303
    %v306 = vsel %vm304, %v299, %v301
    %v307 = vsel %vm304, %v297, %v299
    %v308 = vsel %vm304, %v295, %v297
    %v309 = vsel %vm304, %v293, %v295
    %v310 = vsel %vm304, %v291, %v293
    %v311 = vsel %vm304, %v289, %v291
    %v312 = vsel %vm304, %v303, %v289
    %v313 = vpack.c.bf16 %v285, %v286
    %v314 = vpack.c.bf16 %v283, %v284
    %v315 = vpack.c.bf16 %v281, %v282
    %v316 = vpack.c.bf16 %v287, %v280
    %v317 = vpack.c.bf16 %v310, %v311
    %v318 = vpack.c.bf16 %v308, %v309
    %v319 = vpack.c.bf16 %v306, %v307
    %v320 = vpack.c.bf16 %v312, %v305
    %321 = vst [vmem:[#allocation2 + $0xc0] sm:$0xff] %v313
    %322 = vst [vmem:[#allocation2 + $0xc8] sm:$0xff] %v314
    %323 = vst [vmem:[#allocation2 + $0xd0] sm:$0xff] %v315
    %324 = vst [vmem:[#allocation2 + $0xd8] sm:$0xff] %v316
    %325 = vst [vmem:[#allocation2 + $0xe0] sm:$0xff] %v317
    %326 = vst [vmem:[#allocation2 + $0xe8] sm:$0xff] %v318
    %327 = vst [vmem:[#allocation2 + $0xf0] sm:$0xff] %v319
    %328 = vst [vmem:[#allocation2 + $0xf8] sm:$0xff] %v320
    %329 = vrot.lane.b32.xlu0 %v80, 107
    %v330 = vpop.permute.xlu0 %329
    %331 = vrot.lane.b32.xlu0 %v81, 107
    %v332 = vpop.permute.xlu0 %331
    %333 = vrot.lane.b32.xlu0 %v82, 107
    %v334 = vpop.permute.xlu0 %333
    %335 = vrot.lane.b32.xlu0 %v83, 107
    %v336 = vpop.permute.xlu0 %335
    %337 = vrot.lane.b32.xlu0 %v84, 107
    %v338 = vpop.permute.xlu0 %337
    %339 = vrot.lane.b32.xlu0 %v85, 107
    %v340 = vpop.permute.xlu0 %339
    %341 = vrot.lane.b32.xlu0 %v86, 107
    %v342 = vpop.permute.xlu0 %341
    %343 = vrot.lane.b32.xlu0 %v87, 107
    %v344 = vpop.permute.xlu0 %343
    %vm345 = vcmp.lt.s32.totalorder %v105, 107
    %v346 = vsel %vm345, %v342, %v344
    %v347 = vsel %vm345, %v340, %v342
    %v348 = vsel %vm345, %v338, %v340
    %v349 = vsel %vm345, %v336, %v338
    %v350 = vsel %vm345, %v334, %v336
    %v351 = vsel %vm345, %v332, %v334
    %v352 = vsel %vm345, %v330, %v332
    %v353 = vsel %vm345, %v344, %v330
    %v354 = vpack.c.bf16 %v351, %v352
    %v355 = vpack.c.bf16 %v349, %v350
    %v356 = vpack.c.bf16 %v347, %v348
    %v357 = vpack.c.bf16 %v353, %v346
    %358 = vst [vmem:[#allocation2 + $0x100] sm:$0xff] %v354
    %359 = vst [vmem:[#allocation2 + $0x108] sm:$0xff] %v355
    %360 = vst [vmem:[#allocation2 + $0x110] sm:$0xff] %v356
    %361 = vst [vmem:[#allocation2 + $0x118] sm:$0xff] %v357
    %362 = vst [vmem:[#allocation2 + $0x120] sm:$0xff] %v247
    %363 = vst [vmem:[#allocation2 + $0x128] sm:$0xff] %v248
    %364 = vst [vmem:[#allocation2 + $0x130] sm:$0xff] %v249
    %365 = vst [vmem:[#allocation2 + $0x138] sm:$0xff] %v250
    %v366 = vld [vmem:[#allocation9] sm:$0xff]
    %v367 = vld [vmem:[#allocation9 + $0x8] sm:$0xff]
    %v368 = vld [vmem:[#allocation9 + $0x10] sm:$0xff]
    %v369 = vld [vmem:[#allocation9 + $0x18] sm:$0xff]
    %v370 = vld [vmem:[#allocation9 + $0x20] sm:$0xff]
    %v371 = vld [vmem:[#allocation9 + $0x28] sm:$0xff]
    %v372 = vld [vmem:[#allocation9 + $0x30] sm:$0xff]
    %v373 = vld [vmem:[#allocation9 + $0x38] sm:$0xff]
    %v374 = vld [vmem:[#allocation7] sm:$0xf]
    %v375 = vld [vmem:[#allocation2] sm:$0xff]
    %v376 = vld [vmem:[#allocation2 + $0x8] sm:$0xff]
    %v377 = vld [vmem:[#allocation2 + $0x10] sm:$0xff]
    %v378 = vld [vmem:[#allocation2 + $0x18] sm:$0xff]
    %v379 = vld [vmem:[#allocation2 + $0x20] sm:$0xff]
    %v380 = vld [vmem:[#allocation2 + $0x28] sm:$0xff]
    %v381 = vld [vmem:[#allocation2 + $0x30] sm:$0xff]
    %v382 = vld [vmem:[#allocation2 + $0x38] sm:$0xff]
    %v383 = vld [vmem:[#allocation2 + $0x40] sm:$0xff]
    %v384 = vld [vmem:[#allocation2 + $0x48] sm:$0xff]
    %v385 = vld [vmem:[#allocation2 + $0x50] sm:$0xff]
    %v386 = vld [vmem:[#allocation2 + $0x58] sm:$0xff]
    %v387 = vld [vmem:[#allocation2 + $0x60] sm:$0xff]
    %v388 = vld [vmem:[#allocation2 + $0x68] sm:$0xff]
    %v389 = vld [vmem:[#allocation2 + $0x70] sm:$0xff]
    %v390 = vld [vmem:[#allocation2 + $0x78] sm:$0xff]
    %v391 = vld [vmem:[#allocation2 + $0x80] sm:$0xff]
    %v392 = vld [vmem:[#allocation2 + $0x88] sm:$0xff]
    %v393 = vld [vmem:[#allocation2 + $0x90] sm:$0xff]
    %v394 = vld [vmem:[#allocation2 + $0x98] sm:$0xff]
    %v395 = vld [vmem:[#allocation2 + $0xa0] sm:$0xff]
    %v396 = vld [vmem:[#allocation2 + $0xa8] sm:$0xff]
    %v397 = vld [vmem:[#allocation2 + $0xb0] sm:$0xff]
    %v398 = vld [vmem:[#allocation2 + $0xb8] sm:$0xff]
    %v399 = vld [vmem:[#allocation2 + $0xc0] sm:$0xff]
    %v400 = vld [vmem:[#allocation2 + $0xc8] sm:$0xff]
    %v401 = vld [vmem:[#allocation2 + $0xd0] sm:$0xff]
    %v402 = vld [vmem:[#allocation2 + $0xd8] sm:$0xff]
    %v403 = vld [vmem:[#allocation2 + $0xe0] sm:$0xff]
    %v404 = vld [vmem:[#allocation2 + $0xe8] sm:$0xff]
    %v405 = vld [vmem:[#allocation2 + $0xf0] sm:$0xff]
    %v406 = vld [vmem:[#allocation2 + $0xf8] sm:$0xff]
    %v407 = vld [vmem:[#allocation2 + $0x100] sm:$0xff]
    %v408 = vld [vmem:[#allocation2 + $0x108] sm:$0xff]
    %v409 = vld [vmem:[#allocation2 + $0x110] sm:$0xff]
    %v410 = vld [vmem:[#allocation2 + $0x118] sm:$0xff]
    %v411 = vld [vmem:[#allocation2 + $0x120] sm:$0xff]
    %v412 = vld [vmem:[#allocation2 + $0x128] sm:$0xff]
    %v413 = vld [vmem:[#allocation2 + $0x130] sm:$0xff]
    %v414 = vld [vmem:[#allocation2 + $0x138] sm:$0xff]
    %v455 = vunpack.c.l.b16 %v375
    %v456 = vunpack.c.h.b16 %v375
    %v457 = vunpack.c.l.b16 %v376
    %v458 = vunpack.c.h.b16 %v376
    %v459 = vunpack.c.l.b16 %v377
    %v460 = vunpack.c.h.b16 %v377
    %v461 = vunpack.c.l.b16 %v378
    %v462 = vunpack.c.h.b16 %v378
    %v463 = vunpack.c.l.b16 %v379
    %v464 = vunpack.c.h.b16 %v379
    %v465 = vunpack.c.l.b16 %v380
    %v466 = vunpack.c.h.b16 %v380
    %v467 = vunpack.c.l.b16 %v381
    %v468 = vunpack.c.h.b16 %v381
    %v469 = vunpack.c.l.b16 %v382
    %v470 = vunpack.c.h.b16 %v382
    %v471 = vunpack.c.l.b16 %v383
    %v472 = vunpack.c.h.b16 %v383
    %v473 = vunpack.c.l.b16 %v384
    %v474 = vunpack.c.h.b16 %v384
    %v475 = vunpack.c.l.b16 %v385
    %v476 = vunpack.c.h.b16 %v385
    %v477 = vunpack.c.l.b16 %v386
    %v478 = vunpack.c.h.b16 %v386
    %v479 = vunpack.c.l.b16 %v387
    %v480 = vunpack.c.h.b16 %v387
    %v481 = vunpack.c.l.b16 %v388
    %v482 = vunpack.c.h.b16 %v388
    %v483 = vunpack.c.l.b16 %v389
    %v484 = vunpack.c.h.b16 %v389
    %v485 = vunpack.c.l.b16 %v390
    %v486 = vunpack.c.h.b16 %v390
    %v487 = vunpack.c.l.b16 %v391
    %v488 = vunpack.c.h.b16 %v391
    %v489 = vunpack.c.l.b16 %v392
    %v490 = vunpack.c.h.b16 %v392
    %v491 = vunpack.c.l.b16 %v393
    %v492 = vunpack.c.h.b16 %v393
    %v493 = vunpack.c.l.b16 %v394
    %v494 = vunpack.c.h.b16 %v394
    %v495 = vunpack.c.l.b16 %v395
    %v496 = vunpack.c.h.b16 %v395
    %v497 = vunpack.c.l.b16 %v396
    %v498 = vunpack.c.h.b16 %v396
    %v499 = vunpack.c.l.b16 %v397
    %v500 = vunpack.c.h.b16 %v397
    %v501 = vunpack.c.l.b16 %v398
    %v502 = vunpack.c.h.b16 %v398
    %v503 = vunpack.c.l.b16 %v399
    %v504 = vunpack.c.h.b16 %v399
    %v505 = vunpack.c.l.b16 %v400
    %v506 = vunpack.c.h.b16 %v400
    %v507 = vunpack.c.l.b16 %v401
    %v508 = vunpack.c.h.b16 %v401
    %v509 = vunpack.c.l.b16 %v402
    %v510 = vunpack.c.h.b16 %v402
    %v511 = vunpack.c.l.b16 %v403
    %v512 = vunpack.c.h.b16 %v403
    %v513 = vunpack.c.l.b16 %v404
    %v514 = vunpack.c.h.b16 %v404
    %v515 = vunpack.c.l.b16 %v405
    %v516 = vunpack.c.h.b16 %v405
    %v517 = vunpack.c.l.b16 %v406
    %v518 = vunpack.c.h.b16 %v406
    %v519 = vunpack.c.l.b16 %v407
    %v520 = vunpack.c.h.b16 %v407
    %v521 = vunpack.c.l.b16 %v408
    %v522 = vunpack.c.h.b16 %v408
    %v523 = vunpack.c.l.b16 %v409
    %v524 = vunpack.c.h.b16 %v409
    %v525 = vunpack.c.l.b16 %v410
    %v526 = vunpack.c.h.b16 %v410
    %v527 = vunpack.c.l.b16 %v411
    %v528 = vunpack.c.h.b16 %v411
    %v529 = vunpack.c.l.b16 %v412
    %v530 = vunpack.c.h.b16 %v412
    %v531 = vunpack.c.l.b16 %v413
    %v532 = vunpack.c.h.b16 %v413
    %v533 = vunpack.c.l.b16 %v414
    %v534 = vunpack.c.h.b16 %v414
    %v535 = vpack.c.b16 %v463, %v455
    %v536 = vpack.c.b16 %v464, %v456
    %v537 = vpack.c.b16 %v465, %v457
    %v538 = vpack.c.b16 %v466, %v458
    %v539 = vpack.c.b16 %v467, %v459
    %v540 = vpack.c.b16 %v468, %v460
    %v541 = vpack.c.b16 %v469, %v461
    %v542 = vpack.c.b16 %v470, %v462
    %v543 = vpack.c.b16 %v479, %v471
    %v544 = vpack.c.b16 %v480, %v472
    %v545 = vpack.c.b16 %v481, %v473
    %v546 = vpack.c.b16 %v482, %v474
    %v547 = vpack.c.b16 %v483, %v475
    %v548 = vpack.c.b16 %v484, %v476
    %v549 = vpack.c.b16 %v485, %v477
    %v550 = vpack.c.b16 %v486, %v478
    %v551 = vpack.c.b16 %v495, %v487
    %v552 = vpack.c.b16 %v496, %v488
    %v553 = vpack.c.b16 %v497, %v489
    %v554 = vpack.c.b16 %v498, %v490
    %v555 = vpack.c.b16 %v499, %v491
    %v556 = vpack.c.b16 %v500, %v492
    %v557 = vpack.c.b16 %v501, %v493
    %v558 = vpack.c.b16 %v502, %v494
    %v559 = vpack.c.b16 %v511, %v503
    %v560 = vpack.c.b16 %v512, %v504
    %v561 = vpack.c.b16 %v513, %v505
    %v562 = vpack.c.b16 %v514, %v506
    %v563 = vpack.c.b16 %v515, %v507
    %v564 = vpack.c.b16 %v516, %v508
    %v565 = vpack.c.b16 %v517, %v509
    %v566 = vpack.c.b16 %v518, %v510
    %v567 = vpack.c.b16 %v527, %v519
    %v568 = vpack.c.b16 %v528, %v520
    %v569 = vpack.c.b16 %v529, %v521
    %v570 = vpack.c.b16 %v530, %v522
    %v571 = vpack.c.b16 %v531, %v523
    %v572 = vpack.c.b16 %v532, %v524
    %v573 = vpack.c.b16 %v533, %v525
    %v574 = vpack.c.b16 %v534, %v526
    %vm615 = vcmask 654336
    %v617 = vsel %vm615, %v374, 0
    %619 = vmatpush.bf16.msra.mxu0 0
    %620 = vmatpush.bf16.msra.mxu0 0
    %621 = vmatpush.bf16.msra.mxu0 0
    %622 = vmatpush.bf16.msra.mxu0 %v567
    %623 = vmatpush.bf16.msra.mxu0 %v559
    %624 = vmatpush.bf16.msra.mxu0 %v551
    %625 = vmatpush.bf16.msra.mxu0 %v543
    %626 = vmatpush.bf16.msra.mxu0 %v535
    %627 = vmatmul.bf16.gmra.mxu0 %v617
    %v628 = vpop.f32.mrf.mxu0
    %v629 = vadd.f32 0.0, %v628
    %v630 = vpop.f32.mrf.mxu0
    %631 = vdwg.mxu0
    %632 = vmatpush.bf16.msra.mxu0 0
    %633 = vmatpush.bf16.msra.mxu0 0
    %634 = vmatpush.bf16.msra.mxu0 0
    %635 = vmatpush.bf16.msra.mxu0 %v568
    %636 = vmatpush.bf16.msra.mxu0 %v560
    %637 = vmatpush.bf16.msra.mxu0 %v552
    %638 = vmatpush.bf16.msra.mxu0 %v544
    %639 = vmatpush.bf16.msra.mxu0 %v536
    %640 = vmatmul.bf16.gmra.mxu0 %v617
    %v641 = vpop.f32.mrf.mxu0
    %v642 = vadd.f32 0.0, %v641
    %v643 = vpop.f32.mrf.mxu0
    %644 = vdwg.mxu0
    %645 = vmatpush.bf16.msra.mxu0 0
    %646 = vmatpush.bf16.msra.mxu0 0
    %647 = vmatpush.bf16.msra.mxu0 0
    %648 = vmatpush.bf16.msra.mxu0 %v569
    %649 = vmatpush.bf16.msra.mxu0 %v561
    %650 = vmatpush.bf16.msra.mxu0 %v553
    %651 = vmatpush.bf16.msra.mxu0 %v545
    %652 = vmatpush.bf16.msra.mxu0 %v537
    %653 = vmatmul.bf16.gmra.mxu0 %v617
    %v654 = vpop.f32.mrf.mxu0
    %v655 = vadd.f32 0.0, %v654
    %v656 = vpop.f32.mrf.mxu0
    %657 = vdwg.mxu0
    %658 = vmatpush.bf16.msra.mxu0 0
    %659 = vmatpush.bf16.msra.mxu0 0
    %660 = vmatpush.bf16.msra.mxu0 0
    %661 = vmatpush.bf16.msra.mxu0 %v570
    %662 = vmatpush.bf16.msra.mxu0 %v562
    %663 = vmatpush.bf16.msra.mxu0 %v554
    %664 = vmatpush.bf16.msra.mxu0 %v546
    %665 = vmatpush.bf16.msra.mxu0 %v538
    %666 = vmatmul.bf16.gmra.mxu0 %v617
    %v667 = vpop.f32.mrf.mxu0
    %v668 = vadd.f32 0.0, %v667
    %v669 = vpop.f32.mrf.mxu0
    %670 = vdwg.mxu0
    %671 = vmatpush.bf16.msra.mxu0 0
    %672 = vmatpush.bf16.msra.mxu0 0
    %673 = vmatpush.bf16.msra.mxu0 0
    %674 = vmatpush.bf16.msra.mxu0 %v571
    %675 = vmatpush.bf16.msra.mxu0 %v563
    %676 = vmatpush.bf16.msra.mxu0 %v555
    %677 = vmatpush.bf16.msra.mxu0 %v547
    %678 = vmatpush.bf16.msra.mxu0 %v539
    %679 = vmatmul.bf16.gmra.mxu0 %v617
    %v680 = vpop.f32.mrf.mxu0
    %v681 = vadd.f32 0.0, %v680
    %v682 = vpop.f32.mrf.mxu0
    %683 = vdwg.mxu0
    %684 = vmatpush.bf16.msra.mxu0 0
    %685 = vmatpush.bf16.msra.mxu0 0
    %686 = vmatpush.bf16.msra.mxu0 0
    %687 = vmatpush.bf16.msra.mxu0 %v572
    %688 = vmatpush.bf16.msra.mxu0 %v564
    %689 = vmatpush.bf16.msra.mxu0 %v556
    %690 = vmatpush.bf16.msra.mxu0 %v548
    %691 = vmatpush.bf16.msra.mxu0 %v540
    %692 = vmatmul.bf16.gmra.mxu0 %v617
    %v693 = vpop.f32.mrf.mxu0
    %v694 = vadd.f32 0.0, %v693
    %v695 = vpop.f32.mrf.mxu0
    %696 = vdwg.mxu0
    %697 = vmatpush.bf16.msra.mxu0 0
    %698 = vmatpush.bf16.msra.mxu0 0
    %699 = vmatpush.bf16.msra.mxu0 0
    %700 = vmatpush.bf16.msra.mxu0 %v573
    %701 = vmatpush.bf16.msra.mxu0 %v565
    %702 = vmatpush.bf16.msra.mxu0 %v557
    %703 = vmatpush.bf16.msra.mxu0 %v549
    %704 = vmatpush.bf16.msra.mxu0 %v541
    %705 = vmatmul.bf16.gmra.mxu0 %v617
    %v706 = vpop.f32.mrf.mxu0
    %v707 = vadd.f32 0.0, %v706
    %v708 = vpop.f32.mrf.mxu0
    %709 = vdwg.mxu0
    %710 = vmatpush.bf16.msra.mxu0 0
    %711 = vmatpush.bf16.msra.mxu0 0
    %712 = vmatpush.bf16.msra.mxu0 0
    %713 = vmatpush.bf16.msra.mxu0 %v574
    %714 = vmatpush.bf16.msra.mxu0 %v566
    %715 = vmatpush.bf16.msra.mxu0 %v558
    %716 = vmatpush.bf16.msra.mxu0 %v550
    %717 = vmatpush.bf16.msra.mxu0 %v542
    %718 = vmatmul.bf16.gmra.mxu0 %v617
    %v719 = vpop.f32.mrf.mxu0
    %v720 = vadd.f32 0.0, %v719
    %v721 = vpop.f32.mrf.mxu0
    %722 = vdwg.mxu0
    %v723 = vadd.f32 %v366, %v629
    %v724 = vadd.f32 %v367, %v642
    %v725 = vadd.f32 %v368, %v655
    %v726 = vadd.f32 %v369, %v668
    %v727 = vadd.f32 %v370, %v681
    %v728 = vadd.f32 %v371, %v694
    %v729 = vadd.f32 %v372, %v707
    %v730 = vadd.f32 %v373, %v720
    %v731 = vmul.f32 %v723, 0.5
    %v732 = vmul.f32 %v724, 0.5
    %v733 = vmul.f32 %v725, 0.5
    %v734 = vmul.f32 %v726, 0.5
    %v735 = vmul.f32 %v727, 0.5
    %v736 = vmul.f32 %v728, 0.5
    %v737 = vmul.f32 %v729, 0.5
    %v738 = vmul.f32 %v730, 0.5
    %v739 = vmul.f32 %v723, 0.70710677
    %v740 = vmul.f32 %v724, 0.70710677
    %v741 = vmul.f32 %v725, 0.70710677
    %v742 = vmul.f32 %v726, 0.70710677
    %v743 = vmul.f32 %v727, 0.70710677
    %v744 = vmul.f32 %v728, 0.70710677
    %v745 = vmul.f32 %v729, 0.70710677
    %v746 = vmul.f32 %v730, 0.70710677
    %vm747 = vcmp.lt.f32.partialorder %v739, 0.0
    %vm748 = vcmp.lt.f32.partialorder %v740, 0.0
    %vm749 = vcmp.lt.f32.partialorder %v741, 0.0
    %vm750 = vcmp.lt.f32.partialorder %v742, 0.0
    %vm751 = vcmp.lt.f32.partialorder %v743, 0.0
    %vm752 = vcmp.lt.f32.partialorder %v744, 0.0
    %vm753 = vcmp.lt.f32.partialorder %v745, 0.0
    %vm754 = vcmp.lt.f32.partialorder %v746, 0.0
    %v755 = vsel %vm747, -1.0, 1.0
    %v756 = vsel %vm748, -1.0, 1.0
    %v757 = vsel %vm749, -1.0, 1.0
    %v758 = vsel %vm750, -1.0, 1.0
    %v759 = vsel %vm751, -1.0, 1.0
    %v760 = vsel %vm752, -1.0, 1.0
    %v761 = vsel %vm753, -1.0, 1.0
    %v762 = vsel %vm754, -1.0, 1.0
    %v763 = vand.u32 2147483647, %v739
    %v764 = vand.u32 2147483647, %v740
    %v765 = vand.u32 2147483647, %v741
    %v766 = vand.u32 2147483647, %v742
    %v767 = vand.u32 2147483647, %v743
    %v768 = vand.u32 2147483647, %v744
    %v769 = vand.u32 2147483647, %v745
    %v770 = vand.u32 2147483647, %v746
    %v771 = vmul.f32 %v763, 0.3275911
    %v772 = vmul.f32 %v764, 0.3275911
    %v773 = vmul.f32 %v765, 0.3275911
    %v774 = vmul.f32 %v766, 0.3275911
    %v775 = vmul.f32 %v767, 0.3275911
    %v776 = vmul.f32 %v768, 0.3275911
    %v777 = vmul.f32 %v769, 0.3275911
    %v778 = vmul.f32 %v770, 0.3275911
    %v779 = vadd.f32 %v771, 1.0
    %v780 = vadd.f32 %v772, 1.0
    %v781 = vadd.f32 %v773, 1.0
    %v782 = vadd.f32 %v774, 1.0
    %v783 = vadd.f32 %v775, 1.0
    %v784 = vadd.f32 %v776, 1.0
    %v785 = vadd.f32 %v777, 1.0
    %v786 = vadd.f32 %v778, 1.0
    %v787 = vrcp.pop %v779
    %v788 = vrcp.pop %v780
    %v789 = vrcp.pop %v781
    %v790 = vrcp.pop %v782
    %v791 = vrcp.pop %v783
    %v792 = vrcp.pop %v784
    %v793 = vrcp.pop %v785
    %v794 = vrcp.pop %v786
    %v795 = vmul.f32 %v787, 1.0614054
    %v796 = vmul.f32 %v788, 1.0614054
    %v797 = vmul.f32 %v789, 1.0614054
    %v798 = vmul.f32 %v790, 1.0614054
    %v799 = vmul.f32 %v791, 1.0614054
    %v800 = vmul.f32 %v792, 1.0614054
    %v801 = vmul.f32 %v793, 1.0614054
    %v802 = vmul.f32 %v794, 1.0614054
    %v803 = vadd.f32 %v795, -1.4531521
    %v804 = vadd.f32 %v796, -1.4531521
    %v805 = vadd.f32 %v797, -1.4531521
    %v806 = vadd.f32 %v798, -1.4531521
    %v807 = vadd.f32 %v799, -1.4531521
    %v808 = vadd.f32 %v800, -1.4531521
    %v809 = vadd.f32 %v801, -1.4531521
    %v810 = vadd.f32 %v802, -1.4531521
    %v811 = vmul.f32 %v803, %v787
    %v812 = vmul.f32 %v804, %v788
    %v813 = vmul.f32 %v805, %v789
    %v814 = vmul.f32 %v806, %v790
    %v815 = vmul.f32 %v807, %v791
    %v816 = vmul.f32 %v808, %v792
    %v817 = vmul.f32 %v809, %v793
    %v818 = vmul.f32 %v810, %v794
    %v819 = vadd.f32 %v811, 1.4214138
    %v820 = vadd.f32 %v812, 1.4214138
    %v821 = vadd.f32 %v813, 1.4214138
    %v822 = vadd.f32 %v814, 1.4214138
    %v823 = vadd.f32 %v815, 1.4214138
    %v824 = vadd.f32 %v816, 1.4214138
    %v825 = vadd.f32 %v817, 1.4214138
    %v826 = vadd.f32 %v818, 1.4214138
    %v827 = vmul.f32 %v819, %v787
    %v828 = vmul.f32 %v820, %v788
    %v829 = vmul.f32 %v821, %v789
    %v830 = vmul.f32 %v822, %v790
    %v831 = vmul.f32 %v823, %v791
    %v832 = vmul.f32 %v824, %v792
    %v833 = vmul.f32 %v825, %v793
    %v834 = vmul.f32 %v826, %v794
    %v835 = vadd.f32 %v827, -0.28449672
    %v836 = vadd.f32 %v828, -0.28449672
    %v837 = vadd.f32 %v829, -0.28449672
    %v838 = vadd.f32 %v830, -0.28449672
    %v839 = vadd.f32 %v831, -0.28449672
    %v840 = vadd.f32 %v832, -0.28449672
    %v841 = vadd.f32 %v833, -0.28449672
    %v842 = vadd.f32 %v834, -0.28449672
    %v843 = vmul.f32 %v835, %v787
    %v844 = vmul.f32 %v836, %v788
    %v845 = vmul.f32 %v837, %v789
    %v846 = vmul.f32 %v838, %v790
    %v847 = vmul.f32 %v839, %v791
    %v848 = vmul.f32 %v840, %v792
    %v849 = vmul.f32 %v841, %v793
    %v850 = vmul.f32 %v842, %v794
    %v851 = vadd.f32 %v843, 0.2548296
    %v852 = vadd.f32 %v844, 0.2548296
    %v853 = vadd.f32 %v845, 0.2548296
    %v854 = vadd.f32 %v846, 0.2548296
    %v855 = vadd.f32 %v847, 0.2548296
    %v856 = vadd.f32 %v848, 0.2548296
    %v857 = vadd.f32 %v849, 0.2548296
    %v858 = vadd.f32 %v850, 0.2548296
    %v859 = vmul.f32 %v851, %v787
    %v860 = vmul.f32 %v852, %v788
    %v861 = vmul.f32 %v853, %v789
    %v862 = vmul.f32 %v854, %v790
    %v863 = vmul.f32 %v855, %v791
    %v864 = vmul.f32 %v856, %v792
    %v865 = vmul.f32 %v857, %v793
    %v866 = vmul.f32 %v858, %v794
    %v867 = vsub.f32 0.0, %v763
    %v868 = vsub.f32 0.0, %v764
    %v869 = vsub.f32 0.0, %v765
    %v870 = vsub.f32 0.0, %v766
    %v871 = vsub.f32 0.0, %v767
    %v872 = vsub.f32 0.0, %v768
    %v873 = vsub.f32 0.0, %v769
    %v874 = vsub.f32 0.0, %v770
    %v875 = vmul.f32 %v867, %v763
    %v876 = vmul.f32 %v868, %v764
    %v877 = vmul.f32 %v869, %v765
    %v878 = vmul.f32 %v870, %v766
    %v879 = vmul.f32 %v871, %v767
    %v880 = vmul.f32 %v872, %v768
    %v881 = vmul.f32 %v873, %v769
    %v882 = vmul.f32 %v874, %v770
    %v883 = vmul.f32 %v875, 1.442695
    %v884 = vpow.pop %v883
    %v885 = vmul.f32 %v876, 1.442695
    %v886 = vpow.pop %v885
    %v887 = vmul.f32 %v877, 1.442695
    %v888 = vpow.pop %v887
    %v889 = vmul.f32 %v878, 1.442695
    %v890 = vpow.pop %v889
    %v891 = vmul.f32 %v879, 1.442695
    %v892 = vpow.pop %v891
    %v893 = vmul.f32 %v880, 1.442695
    %v894 = vpow.pop %v893
    %v895 = vmul.f32 %v881, 1.442695
    %v896 = vpow.pop %v895
    %v897 = vmul.f32 %v882, 1.442695
    %v898 = vpow.pop %v897
    %v899 = vmul.f32 %v859, %v884
    %v900 = vmul.f32 %v860, %v886
    %v901 = vmul.f32 %v861, %v888
    %v902 = vmul.f32 %v862, %v890
    %v903 = vmul.f32 %v863, %v892
    %v904 = vmul.f32 %v864, %v894
    %v905 = vmul.f32 %v865, %v896
    %v906 = vmul.f32 %v866, %v898
    %v907 = vsub.f32 1.0, %v899
    %v908 = vsub.f32 1.0, %v900
    %v909 = vsub.f32 1.0, %v901
    %v910 = vsub.f32 1.0, %v902
    %v911 = vsub.f32 1.0, %v903
    %v912 = vsub.f32 1.0, %v904
    %v913 = vsub.f32 1.0, %v905
    %v914 = vsub.f32 1.0, %v906
    %v915 = vmul.f32 %v755, %v907
    %v916 = vmul.f32 %v756, %v908
    %v917 = vmul.f32 %v757, %v909
    %v918 = vmul.f32 %v758, %v910
    %v919 = vmul.f32 %v759, %v911
    %v920 = vmul.f32 %v760, %v912
    %v921 = vmul.f32 %v761, %v913
    %v922 = vmul.f32 %v762, %v914
    %v923 = vadd.f32 %v915, 1.0
    %v924 = vadd.f32 %v916, 1.0
    %v925 = vadd.f32 %v917, 1.0
    %v926 = vadd.f32 %v918, 1.0
    %v927 = vadd.f32 %v919, 1.0
    %v928 = vadd.f32 %v920, 1.0
    %v929 = vadd.f32 %v921, 1.0
    %v930 = vadd.f32 %v922, 1.0
    %v931 = vmul.f32 %v731, %v923
    %v932 = vmul.f32 %v732, %v924
    %v933 = vmul.f32 %v733, %v925
    %v934 = vmul.f32 %v734, %v926
    %v935 = vmul.f32 %v735, %v927
    %v936 = vmul.f32 %v736, %v928
    %v937 = vmul.f32 %v737, %v929
    %v938 = vmul.f32 %v738, %v930
    %v939 = vld [vmem:[#allocation10] sm:$0xff]
    %v940 = vld [vmem:[#allocation10 + $0x8] sm:$0xff]
    %v941 = vld [vmem:[#allocation10 + $0x10] sm:$0xff]
    %v942 = vld [vmem:[#allocation10 + $0x18] sm:$0xff]
    %v943 = vld [vmem:[#allocation10 + $0x20] sm:$0xff]
    %v944 = vld [vmem:[#allocation10 + $0x28] sm:$0xff]
    %v945 = vld [vmem:[#allocation10 + $0x30] sm:$0xff]
    %v946 = vld [vmem:[#allocation10 + $0x38] sm:$0xff]
    %v947 = vmul.f32 %v931, %v939
    %v948 = vmul.f32 %v932, %v940
    %v949 = vmul.f32 %v933, %v941
    %v950 = vmul.f32 %v934, %v942
    %v951 = vmul.f32 %v935, %v943
    %v952 = vmul.f32 %v936, %v944
    %v953 = vmul.f32 %v937, %v945
    %v954 = vmul.f32 %v938, %v946
    %955 = vst [vmem:[#allocation3] sm:$0xff] %v947
    %956 = vst [vmem:[#allocation3 + $0x8] sm:$0xff] %v948
    %957 = vst [vmem:[#allocation3 + $0x10] sm:$0xff] %v949
    %958 = vst [vmem:[#allocation3 + $0x18] sm:$0xff] %v950
    %959 = vst [vmem:[#allocation3 + $0x20] sm:$0xff] %v951
    %960 = vst [vmem:[#allocation3 + $0x28] sm:$0xff] %v952
    %961 = vst [vmem:[#allocation3 + $0x30] sm:$0xff] %v953
    %962 = vst [vmem:[#allocation3 + $0x38] sm:$0xff] %v954
    %963 = vrot.lane.b32.xlu0 %v947, 21
    %v964 = vpop.permute.xlu0 %963
    %965 = vrot.lane.b32.xlu0 %v948, 21
    %v966 = vpop.permute.xlu0 %965
    %967 = vrot.lane.b32.xlu0 %v949, 21
    %v968 = vpop.permute.xlu0 %967
    %969 = vrot.lane.b32.xlu0 %v950, 21
    %v970 = vpop.permute.xlu0 %969
    %971 = vrot.lane.b32.xlu0 %v951, 21
    %v972 = vpop.permute.xlu0 %971
    %973 = vrot.lane.b32.xlu0 %v952, 21
    %v974 = vpop.permute.xlu0 %973
    %975 = vrot.lane.b32.xlu0 %v953, 21
    %v976 = vpop.permute.xlu0 %975
    %977 = vrot.lane.b32.xlu0 %v954, 21
    %v978 = vpop.permute.xlu0 %977
    %v979 = vsel %vm106, %v976, %v978
    %v980 = vsel %vm106, %v974, %v976
    %v981 = vsel %vm106, %v972, %v974
    %v982 = vsel %vm106, %v970, %v972
    %v983 = vsel %vm106, %v968, %v970
    %v984 = vsel %vm106, %v966, %v968
    %v985 = vsel %vm106, %v964, %v966
    %v986 = vsel %vm106, %v978, %v964
    %987 = vrot.lane.b32.xlu0 %v947, 20
    %v988 = vpop.permute.xlu0 %987
    %989 = vrot.lane.b32.xlu0 %v948, 20
    %v990 = vpop.permute.xlu0 %989
    %991 = vrot.lane.b32.xlu0 %v949, 20
    %v992 = vpop.permute.xlu0 %991
    %993 = vrot.lane.b32.xlu0 %v950, 20
    %v994 = vpop.permute.xlu0 %993
    %995 = vrot.lane.b32.xlu0 %v951, 20
    %v996 = vpop.permute.xlu0 %995
    %997 = vrot.lane.b32.xlu0 %v952, 20
    %v998 = vpop.permute.xlu0 %997
    %999 = vrot.lane.b32.xlu0 %v953, 20
    %v1000 = vpop.permute.xlu0 %999
    %1001 = vrot.lane.b32.xlu0 %v954, 20
    %v1002 = vpop.permute.xlu0 %1001
    %v1003 = vsel %vm131, %v1000, %v1002
    %v1004 = vsel %vm131, %v998, %v1000
    %v1005 = vsel %vm131, %v996, %v998
    %v1006 = vsel %vm131, %v994, %v996
    %v1007 = vsel %vm131, %v992, %v994
    %v1008 = vsel %vm131, %v990, %v992
    %v1009 = vsel %vm131, %v988, %v990
    %v1010 = vsel %vm131, %v1002, %v988
    %v1011 = vpack.c.bf16 %v985, %v986
    %v1012 = vpack.c.bf16 %v983, %v984
    %v1013 = vpack.c.bf16 %v981, %v982
    %v1014 = vpack.c.bf16 %v979, %v980
    %v1015 = vpack.c.bf16 %v1009, %v1010
    %v1016 = vpack.c.bf16 %v1007, %v1008
    %v1017 = vpack.c.bf16 %v1005, %v1006
    %v1018 = vpack.c.bf16 %v1003, %v1004
    %1019 = vst [vmem:[#allocation2] sm:$0xff] %v1011
    %1020 = vst [vmem:[#allocation2 + $0x8] sm:$0xff] %v1012
    %1021 = vst [vmem:[#allocation2 + $0x10] sm:$0xff] %v1013
    %1022 = vst [vmem:[#allocation2 + $0x18] sm:$0xff] %v1014
    %1023 = vst [vmem:[#allocation2 + $0x20] sm:$0xff] %v1015
    %1024 = vst [vmem:[#allocation2 + $0x28] sm:$0xff] %v1016
    %1025 = vst [vmem:[#allocation2 + $0x30] sm:$0xff] %v1017
    %1026 = vst [vmem:[#allocation2 + $0x38] sm:$0xff] %v1018
    %1027 = vrot.lane.b32.xlu0 %v947, 19
    %v1028 = vpop.permute.xlu0 %1027
    %1029 = vrot.lane.b32.xlu0 %v948, 19
    %v1030 = vpop.permute.xlu0 %1029
    %1031 = vrot.lane.b32.xlu0 %v949, 19
    %v1032 = vpop.permute.xlu0 %1031
    %1033 = vrot.lane.b32.xlu0 %v950, 19
    %v1034 = vpop.permute.xlu0 %1033
    %1035 = vrot.lane.b32.xlu0 %v951, 19
    %v1036 = vpop.permute.xlu0 %1035
    %1037 = vrot.lane.b32.xlu0 %v952, 19
    %v1038 = vpop.permute.xlu0 %1037
    %1039 = vrot.lane.b32.xlu0 %v953, 19
    %v1040 = vpop.permute.xlu0 %1039
    %1041 = vrot.lane.b32.xlu0 %v954, 19
    %v1042 = vpop.permute.xlu0 %1041
    %v1043 = vsel %vm172, %v1040, %v1042
    %v1044 = vsel %vm172, %v1038, %v1040
    %v1045 = vsel %vm172, %v1036, %v1038
    %v1046 = vsel %vm172, %v1034, %v1036
    %v1047 = vsel %vm172, %v1032, %v1034
    %v1048 = vsel %vm172, %v1030, %v1032
    %v1049 = vsel %vm172, %v1028, %v1030
    %v1050 = vsel %vm172, %v1042, %v1028
    %1051 = vrot.lane.b32.xlu0 %v947, 1
    %v1052 = vpop.permute.xlu0 %1051
    %1053 = vrot.lane.b32.xlu0 %v948, 1
    %v1054 = vpop.permute.xlu0 %1053
    %1055 = vrot.lane.b32.xlu0 %v949, 1
    %v1056 = vpop.permute.xlu0 %1055
    %1057 = vrot.lane.b32.xlu0 %v950, 1
    %v1058 = vpop.permute.xlu0 %1057
    %1059 = vrot.lane.b32.xlu0 %v951, 1
    %v1060 = vpop.permute.xlu0 %1059
    %1061 = vrot.lane.b32.xlu0 %v952, 1
    %v1062 = vpop.permute.xlu0 %1061
    %1063 = vrot.lane.b32.xlu0 %v953, 1
    %v1064 = vpop.permute.xlu0 %1063
    %1065 = vrot.lane.b32.xlu0 %v954, 1
    %v1066 = vpop.permute.xlu0 %1065
    %v1067 = vsel %vm197, %v1064, %v1066
    %v1068 = vsel %vm197, %v1062, %v1064
    %v1069 = vsel %vm197, %v1060, %v1062
    %v1070 = vsel %vm197, %v1058, %v1060
    %v1071 = vsel %vm197, %v1056, %v1058
    %v1072 = vsel %vm197, %v1054, %v1056
    %v1073 = vsel %vm197, %v1052, %v1054
    %v1074 = vsel %vm197, %v1066, %v1052
    %v1075 = vpack.c.bf16 %v1049, %v1050
    %v1076 = vpack.c.bf16 %v1047, %v1048
    %v1077 = vpack.c.bf16 %v1045, %v1046
    %v1078 = vpack.c.bf16 %v1043, %v1044
    %v1079 = vpack.c.bf16 %v1073, %v1074
    %v1080 = vpack.c.bf16 %v1071, %v1072
    %v1081 = vpack.c.bf16 %v1069, %v1070
    %v1082 = vpack.c.bf16 %v1067, %v1068
    %1083 = vst [vmem:[#allocation2 + $0x40] sm:$0xff] %v1075
    %1084 = vst [vmem:[#allocation2 + $0x48] sm:$0xff] %v1076
    %1085 = vst [vmem:[#allocation2 + $0x50] sm:$0xff] %v1077
    %1086 = vst [vmem:[#allocation2 + $0x58] sm:$0xff] %v1078
    %1087 = vst [vmem:[#allocation2 + $0x60] sm:$0xff] %v1079
    %1088 = vst [vmem:[#allocation2 + $0x68] sm:$0xff] %v1080
    %1089 = vst [vmem:[#allocation2 + $0x70] sm:$0xff] %v1081
    %1090 = vst [vmem:[#allocation2 + $0x78] sm:$0xff] %v1082
    %1091 = vrot.lane.b32.xlu0 %v947, 127
    %v1092 = vpop.permute.xlu0 %1091
    %1093 = vrot.lane.b32.xlu0 %v948, 127
    %v1094 = vpop.permute.xlu0 %1093
    %1095 = vrot.lane.b32.xlu0 %v949, 127
    %v1096 = vpop.permute.xlu0 %1095
    %1097 = vrot.lane.b32.xlu0 %v950, 127
    %v1098 = vpop.permute.xlu0 %1097
    %1099 = vrot.lane.b32.xlu0 %v951, 127
    %v1100 = vpop.permute.xlu0 %1099
    %1101 = vrot.lane.b32.xlu0 %v952, 127
    %v1102 = vpop.permute.xlu0 %1101
    %1103 = vrot.lane.b32.xlu0 %v953, 127
    %v1104 = vpop.permute.xlu0 %1103
    %1105 = vrot.lane.b32.xlu0 %v954, 127
    %v1106 = vpop.permute.xlu0 %1105
    %v1107 = vsel %vm238, %v1104, %v1106
    %v1108 = vsel %vm238, %v1102, %v1104
    %v1109 = vsel %vm238, %v1100, %v1102
    %v1110 = vsel %vm238, %v1098, %v1100
    %v1111 = vsel %vm238, %v1096, %v1098
    %v1112 = vsel %vm238, %v1094, %v1096
    %v1113 = vsel %vm238, %v1092, %v1094
    %v1114 = vsel %vm238, %v1106, %v1092
    %v1115 = vpack.c.bf16 %v948, %v947
    %v1116 = vpack.c.bf16 %v950, %v949
    %v1117 = vpack.c.bf16 %v952, %v951
    %v1118 = vpack.c.bf16 %v954, %v953
    %v1119 = vpack.c.bf16 %v1112, %v1113
    %v1120 = vpack.c.bf16 %v1110, %v1111
    %v1121 = vpack.c.bf16 %v1108, %v1109
    %v1122 = vpack.c.bf16 %v1114, %v1107
    %1123 = vst [vmem:[#allocation2 + $0x80] sm:$0xff] %v1115
    %1124 = vst [vmem:[#allocation2 + $0x88] sm:$0xff] %v1116
    %1125 = vst [vmem:[#allocation2 + $0x90] sm:$0xff] %v1117
    %1126 = vst [vmem:[#allocation2 + $0x98] sm:$0xff] %v1118
    %1127 = vst [vmem:[#allocation2 + $0xa0] sm:$0xff] %v1119
    %1128 = vst [vmem:[#allocation2 + $0xa8] sm:$0xff] %v1120
    %1129 = vst [vmem:[#allocation2 + $0xb0] sm:$0xff] %v1121
    %1130 = vst [vmem:[#allocation2 + $0xb8] sm:$0xff] %v1122
    %1131 = vrot.lane.b32.xlu0 %v947, 109
    %v1132 = vpop.permute.xlu0 %1131
    %1133 = vrot.lane.b32.xlu0 %v948, 109
    %v1134 = vpop.permute.xlu0 %1133
    %1135 = vrot.lane.b32.xlu0 %v949, 109
    %v1136 = vpop.permute.xlu0 %1135
    %1137 = vrot.lane.b32.xlu0 %v950, 109
    %v1138 = vpop.permute.xlu0 %1137
    %1139 = vrot.lane.b32.xlu0 %v951, 109
    %v1140 = vpop.permute.xlu0 %1139
    %1141 = vrot.lane.b32.xlu0 %v952, 109
    %v1142 = vpop.permute.xlu0 %1141
    %1143 = vrot.lane.b32.xlu0 %v953, 109
    %v1144 = vpop.permute.xlu0 %1143
    %1145 = vrot.lane.b32.xlu0 %v954, 109
    %v1146 = vpop.permute.xlu0 %1145
    %v1147 = vsel %vm279, %v1144, %v1146
    %v1148 = vsel %vm279, %v1142, %v1144
    %v1149 = vsel %vm279, %v1140, %v1142
    %v1150 = vsel %vm279, %v1138, %v1140
    %v1151 = vsel %vm279, %v1136, %v1138
    %v1152 = vsel %vm279, %v1134, %v1136
    %v1153 = vsel %vm279, %v1132, %v1134
    %v1154 = vsel %vm279, %v1146, %v1132
    %1155 = vrot.lane.b32.xlu0 %v947, 108
    %v1156 = vpop.permute.xlu0 %1155
    %1157 = vrot.lane.b32.xlu0 %v948, 108
    %v1158 = vpop.permute.xlu0 %1157
    %1159 = vrot.lane.b32.xlu0 %v949, 108
    %v1160 = vpop.permute.xlu0 %1159
    %1161 = vrot.lane.b32.xlu0 %v950, 108
    %v1162 = vpop.permute.xlu0 %1161
    %1163 = vrot.lane.b32.xlu0 %v951, 108
    %v1164 = vpop.permute.xlu0 %1163
    %1165 = vrot.lane.b32.xlu0 %v952, 108
    %v1166 = vpop.permute.xlu0 %1165
    %1167 = vrot.lane.b32.xlu0 %v953, 108
    %v1168 = vpop.permute.xlu0 %1167
    %1169 = vrot.lane.b32.xlu0 %v954, 108
    %v1170 = vpop.permute.xlu0 %1169
    %v1171 = vsel %vm304, %v1168, %v1170
    %v1172 = vsel %vm304, %v1166, %v1168
    %v1173 = vsel %vm304, %v1164, %v1166
    %v1174 = vsel %vm304, %v1162, %v1164
    %v1175 = vsel %vm304, %v1160, %v1162
    %v1176 = vsel %vm304, %v1158, %v1160
    %v1177 = vsel %vm304, %v1156, %v1158
    %v1178 = vsel %vm304, %v1170, %v1156
    %v1179 = vpack.c.bf16 %v1152, %v1153
    %v1180 = vpack.c.bf16 %v1150, %v1151
    %v1181 = vpack.c.bf16 %v1148, %v1149
    %v1182 = vpack.c.bf16 %v1154, %v1147
    %v1183 = vpack.c.bf16 %v1176, %v1177
    %v1184 = vpack.c.bf16 %v1174, %v1175
    %v1185 = vpack.c.bf16 %v1172, %v1173
    %v1186 = vpack.c.bf16 %v1178, %v1171
    %1187 = vst [vmem:[#allocation2 + $0xc0] sm:$0xff] %v1179
    %1188 = vst [vmem:[#allocation2 + $0xc8] sm:$0xff] %v1180
    %1189 = vst [vmem:[#allocation2 + $0xd0] sm:$0xff] %v1181
    %1190 = vst [vmem:[#allocation2 + $0xd8] sm:$0xff] %v1182
    %1191 = vst [vmem:[#allocation2 + $0xe0] sm:$0xff] %v1183
    %1192 = vst [vmem:[#allocation2 + $0xe8] sm:$0xff] %v1184
    %1193 = vst [vmem:[#allocation2 + $0xf0] sm:$0xff] %v1185
    %1194 = vst [vmem:[#allocation2 + $0xf8] sm:$0xff] %v1186
    %1195 = vrot.lane.b32.xlu0 %v947, 107
    %v1196 = vpop.permute.xlu0 %1195
    %1197 = vrot.lane.b32.xlu0 %v948, 107
    %v1198 = vpop.permute.xlu0 %1197
    %1199 = vrot.lane.b32.xlu0 %v949, 107
    %v1200 = vpop.permute.xlu0 %1199
    %1201 = vrot.lane.b32.xlu0 %v950, 107
    %v1202 = vpop.permute.xlu0 %1201
    %1203 = vrot.lane.b32.xlu0 %v951, 107
    %v1204 = vpop.permute.xlu0 %1203
    %1205 = vrot.lane.b32.xlu0 %v952, 107
    %v1206 = vpop.permute.xlu0 %1205
    %1207 = vrot.lane.b32.xlu0 %v953, 107
    %v1208 = vpop.permute.xlu0 %1207
    %1209 = vrot.lane.b32.xlu0 %v954, 107
    %v1210 = vpop.permute.xlu0 %1209
    %v1211 = vsel %vm345, %v1208, %v1210
    %v1212 = vsel %vm345, %v1206, %v1208
    %v1213 = vsel %vm345, %v1204, %v1206
    %v1214 = vsel %vm345, %v1202, %v1204
    %v1215 = vsel %vm345, %v1200, %v1202
    %v1216 = vsel %vm345, %v1198, %v1200
    %v1217 = vsel %vm345, %v1196, %v1198
    %v1218 = vsel %vm345, %v1210, %v1196
    %v1219 = vpack.c.bf16 %v1216, %v1217
    %v1220 = vpack.c.bf16 %v1214, %v1215
    %v1221 = vpack.c.bf16 %v1212, %v1213
    %v1222 = vpack.c.bf16 %v1218, %v1211
    %1223 = vst [vmem:[#allocation2 + $0x100] sm:$0xff] %v1219
    %1224 = vst [vmem:[#allocation2 + $0x108] sm:$0xff] %v1220
    %1225 = vst [vmem:[#allocation2 + $0x110] sm:$0xff] %v1221
    %1226 = vst [vmem:[#allocation2 + $0x118] sm:$0xff] %v1222
    %1227 = vst [vmem:[#allocation2 + $0x120] sm:$0xff] %v1115
    %1228 = vst [vmem:[#allocation2 + $0x128] sm:$0xff] %v1116
    %1229 = vst [vmem:[#allocation2 + $0x130] sm:$0xff] %v1117
    %1230 = vst [vmem:[#allocation2 + $0x138] sm:$0xff] %v1118
    %s1231 = scalar_lea.vmem [#allocation9], 64
    %v1232 = vld [vmem:[%s1231] sm:$0xff]
    %v1233 = vld [vmem:[%s1231 + $0x8] sm:$0xff]
    %v1234 = vld [vmem:[%s1231 + $0x10] sm:$0xff]
    %v1235 = vld [vmem:[%s1231 + $0x18] sm:$0xff]
    %v1236 = vld [vmem:[%s1231 + $0x20] sm:$0xff]
    %v1237 = vld [vmem:[%s1231 + $0x28] sm:$0xff]
    %v1238 = vld [vmem:[%s1231 + $0x30] sm:$0xff]
    %v1239 = vld [vmem:[%s1231 + $0x38] sm:$0xff]
    %s1240 = scalar_lea.vmem [#allocation7], 4
    %v1241 = vld [vmem:[%s1240] sm:$0xf]
    %v1242 = vld [vmem:[#allocation2] sm:$0xff]
    %v1243 = vld [vmem:[#allocation2 + $0x8] sm:$0xff]
    %v1244 = vld [vmem:[#allocation2 + $0x10] sm:$0xff]
    %v1245 = vld [vmem:[#allocation2 + $0x18] sm:$0xff]
    %v1246 = vld [vmem:[#allocation2 + $0x20] sm:$0xff]
    %v1247 = vld [vmem:[#allocation2 + $0x28] sm:$0xff]
    %v1248 = vld [vmem:[#allocation2 + $0x30] sm:$0xff]
    %v1249 = vld [vmem:[#allocation2 + $0x38] sm:$0xff]
    %v1250 = vld [vmem:[#allocation2 + $0x40] sm:$0xff]
    %v1251 = vld [vmem:[#allocation2 + $0x48] sm:$0xff]
    %v1252 = vld [vmem:[#allocation2 + $0x50] sm:$0xff]
    %v1253 = vld [vmem:[#allocation2 + $0x58] sm:$0xff]
    %v1254 = vld [vmem:[#allocation2 + $0x60] sm:$0xff]
    %v1255 = vld [vmem:[#allocation2 + $0x68] sm:$0xff]
    %v1256 = vld [vmem:[#allocation2 + $0x70] sm:$0xff]
    %v1257 = vld [vmem:[#allocation2 + $0x78] sm:$0xff]
    %v1258 = vld [vmem:[#allocation2 + $0x80] sm:$0xff]
    %v1259 = vld [vmem:[#allocation2 + $0x88] sm:$0xff]
    %v1260 = vld [vmem:[#allocation2 + $0x90] sm:$0xff]
    %v1261 = vld [vmem:[#allocation2 + $0x98] sm:$0xff]
    %v1262 = vld [vmem:[#allocation2 + $0xa0] sm:$0xff]
    %v1263 = vld [vmem:[#allocation2 + $0xa8] sm:$0xff]
    %v1264 = vld [vmem:[#allocation2 + $0xb0] sm:$0xff]
    %v1265 = vld [vmem:[#allocation2 + $0xb8] sm:$0xff]
    %v1266 = vld [vmem:[#allocation2 + $0xc0] sm:$0xff]
    %v1267 = vld [vmem:[#allocation2 + $0xc8] sm:$0xff]
    %v1268 = vld [vmem:[#allocation2 + $0xd0] sm:$0xff]
    %v1269 = vld [vmem:[#allocation2 + $0xd8] sm:$0xff]
    %v1270 = vld [vmem:[#allocation2 + $0xe0] sm:$0xff]
    %v1271 = vld [vmem:[#allocation2 + $0xe8] sm:$0xff]
    %v1272 = vld [vmem:[#allocation2 + $0xf0] sm:$0xff]
    %v1273 = vld [vmem:[#allocation2 + $0xf8] sm:$0xff]
    %v1274 = vld [vmem:[#allocation2 + $0x100] sm:$0xff]
    %v1275 = vld [vmem:[#allocation2 + $0x108] sm:$0xff]
    %v1276 = vld [vmem:[#allocation2 + $0x110] sm:$0xff]
    %v1277 = vld [vmem:[#allocation2 + $0x118] sm:$0xff]
    %v1278 = vld [vmem:[#allocation2 + $0x120] sm:$0xff]
    %v1279 = vld [vmem:[#allocation2 + $0x128] sm:$0xff]
    %v1280 = vld [vmem:[#allocation2 + $0x130] sm:$0xff]
    %v1281 = vld [vmem:[#allocation2 + $0x138] sm:$0xff]
    %v1322 = vunpack.c.l.b16 %v1242
    %v1323 = vunpack.c.h.b16 %v1242
    %v1324 = vunpack.c.l.b16 %v1243
    %v1325 = vunpack.c.h.b16 %v1243
    %v1326 = vunpack.c.l.b16 %v1244
    %v1327 = vunpack.c.h.b16 %v1244
    %v1328 = vunpack.c.l.b16 %v1245
    %v1329 = vunpack.c.h.b16 %v1245
    %v1330 = vunpack.c.l.b16 %v1246
    %v1331 = vunpack.c.h.b16 %v1246
    %v1332 = vunpack.c.l.b16 %v1247
    %v1333 = vunpack.c.h.b16 %v1247
    %v1334 = vunpack.c.l.b16 %v1248
    %v1335 = vunpack.c.h.b16 %v1248
    %v1336 = vunpack.c.l.b16 %v1249
    %v1337 = vunpack.c.h.b16 %v1249
    %v1338 = vunpack.c.l.b16 %v1250
    %v1339 = vunpack.c.h.b16 %v1250
    %v1340 = vunpack.c.l.b16 %v1251
    %v1341 = vunpack.c.h.b16 %v1251
    %v1342 = vunpack.c.l.b16 %v1252
    %v1343 = vunpack.c.h.b16 %v1252
    %v1344 = vunpack.c.l.b16 %v1253
    %v1345 = vunpack.c.h.b16 %v1253
    %v1346 = vunpack.c.l.b16 %v1254
    %v1347 = vunpack.c.h.b16 %v1254
    %v1348 = vunpack.c.l.b16 %v1255
    %v1349 = vunpack.c.h.b16 %v1255
    %v1350 = vunpack.c.l.b16 %v1256
    %v1351 = vunpack.c.h.b16 %v1256
    %v1352 = vunpack.c.l.b16 %v1257
    %v1353 = vunpack.c.h.b16 %v1257
    %v1354 = vunpack.c.l.b16 %v1258
    %v1355 = vunpack.c.h.b16 %v1258
    %v1356 = vunpack.c.l.b16 %v1259
    %v1357 = vunpack.c.h.b16 %v1259
    %v1358 = vunpack.c.l.b16 %v1260
    %v1359 = vunpack.c.h.b16 %v1260
    %v1360 = vunpack.c.l.b16 %v1261
    %v1361 = vunpack.c.h.b16 %v1261
    %v1362 = vunpack.c.l.b16 %v1262
    %v1363 = vunpack.c.h.b16 %v1262
    %v1364 = vunpack.c.l.b16 %v1263
    %v1365 = vunpack.c.h.b16 %v1263
    %v1366 = vunpack.c.l.b16 %v1264
    %v1367 = vunpack.c.h.b16 %v1264
    %v1368 = vunpack.c.l.b16 %v1265
    %v1369 = vunpack.c.h.b16 %v1265
    %v1370 = vunpack.c.l.b16 %v1266
    %v1371 = vunpack.c.h.b16 %v1266
    %v1372 = vunpack.c.l.b16 %v1267
    %v1373 = vunpack.c.h.b16 %v1267
    %v1374 = vunpack.c.l.b16 %v1268
    %v1375 = vunpack.c.h.b16 %v1268
    %v1376 = vunpack.c.l.b16 %v1269
    %v1377 = vunpack.c.h.b16 %v1269
    %v1378 = vunpack.c.l.b16 %v1270
    %v1379 = vunpack.c.h.b16 %v1270
    %v1380 = vunpack.c.l.b16 %v1271
    %v1381 = vunpack.c.h.b16 %v1271
    %v1382 = vunpack.c.l.b16 %v1272
    %v1383 = vunpack.c.h.b16 %v1272
    %v1384 = vunpack.c.l.b16 %v1273
    %v1385 = vunpack.c.h.b16 %v1273
    %v1386 = vunpack.c.l.b16 %v1274
    %v1387 = vunpack.c.h.b16 %v1274
    %v1388 = vunpack.c.l.b16 %v1275
    %v1389 = vunpack.c.h.b16 %v1275
    %v1390 = vunpack.c.l.b16 %v1276
    %v1391 = vunpack.c.h.b16 %v1276
    %v1392 = vunpack.c.l.b16 %v1277
    %v1393 = vunpack.c.h.b16 %v1277
    %v1394 = vunpack.c.l.b16 %v1278
    %v1395 = vunpack.c.h.b16 %v1278
    %v1396 = vunpack.c.l.b16 %v1279
    %v1397 = vunpack.c.h.b16 %v1279
    %v1398 = vunpack.c.l.b16 %v1280
    %v1399 = vunpack.c.h.b16 %v1280
    %v1400 = vunpack.c.l.b16 %v1281
    %v1401 = vunpack.c.h.b16 %v1281
    %v1402 = vpack.c.b16 %v1330, %v1322
    %v1403 = vpack.c.b16 %v1331, %v1323
    %v1404 = vpack.c.b16 %v1332, %v1324
    %v1405 = vpack.c.b16 %v1333, %v1325
    %v1406 = vpack.c.b16 %v1334, %v1326
    %v1407 = vpack.c.b16 %v1335, %v1327
    %v1408 = vpack.c.b16 %v1336, %v1328
    %v1409 = vpack.c.b16 %v1337, %v1329
    %v1410 = vpack.c.b16 %v1346, %v1338
    %v1411 = vpack.c.b16 %v1347, %v1339
    %v1412 = vpack.c.b16 %v1348, %v1340
    %v1413 = vpack.c.b16 %v1349, %v1341
    %v1414 = vpack.c.b16 %v1350, %v1342
    %v1415 = vpack.c.b16 %v1351, %v1343
    %v1416 = vpack.c.b16 %v1352, %v1344
    %v1417 = vpack.c.b16 %v1353, %v1345
    %v1418 = vpack.c.b16 %v1362, %v1354
    %v1419 = vpack.c.b16 %v1363, %v1355
    %v1420 = vpack.c.b16 %v1364, %v1356
    %v1421 = vpack.c.b16 %v1365, %v1357
    %v1422 = vpack.c.b16 %v1366, %v1358
    %v1423 = vpack.c.b16 %v1367, %v1359
    %v1424 = vpack.c.b16 %v1368, %v1360
    %v1425 = vpack.c.b16 %v1369, %v1361
    %v1426 = vpack.c.b16 %v1378, %v1370
    %v1427 = vpack.c.b16 %v1379, %v1371
    %v1428 = vpack.c.b16 %v1380, %v1372
    %v1429 = vpack.c.b16 %v1381, %v1373
    %v1430 = vpack.c.b16 %v1382, %v1374
    %v1431 = vpack.c.b16 %v1383, %v1375
    %v1432 = vpack.c.b16 %v1384, %v1376
    %v1433 = vpack.c.b16 %v1385, %v1377
    %v1434 = vpack.c.b16 %v1394, %v1386
    %v1435 = vpack.c.b16 %v1395, %v1387
    %v1436 = vpack.c.b16 %v1396, %v1388
    %v1437 = vpack.c.b16 %v1397, %v1389
    %v1438 = vpack.c.b16 %v1398, %v1390
    %v1439 = vpack.c.b16 %v1399, %v1391
    %v1440 = vpack.c.b16 %v1400, %v1392
    %v1441 = vpack.c.b16 %v1401, %v1393
    %v1483 = vsel %vm615, %v1241, 0
    %1485 = vmatpush.bf16.msra.mxu0 0
    %1486 = vmatpush.bf16.msra.mxu0 0
    %1487 = vmatpush.bf16.msra.mxu0 0
    %1488 = vmatpush.bf16.msra.mxu0 %v1434
    %1489 = vmatpush.bf16.msra.mxu0 %v1426
    %1490 = vmatpush.bf16.msra.mxu0 %v1418
    %1491 = vmatpush.bf16.msra.mxu0 %v1410
    %1492 = vmatpush.bf16.msra.mxu0 %v1402
    %1493 = vmatmul.bf16.gmra.mxu0 %v1483
    %v1494 = vpop.f32.mrf.mxu0
    %v1495 = vadd.f32 0.0, %v1494
    %v1496 = vpop.f32.mrf.mxu0
    %1497 = vdwg.mxu0
    %1498 = vmatpush.bf16.msra.mxu0 0
    %1499 = vmatpush.bf16.msra.mxu0 0
    %1500 = vmatpush.bf16.msra.mxu0 0
    %1501 = vmatpush.bf16.msra.mxu0 %v1435
    %1502 = vmatpush.bf16.msra.mxu0 %v1427
    %1503 = vmatpush.bf16.msra.mxu0 %v1419
    %1504 = vmatpush.bf16.msra.mxu0 %v1411
    %1505 = vmatpush.bf16.msra.mxu0 %v1403
    %1506 = vmatmul.bf16.gmra.mxu0 %v1483
    %v1507 = vpop.f32.mrf.mxu0
    %v1508 = vadd.f32 0.0, %v1507
    %v1509 = vpop.f32.mrf.mxu0
    %1510 = vdwg.mxu0
    %1511 = vmatpush.bf16.msra.mxu0 0
    %1512 = vmatpush.bf16.msra.mxu0 0
    %1513 = vmatpush.bf16.msra.mxu0 0
    %1514 = vmatpush.bf16.msra.mxu0 %v1436
    %1515 = vmatpush.bf16.msra.mxu0 %v1428
    %1516 = vmatpush.bf16.msra.mxu0 %v1420
    %1517 = vmatpush.bf16.msra.mxu0 %v1412
    %1518 = vmatpush.bf16.msra.mxu0 %v1404
    %1519 = vmatmul.bf16.gmra.mxu0 %v1483
    %v1520 = vpop.f32.mrf.mxu0
    %v1521 = vadd.f32 0.0, %v1520
    %v1522 = vpop.f32.mrf.mxu0
    %1523 = vdwg.mxu0
    %1524 = vmatpush.bf16.msra.mxu0 0
    %1525 = vmatpush.bf16.msra.mxu0 0
    %1526 = vmatpush.bf16.msra.mxu0 0
    %1527 = vmatpush.bf16.msra.mxu0 %v1437
    %1528 = vmatpush.bf16.msra.mxu0 %v1429
    %1529 = vmatpush.bf16.msra.mxu0 %v1421
    %1530 = vmatpush.bf16.msra.mxu0 %v1413
    %1531 = vmatpush.bf16.msra.mxu0 %v1405
    %1532 = vmatmul.bf16.gmra.mxu0 %v1483
    %v1533 = vpop.f32.mrf.mxu0
    %v1534 = vadd.f32 0.0, %v1533
    %v1535 = vpop.f32.mrf.mxu0
    %1536 = vdwg.mxu0
    %1537 = vmatpush.bf16.msra.mxu0 0
    %1538 = vmatpush.bf16.msra.mxu0 0
    %1539 = vmatpush.bf16.msra.mxu0 0
    %1540 = vmatpush.bf16.msra.mxu0 %v1438
    %1541 = vmatpush.bf16.msra.mxu0 %v1430
    %1542 = vmatpush.bf16.msra.mxu0 %v1422
    %1543 = vmatpush.bf16.msra.mxu0 %v1414
    %1544 = vmatpush.bf16.msra.mxu0 %v1406
    %1545 = vmatmul.bf16.gmra.mxu0 %v1483
    %v1546 = vpop.f32.mrf.mxu0
    %v1547 = vadd.f32 0.0, %v1546
    %v1548 = vpop.f32.mrf.mxu0
    %1549 = vdwg.mxu0
    %1550 = vmatpush.bf16.msra.mxu0 0
    %1551 = vmatpush.bf16.msra.mxu0 0
    %1552 = vmatpush.bf16.msra.mxu0 0
    %1553 = vmatpush.bf16.msra.mxu0 %v1439
    %1554 = vmatpush.bf16.msra.mxu0 %v1431
    %1555 = vmatpush.bf16.msra.mxu0 %v1423
    %1556 = vmatpush.bf16.msra.mxu0 %v1415
    %1557 = vmatpush.bf16.msra.mxu0 %v1407
    %1558 = vmatmul.bf16.gmra.mxu0 %v1483
    %v1559 = vpop.f32.mrf.mxu0
    %v1560 = vadd.f32 0.0, %v1559
    %v1561 = vpop.f32.mrf.mxu0
    %1562 = vdwg.mxu0
    %1563 = vmatpush.bf16.msra.mxu0 0
    %1564 = vmatpush.bf16.msra.mxu0 0
    %1565 = vmatpush.bf16.msra.mxu0 0
    %1566 = vmatpush.bf16.msra.mxu0 %v1440
    %1567 = vmatpush.bf16.msra.mxu0 %v1432
    %1568 = vmatpush.bf16.msra.mxu0 %v1424
    %1569 = vmatpush.bf16.msra.mxu0 %v1416
    %1570 = vmatpush.bf16.msra.mxu0 %v1408
    %1571 = vmatmul.bf16.gmra.mxu0 %v1483
    %v1572 = vpop.f32.mrf.mxu0
    %v1573 = vadd.f32 0.0, %v1572
    %v1574 = vpop.f32.mrf.mxu0
    %1575 = vdwg.mxu0
    %1576 = vmatpush.bf16.msra.mxu0 0
    %1577 = vmatpush.bf16.msra.mxu0 0
    %1578 = vmatpush.bf16.msra.mxu0 0
    %1579 = vmatpush.bf16.msra.mxu0 %v1441
    %1580 = vmatpush.bf16.msra.mxu0 %v1433
    %1581 = vmatpush.bf16.msra.mxu0 %v1425
    %1582 = vmatpush.bf16.msra.mxu0 %v1417
    %1583 = vmatpush.bf16.msra.mxu0 %v1409
    %1584 = vmatmul.bf16.gmra.mxu0 %v1483
    %v1585 = vpop.f32.mrf.mxu0
    %v1586 = vadd.f32 0.0, %v1585
    %v1587 = vpop.f32.mrf.mxu0
    %1588 = vdwg.mxu0
    %v1589 = vadd.f32 %v1232, %v1495
    %v1590 = vadd.f32 %v1233, %v1508
    %v1591 = vadd.f32 %v1234, %v1521
    %v1592 = vadd.f32 %v1235, %v1534
    %v1593 = vadd.f32 %v1236, %v1547
    %v1594 = vadd.f32 %v1237, %v1560
    %v1595 = vadd.f32 %v1238, %v1573
    %v1596 = vadd.f32 %v1239, %v1586
    %v1597 = vmul.f32 %v1589, 0.5
    %v1598 = vmul.f32 %v1590, 0.5
    %v1599 = vmul.f32 %v1591, 0.5
    %v1600 = vmul.f32 %v1592, 0.5
    %v1601 = vmul.f32 %v1593, 0.5
    %v1602 = vmul.f32 %v1594, 0.5
    %v1603 = vmul.f32 %v1595, 0.5
    %v1604 = vmul.f32 %v1596, 0.5
    %v1605 = vmul.f32 %v1589, 0.70710677
    %v1606 = vmul.f32 %v1590, 0.70710677
    %v1607 = vmul.f32 %v1591, 0.70710677
    %v1608 = vmul.f32 %v1592, 0.70710677
    %v1609 = vmul.f32 %v1593, 0.70710677
    %v1610 = vmul.f32 %v1594, 0.70710677
    %v1611 = vmul.f32 %v1595, 0.70710677
    %v1612 = vmul.f32 %v1596, 0.70710677
    %vm1613 = vcmp.lt.f32.partialorder %v1605, 0.0
    %vm1614 = vcmp.lt.f32.partialorder %v1606, 0.0
    %vm1615 = vcmp.lt.f32.partialorder %v1607, 0.0
    %vm1616 = vcmp.lt.f32.partialorder %v1608, 0.0
    %vm1617 = vcmp.lt.f32.partialorder %v1609, 0.0
    %vm1618 = vcmp.lt.f32.partialorder %v1610, 0.0
    %vm1619 = vcmp.lt.f32.partialorder %v1611, 0.0
    %vm1620 = vcmp.lt.f32.partialorder %v1612, 0.0
    %v1621 = vsel %vm1613, -1.0, 1.0
    %v1622 = vsel %vm1614, -1.0, 1.0
    %v1623 = vsel %vm1615, -1.0, 1.0
    %v1624 = vsel %vm1616, -1.0, 1.0
    %v1625 = vsel %vm1617, -1.0, 1.0
    %v1626 = vsel %vm1618, -1.0, 1.0
    %v1627 = vsel %vm1619, -1.0, 1.0
    %v1628 = vsel %vm1620, -1.0, 1.0
    %v1629 = vand.u32 2147483647, %v1605
    %v1630 = vand.u32 2147483647, %v1606
    %v1631 = vand.u32 2147483647, %v1607
    %v1632 = vand.u32 2147483647, %v1608
    %v1633 = vand.u32 2147483647, %v1609
    %v1634 = vand.u32 2147483647, %v1610
    %v1635 = vand.u32 2147483647, %v1611
    %v1636 = vand.u32 2147483647, %v1612
    %v1637 = vmul.f32 %v1629, 0.3275911
    %v1638 = vmul.f32 %v1630, 0.3275911
    %v1639 = vmul.f32 %v1631, 0.3275911
    %v1640 = vmul.f32 %v1632, 0.3275911
    %v1641 = vmul.f32 %v1633, 0.3275911
    %v1642 = vmul.f32 %v1634, 0.3275911
    %v1643 = vmul.f32 %v1635, 0.3275911
    %v1644 = vmul.f32 %v1636, 0.3275911
    %v1645 = vadd.f32 %v1637, 1.0
    %v1646 = vadd.f32 %v1638, 1.0
    %v1647 = vadd.f32 %v1639, 1.0
    %v1648 = vadd.f32 %v1640, 1.0
    %v1649 = vadd.f32 %v1641, 1.0
    %v1650 = vadd.f32 %v1642, 1.0
    %v1651 = vadd.f32 %v1643, 1.0
    %v1652 = vadd.f32 %v1644, 1.0
    %v1653 = vrcp.pop %v1645
    %v1654 = vrcp.pop %v1646
    %v1655 = vrcp.pop %v1647
    %v1656 = vrcp.pop %v1648
    %v1657 = vrcp.pop %v1649
    %v1658 = vrcp.pop %v1650
    %v1659 = vrcp.pop %v1651
    %v1660 = vrcp.pop %v1652
    %v1661 = vmul.f32 %v1653, 1.0614054
    %v1662 = vmul.f32 %v1654, 1.0614054
    %v1663 = vmul.f32 %v1655, 1.0614054
    %v1664 = vmul.f32 %v1656, 1.0614054
    %v1665 = vmul.f32 %v1657, 1.0614054
    %v1666 = vmul.f32 %v1658, 1.0614054
    %v1667 = vmul.f32 %v1659, 1.0614054
    %v1668 = vmul.f32 %v1660, 1.0614054
    %v1669 = vadd.f32 %v1661, -1.4531521
    %v1670 = vadd.f32 %v1662, -1.4531521
    %v1671 = vadd.f32 %v1663, -1.4531521
    %v1672 = vadd.f32 %v1664, -1.4531521
    %v1673 = vadd.f32 %v1665, -1.4531521
    %v1674 = vadd.f32 %v1666, -1.4531521
    %v1675 = vadd.f32 %v1667, -1.4531521
    %v1676 = vadd.f32 %v1668, -1.4531521
    %v1677 = vmul.f32 %v1669, %v1653
    %v1678 = vmul.f32 %v1670, %v1654
    %v1679 = vmul.f32 %v1671, %v1655
    %v1680 = vmul.f32 %v1672, %v1656
    %v1681 = vmul.f32 %v1673, %v1657
    %v1682 = vmul.f32 %v1674, %v1658
    %v1683 = vmul.f32 %v1675, %v1659
    %v1684 = vmul.f32 %v1676, %v1660
    %v1685 = vadd.f32 %v1677, 1.4214138
    %v1686 = vadd.f32 %v1678, 1.4214138
    %v1687 = vadd.f32 %v1679, 1.4214138
    %v1688 = vadd.f32 %v1680, 1.4214138
    %v1689 = vadd.f32 %v1681, 1.4214138
    %v1690 = vadd.f32 %v1682, 1.4214138
    %v1691 = vadd.f32 %v1683, 1.4214138
    %v1692 = vadd.f32 %v1684, 1.4214138
    %v1693 = vmul.f32 %v1685, %v1653
    %v1694 = vmul.f32 %v1686, %v1654
    %v1695 = vmul.f32 %v1687, %v1655
    %v1696 = vmul.f32 %v1688, %v1656
    %v1697 = vmul.f32 %v1689, %v1657
    %v1698 = vmul.f32 %v1690, %v1658
    %v1699 = vmul.f32 %v1691, %v1659
    %v1700 = vmul.f32 %v1692, %v1660
    %v1701 = vadd.f32 %v1693, -0.28449672
    %v1702 = vadd.f32 %v1694, -0.28449672
    %v1703 = vadd.f32 %v1695, -0.28449672
    %v1704 = vadd.f32 %v1696, -0.28449672
    %v1705 = vadd.f32 %v1697, -0.28449672
    %v1706 = vadd.f32 %v1698, -0.28449672
    %v1707 = vadd.f32 %v1699, -0.28449672
    %v1708 = vadd.f32 %v1700, -0.28449672
    %v1709 = vmul.f32 %v1701, %v1653
    %v1710 = vmul.f32 %v1702, %v1654
    %v1711 = vmul.f32 %v1703, %v1655
    %v1712 = vmul.f32 %v1704, %v1656
    %v1713 = vmul.f32 %v1705, %v1657
    %v1714 = vmul.f32 %v1706, %v1658
    %v1715 = vmul.f32 %v1707, %v1659
    %v1716 = vmul.f32 %v1708, %v1660
    %v1717 = vadd.f32 %v1709, 0.2548296
    %v1718 = vadd.f32 %v1710, 0.2548296
    %v1719 = vadd.f32 %v1711, 0.2548296
    %v1720 = vadd.f32 %v1712, 0.2548296
    %v1721 = vadd.f32 %v1713, 0.2548296
    %v1722 = vadd.f32 %v1714, 0.2548296
    %v1723 = vadd.f32 %v1715, 0.2548296
    %v1724 = vadd.f32 %v1716, 0.2548296
    %v1725 = vmul.f32 %v1717, %v1653
    %v1726 = vmul.f32 %v1718, %v1654
    %v1727 = vmul.f32 %v1719, %v1655
    %v1728 = vmul.f32 %v1720, %v1656
    %v1729 = vmul.f32 %v1721, %v1657
    %v1730 = vmul.f32 %v1722, %v1658
    %v1731 = vmul.f32 %v1723, %v1659
    %v1732 = vmul.f32 %v1724, %v1660
    %v1733 = vsub.f32 0.0, %v1629
    %v1734 = vsub.f32 0.0, %v1630
    %v1735 = vsub.f32 0.0, %v1631
    %v1736 = vsub.f32 0.0, %v1632
    %v1737 = vsub.f32 0.0, %v1633
    %v1738 = vsub.f32 0.0, %v1634
    %v1739 = vsub.f32 0.0, %v1635
    %v1740 = vsub.f32 0.0, %v1636
    %v1741 = vmul.f32 %v1733, %v1629
    %v1742 = vmul.f32 %v1734, %v1630
    %v1743 = vmul.f32 %v1735, %v1631
    %v1744 = vmul.f32 %v1736, %v1632
    %v1745 = vmul.f32 %v1737, %v1633
    %v1746 = vmul.f32 %v1738, %v1634
    %v1747 = vmul.f32 %v1739, %v1635
    %v1748 = vmul.f32 %v1740, %v1636
    %v1749 = vmul.f32 %v1741, 1.442695
    %v1750 = vpow.pop %v1749
    %v1751 = vmul.f32 %v1742, 1.442695
    %v1752 = vpow.pop %v1751
    %v1753 = vmul.f32 %v1743, 1.442695
    %v1754 = vpow.pop %v1753
    %v1755 = vmul.f32 %v1744, 1.442695
    %v1756 = vpow.pop %v1755
    %v1757 = vmul.f32 %v1745, 1.442695
    %v1758 = vpow.pop %v1757
    %v1759 = vmul.f32 %v1746, 1.442695
    %v1760 = vpow.pop %v1759
    %v1761 = vmul.f32 %v1747, 1.442695
    %v1762 = vpow.pop %v1761
    %v1763 = vmul.f32 %v1748, 1.442695
    %v1764 = vpow.pop %v1763
    %v1765 = vmul.f32 %v1725, %v1750
    %v1766 = vmul.f32 %v1726, %v1752
    %v1767 = vmul.f32 %v1727, %v1754
    %v1768 = vmul.f32 %v1728, %v1756
    %v1769 = vmul.f32 %v1729, %v1758
    %v1770 = vmul.f32 %v1730, %v1760
    %v1771 = vmul.f32 %v1731, %v1762
    %v1772 = vmul.f32 %v1732, %v1764
    %v1773 = vsub.f32 1.0, %v1765
    %v1774 = vsub.f32 1.0, %v1766
    %v1775 = vsub.f32 1.0, %v1767
    %v1776 = vsub.f32 1.0, %v1768
    %v1777 = vsub.f32 1.0, %v1769
    %v1778 = vsub.f32 1.0, %v1770
    %v1779 = vsub.f32 1.0, %v1771
    %v1780 = vsub.f32 1.0, %v1772
    %v1781 = vmul.f32 %v1621, %v1773
    %v1782 = vmul.f32 %v1622, %v1774
    %v1783 = vmul.f32 %v1623, %v1775
    %v1784 = vmul.f32 %v1624, %v1776
    %v1785 = vmul.f32 %v1625, %v1777
    %v1786 = vmul.f32 %v1626, %v1778
    %v1787 = vmul.f32 %v1627, %v1779
    %v1788 = vmul.f32 %v1628, %v1780
    %v1789 = vadd.f32 %v1781, 1.0
    %v1790 = vadd.f32 %v1782, 1.0
    %v1791 = vadd.f32 %v1783, 1.0
    %v1792 = vadd.f32 %v1784, 1.0
    %v1793 = vadd.f32 %v1785, 1.0
    %v1794 = vadd.f32 %v1786, 1.0
    %v1795 = vadd.f32 %v1787, 1.0
    %v1796 = vadd.f32 %v1788, 1.0
    %v1797 = vmul.f32 %v1597, %v1789
    %v1798 = vmul.f32 %v1598, %v1790
    %v1799 = vmul.f32 %v1599, %v1791
    %v1800 = vmul.f32 %v1600, %v1792
    %v1801 = vmul.f32 %v1601, %v1793
    %v1802 = vmul.f32 %v1602, %v1794
    %v1803 = vmul.f32 %v1603, %v1795
    %v1804 = vmul.f32 %v1604, %v1796
    %s1805 = scalar_lea.vmem [#allocation10], 64
    %v1806 = vld [vmem:[%s1805] sm:$0xff]
    %v1807 = vld [vmem:[%s1805 + $0x8] sm:$0xff]
    %v1808 = vld [vmem:[%s1805 + $0x10] sm:$0xff]
    %v1809 = vld [vmem:[%s1805 + $0x18] sm:$0xff]
    %v1810 = vld [vmem:[%s1805 + $0x20] sm:$0xff]
    %v1811 = vld [vmem:[%s1805 + $0x28] sm:$0xff]
    %v1812 = vld [vmem:[%s1805 + $0x30] sm:$0xff]
    %v1813 = vld [vmem:[%s1805 + $0x38] sm:$0xff]
    %v1814 = vmul.f32 %v1797, %v1806
    %v1815 = vmul.f32 %v1798, %v1807
    %v1816 = vmul.f32 %v1799, %v1808
    %v1817 = vmul.f32 %v1800, %v1809
    %v1818 = vmul.f32 %v1801, %v1810
    %v1819 = vmul.f32 %v1802, %v1811
    %v1820 = vmul.f32 %v1803, %v1812
    %v1821 = vmul.f32 %v1804, %v1813
    %s1822 = scalar_lea.vmem [#allocation3], 64
    %1823 = vst [vmem:[%s1822] sm:$0xff] %v1814
    %1824 = vst [vmem:[%s1822 + $0x8] sm:$0xff] %v1815
    %1825 = vst [vmem:[%s1822 + $0x10] sm:$0xff] %v1816
    %1826 = vst [vmem:[%s1822 + $0x18] sm:$0xff] %v1817
    %1827 = vst [vmem:[%s1822 + $0x20] sm:$0xff] %v1818
    %1828 = vst [vmem:[%s1822 + $0x28] sm:$0xff] %v1819
    %1829 = vst [vmem:[%s1822 + $0x30] sm:$0xff] %v1820
    %1830 = vst [vmem:[%s1822 + $0x38] sm:$0xff] %v1821
    %1831 = vrot.lane.b32.xlu0 %v1814, 21
    %v1832 = vpop.permute.xlu0 %1831
    %1833 = vrot.lane.b32.xlu0 %v1815, 21
    %v1834 = vpop.permute.xlu0 %1833
    %1835 = vrot.lane.b32.xlu0 %v1816, 21
    %v1836 = vpop.permute.xlu0 %1835
    %1837 = vrot.lane.b32.xlu0 %v1817, 21
    %v1838 = vpop.permute.xlu0 %1837
    %1839 = vrot.lane.b32.xlu0 %v1818, 21
    %v1840 = vpop.permute.xlu0 %1839
    %1841 = vrot.lane.b32.xlu0 %v1819, 21
    %v1842 = vpop.permute.xlu0 %1841
    %1843 = vrot.lane.b32.xlu0 %v1820, 21
    %v1844 = vpop.permute.xlu0 %1843
    %1845 = vrot.lane.b32.xlu0 %v1821, 21
    %v1846 = vpop.permute.xlu0 %1845
    %v1847 = vsel %vm106, %v1844, %v1846
    %v1848 = vsel %vm106, %v1842, %v1844
    %v1849 = vsel %vm106, %v1840, %v1842
    %v1850 = vsel %vm106, %v1838, %v1840
    %v1851 = vsel %vm106, %v1836, %v1838
    %v1852 = vsel %vm106, %v1834, %v1836
    %v1853 = vsel %vm106, %v1832, %v1834
    %v1854 = vsel %vm106, %v1846, %v1832
    %1855 = vrot.lane.b32.xlu0 %v1814, 20
    %v1856 = vpop.permute.xlu0 %1855
    %1857 = vrot.lane.b32.xlu0 %v1815, 20
    %v1858 = vpop.permute.xlu0 %1857
    %1859 = vrot.lane.b32.xlu0 %v1816, 20
    %v1860 = vpop.permute.xlu0 %1859
    %1861 = vrot.lane.b32.xlu0 %v1817, 20
    %v1862 = vpop.permute.xlu0 %1861
    %1863 = vrot.lane.b32.xlu0 %v1818, 20
    %v1864 = vpop.permute.xlu0 %1863
    %1865 = vrot.lane.b32.xlu0 %v1819, 20
    %v1866 = vpop.permute.xlu0 %1865
    %1867 = vrot.lane.b32.xlu0 %v1820, 20
    %v1868 = vpop.permute.xlu0 %1867
    %1869 = vrot.lane.b32.xlu0 %v1821, 20
    %v1870 = vpop.permute.xlu0 %1869
    %v1871 = vsel %vm131, %v1868, %v1870
    %v1872 = vsel %vm131, %v1866, %v1868
    %v1873 = vsel %vm131, %v1864, %v1866
    %v1874 = vsel %vm131, %v1862, %v1864
    %v1875 = vsel %vm131, %v1860, %v1862
    %v1876 = vsel %vm131, %v1858, %v1860
    %v1877 = vsel %vm131, %v1856, %v1858
    %v1878 = vsel %vm131, %v1870, %v1856
    %v1879 = vpack.c.bf16 %v1853, %v1854
    %v1880 = vpack.c.bf16 %v1851, %v1852
    %v1881 = vpack.c.bf16 %v1849, %v1850
    %v1882 = vpack.c.bf16 %v1847, %v1848
    %v1883 = vpack.c.bf16 %v1877, %v1878
    %v1884 = vpack.c.bf16 %v1875, %v1876
    %v1885 = vpack.c.bf16 %v1873, %v1874
    %v1886 = vpack.c.bf16 %v1871, %v1872
    %1887 = vst [vmem:[#allocation2] sm:$0xff] %v1879
    %1888 = vst [vmem:[#allocation2 + $0x8] sm:$0xff] %v1880
    %1889 = vst [vmem:[#allocation2 + $0x10] sm:$0xff] %v1881
    %1890 = vst [vmem:[#allocation2 + $0x18] sm:$0xff] %v1882
    %1891 = vst [vmem:[#allocation2 + $0x20] sm:$0xff] %v1883
    %1892 = vst [vmem:[#allocation2 + $0x28] sm:$0xff] %v1884
    %1893 = vst [vmem:[#allocation2 + $0x30] sm:$0xff] %v1885
    %1894 = vst [vmem:[#allocation2 + $0x38] sm:$0xff] %v1886
    %1895 = vrot.lane.b32.xlu0 %v1814, 19
    %v1896 = vpop.permute.xlu0 %1895
    %1897 = vrot.lane.b32.xlu0 %v1815, 19
    %v1898 = vpop.permute.xlu0 %1897
    %1899 = vrot.lane.b32.xlu0 %v1816, 19
    %v1900 = vpop.permute.xlu0 %1899
    %1901 = vrot.lane.b32.xlu0 %v1817, 19
    %v1902 = vpop.permute.xlu0 %1901
    %1903 = vrot.lane.b32.xlu0 %v1818, 19
    %v1904 = vpop.permute.xlu0 %1903
    %1905 = vrot.lane.b32.xlu0 %v1819, 19
    %v1906 = vpop.permute.xlu0 %1905
    %1907 = vrot.lane.b32.xlu0 %v1820, 19
    %v1908 = vpop.permute.xlu0 %1907
    %1909 = vrot.lane.b32.xlu0 %v1821, 19
    %v1910 = vpop.permute.xlu0 %1909
    %v1911 = vsel %vm172, %v1908, %v1910
    %v1912 = vsel %vm172, %v1906, %v1908
    %v1913 = vsel %vm172, %v1904, %v1906
    %v1914 = vsel %vm172, %v1902, %v1904
    %v1915 = vsel %vm172, %v1900, %v1902
    %v1916 = vsel %vm172, %v1898, %v1900
    %v1917 = vsel %vm172, %v1896, %v1898
    %v1918 = vsel %vm172, %v1910, %v1896
    %1919 = vrot.lane.b32.xlu0 %v1814, 1
    %v1920 = vpop.permute.xlu0 %1919
    %1921 = vrot.lane.b32.xlu0 %v1815, 1
    %v1922 = vpop.permute.xlu0 %1921
    %1923 = vrot.lane.b32.xlu0 %v1816, 1
    %v1924 = vpop.permute.xlu0 %1923
    %1925 = vrot.lane.b32.xlu0 %v1817, 1
    %v1926 = vpop.permute.xlu0 %1925
    %1927 = vrot.lane.b32.xlu0 %v1818, 1
    %v1928 = vpop.permute.xlu0 %1927
    %1929 = vrot.lane.b32.xlu0 %v1819, 1
    %v1930 = vpop.permute.xlu0 %1929
    %1931 = vrot.lane.b32.xlu0 %v1820, 1
    %v1932 = vpop.permute.xlu0 %1931
    %1933 = vrot.lane.b32.xlu0 %v1821, 1
    %v1934 = vpop.permute.xlu0 %1933
    %v1935 = vsel %vm197, %v1932, %v1934
    %v1936 = vsel %vm197, %v1930, %v1932
    %v1937 = vsel %vm197, %v1928, %v1930
    %v1938 = vsel %vm197, %v1926, %v1928
    %v1939 = vsel %vm197, %v1924, %v1926
    %v1940 = vsel %vm197, %v1922, %v1924
    %v1941 = vsel %vm197, %v1920, %v1922
    %v1942 = vsel %vm197, %v1934, %v1920
    %v1943 = vpack.c.bf16 %v1917, %v1918
    %v1944 = vpack.c.bf16 %v1915, %v1916
    %v1945 = vpack.c.bf16 %v1913, %v1914
    %v1946 = vpack.c.bf16 %v1911, %v1912
    %v1947 = vpack.c.bf16 %v1941, %v1942
    %v1948 = vpack.c.bf16 %v1939, %v1940
    %v1949 = vpack.c.bf16 %v1937, %v1938
    %v1950 = vpack.c.bf16 %v1935, %v1936
    %1951 = vst [vmem:[#allocation2 + $0x40] sm:$0xff] %v1943
    %1952 = vst [vmem:[#allocation2 + $0x48] sm:$0xff] %v1944
    %1953 = vst [vmem:[#allocation2 + $0x50] sm:$0xff] %v1945
    %1954 = vst [vmem:[#allocation2 + $0x58] sm:$0xff] %v1946
    %1955 = vst [vmem:[#allocation2 + $0x60] sm:$0xff] %v1947
    %1956 = vst [vmem:[#allocation2 + $0x68] sm:$0xff] %v1948
    %1957 = vst [vmem:[#allocation2 + $0x70] sm:$0xff] %v1949
    %1958 = vst [vmem:[#allocation2 + $0x78] sm:$0xff] %v1950
    %1959 = vrot.lane.b32.xlu0 %v1814, 127
    %v1960 = vpop.permute.xlu0 %1959
    %1961 = vrot.lane.b32.xlu0 %v1815, 127
    %v1962 = vpop.permute.xlu0 %1961
    %1963 = vrot.lane.b32.xlu0 %v1816, 127
    %v1964 = vpop.permute.xlu0 %1963
    %1965 = vrot.lane.b32.xlu0 %v1817, 127
    %v1966 = vpop.permute.xlu0 %1965
    %1967 = vrot.lane.b32.xlu0 %v1818, 127
    %v1968 = vpop.permute.xlu0 %1967
    %1969 = vrot.lane.b32.xlu0 %v1819, 127
    %v1970 = vpop.permute.xlu0 %1969
    %1971 = vrot.lane.b32.xlu0 %v1820, 127
    %v1972 = vpop.permute.xlu0 %1971
    %1973 = vrot.lane.b32.xlu0 %v1821, 127
    %v1974 = vpop.permute.xlu0 %1973
    %v1975 = vsel %vm238, %v1972, %v1974
    %v1976 = vsel %vm238, %v1970, %v1972
    %v1977 = vsel %vm238, %v1968, %v1970
    %v1978 = vsel %vm238, %v1966, %v1968
    %v1979 = vsel %vm238, %v1964, %v1966
    %v1980 = vsel %vm238, %v1962, %v1964
    %v1981 = vsel %vm238, %v1960, %v1962
    %v1982 = vsel %vm238, %v1974, %v1960
    %v1983 = vpack.c.bf16 %v1815, %v1814
    %v1984 = vpack.c.bf16 %v1817, %v1816
    %v1985 = vpack.c.bf16 %v1819, %v1818
    %v1986 = vpack.c.bf16 %v1821, %v1820
    %v1987 = vpack.c.bf16 %v1980, %v1981
    %v1988 = vpack.c.bf16 %v1978, %v1979
    %v1989 = vpack.c.bf16 %v1976, %v1977
    %v1990 = vpack.c.bf16 %v1982, %v1975
    %1991 = vst [vmem:[#allocation2 + $0x80] sm:$0xff] %v1983
    %1992 = vst [vmem:[#allocation2 + $0x88] sm:$0xff] %v1984
    %1993 = vst [vmem:[#allocation2 + $0x90] sm:$0xff] %v1985
    %1994 = vst [vmem:[#allocation2 + $0x98] sm:$0xff] %v1986
    %1995 = vst [vmem:[#allocation2 + $0xa0] sm:$0xff] %v1987
    %1996 = vst [vmem:[#allocation2 + $0xa8] sm:$0xff] %v1988
    %1997 = vst [vmem:[#allocation2 + $0xb0] sm:$0xff] %v1989
    %1998 = vst [vmem:[#allocation2 + $0xb8] sm:$0xff] %v1990
    %1999 = vrot.lane.b32.xlu0 %v1814, 109
    %v2000 = vpop.permute.xlu0 %1999
    %2001 = vrot.lane.b32.xlu0 %v1815, 109
    %v2002 = vpop.permute.xlu0 %2001
    %2003 = vrot.lane.b32.xlu0 %v1816, 109
    %v2004 = vpop.permute.xlu0 %2003
    %2005 = vrot.lane.b32.xlu0 %v1817, 109
    %v2006 = vpop.permute.xlu0 %2005
    %2007 = vrot.lane.b32.xlu0 %v1818, 109
    %v2008 = vpop.permute.xlu0 %2007
    %2009 = vrot.lane.b32.xlu0 %v1819, 109
    %v2010 = vpop.permute.xlu0 %2009
    %2011 = vrot.lane.b32.xlu0 %v1820, 109
    %v2012 = vpop.permute.xlu0 %2011
    %2013 = vrot.lane.b32.xlu0 %v1821, 109
    %v2014 = vpop.permute.xlu0 %2013
    %v2015 = vsel %vm279, %v2012, %v2014
    %v2016 = vsel %vm279, %v2010, %v2012
    %v2017 = vsel %vm279, %v2008, %v2010
    %v2018 = vsel %vm279, %v2006, %v2008
    %v2019 = vsel %vm279, %v2004, %v2006
    %v2020 = vsel %vm279, %v2002, %v2004
    %v2021 = vsel %vm279, %v2000, %v2002
    %v2022 = vsel %vm279, %v2014, %v2000
    %2023 = vrot.lane.b32.xlu0 %v1814, 108
    %v2024 = vpop.permute.xlu0 %2023
    %2025 = vrot.lane.b32.xlu0 %v1815, 108
    %v2026 = vpop.permute.xlu0 %2025
    %2027 = vrot.lane.b32.xlu0 %v1816, 108
    %v2028 = vpop.permute.xlu0 %2027
    %2029 = vrot.lane.b32.xlu0 %v1817, 108
    %v2030 = vpop.permute.xlu0 %2029
    %2031 = vrot.lane.b32.xlu0 %v1818, 108
    %v2032 = vpop.permute.xlu0 %2031
    %2033 = vrot.lane.b32.xlu0 %v1819, 108
    %v2034 = vpop.permute.xlu0 %2033
    %2035 = vrot.lane.b32.xlu0 %v1820, 108
    %v2036 = vpop.permute.xlu0 %2035
    %2037 = vrot.lane.b32.xlu0 %v1821, 108
    %v2038 = vpop.permute.xlu0 %2037
    %v2039 = vsel %vm304, %v2036, %v2038
    %v2040 = vsel %vm304, %v2034, %v2036
    %v2041 = vsel %vm304, %v2032, %v2034
    %v2042 = vsel %vm304, %v2030, %v2032
    %v2043 = vsel %vm304, %v2028, %v2030
    %v2044 = vsel %vm304, %v2026, %v2028
    %v2045 = vsel %vm304, %v2024, %v2026
    %v2046 = vsel %vm304, %v2038, %v2024
    %v2047 = vpack.c.bf16 %v2020, %v2021
    %v2048 = vpack.c.bf16 %v2018, %v2019
    %v2049 = vpack.c.bf16 %v2016, %v2017
    %v2050 = vpack.c.bf16 %v2022, %v2015
    %v2051 = vpack.c.bf16 %v2044, %v2045
    %v2052 = vpack.c.bf16 %v2042, %v2043
    %v2053 = vpack.c.bf16 %v2040, %v2041
    %v2054 = vpack.c.bf16 %v2046, %v2039
    %2055 = vst [vmem:[#allocation2 + $0xc0] sm:$0xff] %v2047
    %2056 = vst [vmem:[#allocation2 + $0xc8] sm:$0xff] %v2048
    %2057 = vst [vmem:[#allocation2 + $0xd0] sm:$0xff] %v2049
    %2058 = vst [vmem:[#allocation2 + $0xd8] sm:$0xff] %v2050
    %2059 = vst [vmem:[#allocation2 + $0xe0] sm:$0xff] %v2051
    %2060 = vst [vmem:[#allocation2 + $0xe8] sm:$0xff] %v2052
    %2061 = vst [vmem:[#allocation2 + $0xf0] sm:$0xff] %v2053
    %2062 = vst [vmem:[#allocation2 + $0xf8] sm:$0xff] %v2054
    %2063 = vrot.lane.b32.xlu0 %v1814, 107
    %v2064 = vpop.permute.xlu0 %2063
    %2065 = vrot.lane.b32.xlu0 %v1815, 107
    %v2066 = vpop.permute.xlu0 %2065
    %2067 = vrot.lane.b32.xlu0 %v1816, 107
    %v2068 = vpop.permute.xlu0 %2067
    %2069 = vrot.lane.b32.xlu0 %v1817, 107
    %v2070 = vpop.permute.xlu0 %2069
    %2071 = vrot.lane.b32.xlu0 %v1818, 107
    %v2072 = vpop.permute.xlu0 %2071
    %2073 = vrot.lane.b32.xlu0 %v1819, 107
    %v2074 = vpop.permute.xlu0 %2073
    %2075 = vrot.lane.b32.xlu0 %v1820, 107
    %v2076 = vpop.permute.xlu0 %2075
    %2077 = vrot.lane.b32.xlu0 %v1821, 107
    %v2078 = vpop.permute.xlu0 %2077
    %v2079 = vsel %vm345, %v2076, %v2078
    %v2080 = vsel %vm345, %v2074, %v2076
    %v2081 = vsel %vm345, %v2072, %v2074
    %v2082 = vsel %vm345, %v2070, %v2072
    %v2083 = vsel %vm345, %v2068, %v2070
    %v2084 = vsel %vm345, %v2066, %v2068
    %v2085 = vsel %vm345, %v2064, %v2066
    %v2086 = vsel %vm345, %v2078, %v2064
    %v2087 = vpack.c.bf16 %v2084, %v2085
    %v2088 = vpack.c.bf16 %v2082, %v2083
    %v2089 = vpack.c.bf16 %v2080, %v2081
    %v2090 = vpack.c.bf16 %v2086, %v2079
    %2091 = vst [vmem:[#allocation2 + $0x100] sm:$0xff] %v2087
    %2092 = vst [vmem:[#allocation2 + $0x108] sm:$0xff] %v2088
    %2093 = vst [vmem:[#allocation2 + $0x110] sm:$0xff] %v2089
    %2094 = vst [vmem:[#allocation2 + $0x118] sm:$0xff] %v2090
    %2095 = vst [vmem:[#allocation2 + $0x120] sm:$0xff] %v1983
    %2096 = vst [vmem:[#allocation2 + $0x128] sm:$0xff] %v1984
    %2097 = vst [vmem:[#allocation2 + $0x130] sm:$0xff] %v1985
    %2098 = vst [vmem:[#allocation2 + $0x138] sm:$0xff] %v1986
    %s2099 = scalar_lea.vmem [#allocation9], 128
    %v2100 = vld [vmem:[%s2099] sm:$0xff]
    %v2101 = vld [vmem:[%s2099 + $0x8] sm:$0xff]
    %v2102 = vld [vmem:[%s2099 + $0x10] sm:$0xff]
    %v2103 = vld [vmem:[%s2099 + $0x18] sm:$0xff]
    %v2104 = vld [vmem:[%s2099 + $0x20] sm:$0xff]
    %v2105 = vld [vmem:[%s2099 + $0x28] sm:$0xff]
    %v2106 = vld [vmem:[%s2099 + $0x30] sm:$0xff]
    %v2107 = vld [vmem:[%s2099 + $0x38] sm:$0xff]
    %s2108 = scalar_lea.vmem [#allocation7], 8
    %v2109 = vld [vmem:[%s2108] sm:$0xf]
    %v2110 = vld [vmem:[#allocation2] sm:$0xff]
    %v2111 = vld [vmem:[#allocation2 + $0x8] sm:$0xff]
    %v2112 = vld [vmem:[#allocation2 + $0x10] sm:$0xff]
    %v2113 = vld [vmem:[#allocation2 + $0x18] sm:$0xff]
    %v2114 = vld [vmem:[#allocation2 + $0x20] sm:$0xff]
    %v2115 = vld [vmem:[#allocation2 + $0x28] sm:$0xff]
    %v2116 = vld [vmem:[#allocation2 + $0x30] sm:$0xff]
    %v2117 = vld [vmem:[#allocation2 + $0x38] sm:$0xff]
    %v2118 = vld [vmem:[#allocation2 + $0x40] sm:$0xff]
    %v2119 = vld [vmem:[#allocation2 + $0x48] sm:$0xff]
    %v2120 = vld [vmem:[#allocation2 + $0x50] sm:$0xff]
    %v2121 = vld [vmem:[#allocation2 + $0x58] sm:$0xff]
    %v2122 = vld [vmem:[#allocation2 + $0x60] sm:$0xff]
    %v2123 = vld [vmem:[#allocation2 + $0x68] sm:$0xff]
    %v2124 = vld [vmem:[#allocation2 + $0x70] sm:$0xff]
    %v2125 = vld [vmem:[#allocation2 + $0x78] sm:$0xff]
    %v2126 = vld [vmem:[#allocation2 + $0x80] sm:$0xff]
    %v2127 = vld [vmem:[#allocation2 + $0x88] sm:$0xff]
    %v2128 = vld [vmem:[#allocation2 + $0x90] sm:$0xff]
    %v2129 = vld [vmem:[#allocation2 + $0x98] sm:$0xff]
    %v2130 = vld [vmem:[#allocation2 + $0xa0] sm:$0xff]
    %v2131 = vld [vmem:[#allocation2 + $0xa8] sm:$0xff]
    %v2132 = vld [vmem:[#allocation2 + $0xb0] sm:$0xff]
    %v2133 = vld [vmem:[#allocation2 + $0xb8] sm:$0xff]
    %v2134 = vld [vmem:[#allocation2 + $0xc0] sm:$0xff]
    %v2135 = vld [vmem:[#allocation2 + $0xc8] sm:$0xff]
    %v2136 = vld [vmem:[#allocation2 + $0xd0] sm:$0xff]
    %v2137 = vld [vmem:[#allocation2 + $0xd8] sm:$0xff]
    %v2138 = vld [vmem:[#allocation2 + $0xe0] sm:$0xff]
    %v2139 = vld [vmem:[#allocation2 + $0xe8] sm:$0xff]
    %v2140 = vld [vmem:[#allocation2 + $0xf0] sm:$0xff]
    %v2141 = vld [vmem:[#allocation2 + $0xf8] sm:$0xff]
    %v2142 = vld [vmem:[#allocation2 + $0x100] sm:$0xff]
    %v2143 = vld [vmem:[#allocation2 + $0x108] sm:$0xff]
    %v2144 = vld [vmem:[#allocation2 + $0x110] sm:$0xff]
    %v2145 = vld [vmem:[#allocation2 + $0x118] sm:$0xff]
    %v2146 = vld [vmem:[#allocation2 + $0x120] sm:$0xff]
    %v2147 = vld [vmem:[#allocation2 + $0x128] sm:$0xff]
    %v2148 = vld [vmem:[#allocation2 + $0x130] sm:$0xff]
    %v2149 = vld [vmem:[#allocation2 + $0x138] sm:$0xff]
    %v2190 = vunpack.c.l.b16 %v2110
    %v2191 = vunpack.c.h.b16 %v2110
    %v2192 = vunpack.c.l.b16 %v2111
    %v2193 = vunpack.c.h.b16 %v2111
    %v2194 = vunpack.c.l.b16 %v2112
    %v2195 = vunpack.c.h.b16 %v2112
    %v2196 = vunpack.c.l.b16 %v2113
    %v2197 = vunpack.c.h.b16 %v2113
    %v2198 = vunpack.c.l.b16 %v2114
    %v2199 = vunpack.c.h.b16 %v2114
    %v2200 = vunpack.c.l.b16 %v2115
    %v2201 = vunpack.c.h.b16 %v2115
    %v2202 = vunpack.c.l.b16 %v2116
    %v2203 = vunpack.c.h.b16 %v2116
    %v2204 = vunpack.c.l.b16 %v2117
    %v2205 = vunpack.c.h.b16 %v2117
    %v2206 = vunpack.c.l.b16 %v2118
    %v2207 = vunpack.c.h.b16 %v2118
    %v2208 = vunpack.c.l.b16 %v2119
    %v2209 = vunpack.c.h.b16 %v2119
    %v2210 = vunpack.c.l.b16 %v2120
    %v2211 = vunpack.c.h.b16 %v2120
    %v2212 = vunpack.c.l.b16 %v2121
    %v2213 = vunpack.c.h.b16 %v2121
    %v2214 = vunpack.c.l.b16 %v2122
    %v2215 = vunpack.c.h.b16 %v2122
    %v2216 = vunpack.c.l.b16 %v2123
    %v2217 = vunpack.c.h.b16 %v2123
    %v2218 = vunpack.c.l.b16 %v2124
    %v2219 = vunpack.c.h.b16 %v2124
    %v2220 = vunpack.c.l.b16 %v2125
    %v2221 = vunpack.c.h.b16 %v2125
    %v2222 = vunpack.c.l.b16 %v2126
    %v2223 = vunpack.c.h.b16 %v2126
    %v2224 = vunpack.c.l.b16 %v2127
    %v2225 = vunpack.c.h.b16 %v2127
    %v2226 = vunpack.c.l.b16 %v2128
    %v2227 = vunpack.c.h.b16 %v2128
    %v2228 = vunpack.c.l.b16 %v2129
    %v2229 = vunpack.c.h.b16 %v2129
    %v2230 = vunpack.c.l.b16 %v2130
    %v2231 = vunpack.c.h.b16 %v2130
    %v2232 = vunpack.c.l.b16 %v2131
    %v2233 = vunpack.c.h.b16 %v2131
    %v2234 = vunpack.c.l.b16 %v2132
    %v2235 = vunpack.c.h.b16 %v2132
    %v2236 = vunpack.c.l.b16 %v2133
    %v2237 = vunpack.c.h.b16 %v2133
    %v2238 = vunpack.c.l.b16 %v2134
    %v2239 = vunpack.c.h.b16 %v2134
    %v2240 = vunpack.c.l.b16 %v2135
    %v2241 = vunpack.c.h.b16 %v2135
    %v2242 = vunpack.c.l.b16 %v2136
    %v2243 = vunpack.c.h.b16 %v2136
    %v2244 = vunpack.c.l.b16 %v2137
    %v2245 = vunpack.c.h.b16 %v2137
    %v2246 = vunpack.c.l.b16 %v2138
    %v2247 = vunpack.c.h.b16 %v2138
    %v2248 = vunpack.c.l.b16 %v2139
    %v2249 = vunpack.c.h.b16 %v2139
    %v2250 = vunpack.c.l.b16 %v2140
    %v2251 = vunpack.c.h.b16 %v2140
    %v2252 = vunpack.c.l.b16 %v2141
    %v2253 = vunpack.c.h.b16 %v2141
    %v2254 = vunpack.c.l.b16 %v2142
    %v2255 = vunpack.c.h.b16 %v2142
    %v2256 = vunpack.c.l.b16 %v2143
    %v2257 = vunpack.c.h.b16 %v2143
    %v2258 = vunpack.c.l.b16 %v2144
    %v2259 = vunpack.c.h.b16 %v2144
    %v2260 = vunpack.c.l.b16 %v2145
    %v2261 = vunpack.c.h.b16 %v2145
    %v2262 = vunpack.c.l.b16 %v2146
    %v2263 = vunpack.c.h.b16 %v2146
    %v2264 = vunpack.c.l.b16 %v2147
    %v2265 = vunpack.c.h.b16 %v2147
    %v2266 = vunpack.c.l.b16 %v2148
    %v2267 = vunpack.c.h.b16 %v2148
    %v2268 = vunpack.c.l.b16 %v2149
    %v2269 = vunpack.c.h.b16 %v2149
    %v2270 = vpack.c.b16 %v2198, %v2190
    %v2271 = vpack.c.b16 %v2199, %v2191
    %v2272 = vpack.c.b16 %v2200, %v2192
    %v2273 = vpack.c.b16 %v2201, %v2193
    %v2274 = vpack.c.b16 %v2202, %v2194
    %v2275 = vpack.c.b16 %v2203, %v2195
    %v2276 = vpack.c.b16 %v2204, %v2196
    %v2277 = vpack.c.b16 %v2205, %v2197
    %v2278 = vpack.c.b16 %v2214, %v2206
    %v2279 = vpack.c.b16 %v2215, %v2207
    %v2280 = vpack.c.b16 %v2216, %v2208
    %v2281 = vpack.c.b16 %v2217, %v2209
    %v2282 = vpack.c.b16 %v2218, %v2210
    %v2283 = vpack.c.b16 %v2219, %v2211
    %v2284 = vpack.c.b16 %v2220, %v2212
    %v2285 = vpack.c.b16 %v2221, %v2213
    %v2286 = vpack.c.b16 %v2230, %v2222
    %v2287 = vpack.c.b16 %v2231, %v2223
    %v2288 = vpack.c.b16 %v2232, %v2224
    %v2289 = vpack.c.b16 %v2233, %v2225
    %v2290 = vpack.c.b16 %v2234, %v2226
    %v2291 = vpack.c.b16 %v2235, %v2227
    %v2292 = vpack.c.b16 %v2236, %v2228
    %v2293 = vpack.c.b16 %v2237, %v2229
    %v2294 = vpack.c.b16 %v2246, %v2238
    %v2295 = vpack.c.b16 %v2247, %v2239
    %v2296 = vpack.c.b16 %v2248, %v2240
    %v2297 = vpack.c.b16 %v2249, %v2241
    %v2298 = vpack.c.b16 %v2250, %v2242
    %v2299 = vpack.c.b16 %v2251, %v2243
    %v2300 = vpack.c.b16 %v2252, %v2244
    %v2301 = vpack.c.b16 %v2253, %v2245
    %v2302 = vpack.c.b16 %v2262, %v2254
    %v2303 = vpack.c.b16 %v2263, %v2255
    %v2304 = vpack.c.b16 %v2264, %v2256
    %v2305 = vpack.c.b16 %v2265, %v2257
    %v2306 = vpack.c.b16 %v2266, %v2258
    %v2307 = vpack.c.b16 %v2267, %v2259
    %v2308 = vpack.c.b16 %v2268, %v2260
    %v2309 = vpack.c.b16 %v2269, %v2261
    %v2351 = vsel %vm615, %v2109, 0
    %2353 = vmatpush.bf16.msra.mxu0 0
    %2354 = vmatpush.bf16.msra.mxu0 0
    %2355 = vmatpush.bf16.msra.mxu0 0
    %2356 = vmatpush.bf16.msra.mxu0 %v2302
    %2357 = vmatpush.bf16.msra.mxu0 %v2294
    %2358 = vmatpush.bf16.msra.mxu0 %v2286
    %2359 = vmatpush.bf16.msra.mxu0 %v2278
    %2360 = vmatpush.bf16.msra.mxu0 %v2270
    %2361 = vmatmul.bf16.gmra.mxu0 %v2351
    %v2362 = vpop.f32.mrf.mxu0
    %v2363 = vadd.f32 0.0, %v2362
    %v2364 = vpop.f32.mrf.mxu0
    %2365 = vdwg.mxu0
    %2366 = vmatpush.bf16.msra.mxu0 0
    %2367 = vmatpush.bf16.msra.mxu0 0
    %2368 = vmatpush.bf16.msra.mxu0 0
    %2369 = vmatpush.bf16.msra.mxu0 %v2303
    %2370 = vmatpush.bf16.msra.mxu0 %v2295
    %2371 = vmatpush.bf16.msra.mxu0 %v2287
    %2372 = vmatpush.bf16.msra.mxu0 %v2279
    %2373 = vmatpush.bf16.msra.mxu0 %v2271
    %2374 = vmatmul.bf16.gmra.mxu0 %v2351
    %v2375 = vpop.f32.mrf.mxu0
    %v2376 = vadd.f32 0.0, %v2375
    %v2377 = vpop.f32.mrf.mxu0
    %2378 = vdwg.mxu0
    %2379 = vmatpush.bf16.msra.mxu0 0
    %2380 = vmatpush.bf16.msra.mxu0 0
    %2381 = vmatpush.bf16.msra.mxu0 0
    %2382 = vmatpush.bf16.msra.mxu0 %v2304
    %2383 = vmatpush.bf16.msra.mxu0 %v2296
    %2384 = vmatpush.bf16.msra.mxu0 %v2288
    %2385 = vmatpush.bf16.msra.mxu0 %v2280
    %2386 = vmatpush.bf16.msra.mxu0 %v2272
    %2387 = vmatmul.bf16.gmra.mxu0 %v2351
    %v2388 = vpop.f32.mrf.mxu0
    %v2389 = vadd.f32 0.0, %v2388
    %v2390 = vpop.f32.mrf.mxu0
    %2391 = vdwg.mxu0
    %2392 = vmatpush.bf16.msra.mxu0 0
    %2393 = vmatpush.bf16.msra.mxu0 0
    %2394 = vmatpush.bf16.msra.mxu0 0
    %2395 = vmatpush.bf16.msra.mxu0 %v2305
    %2396 = vmatpush.bf16.msra.mxu0 %v2297
    %2397 = vmatpush.bf16.msra.mxu0 %v2289
    %2398 = vmatpush.bf16.msra.mxu0 %v2281
    %2399 = vmatpush.bf16.msra.mxu0 %v2273
    %2400 = vmatmul.bf16.gmra.mxu0 %v2351
    %v2401 = vpop.f32.mrf.mxu0
    %v2402 = vadd.f32 0.0, %v2401
    %v2403 = vpop.f32.mrf.mxu0
    %2404 = vdwg.mxu0
    %2405 = vmatpush.bf16.msra.mxu0 0
    %2406 = vmatpush.bf16.msra.mxu0 0
    %2407 = vmatpush.bf16.msra.mxu0 0
    %2408 = vmatpush.bf16.msra.mxu0 %v2306
    %2409 = vmatpush.bf16.msra.mxu0 %v2298
    %2410 = vmatpush.bf16.msra.mxu0 %v2290
    %2411 = vmatpush.bf16.msra.mxu0 %v2282
    %2412 = vmatpush.bf16.msra.mxu0 %v2274
    %2413 = vmatmul.bf16.gmra.mxu0 %v2351
    %v2414 = vpop.f32.mrf.mxu0
    %v2415 = vadd.f32 0.0, %v2414
    %v2416 = vpop.f32.mrf.mxu0
    %2417 = vdwg.mxu0
    %2418 = vmatpush.bf16.msra.mxu0 0
    %2419 = vmatpush.bf16.msra.mxu0 0
    %2420 = vmatpush.bf16.msra.mxu0 0
    %2421 = vmatpush.bf16.msra.mxu0 %v2307
    %2422 = vmatpush.bf16.msra.mxu0 %v2299
    %2423 = vmatpush.bf16.msra.mxu0 %v2291
    %2424 = vmatpush.bf16.msra.mxu0 %v2283
    %2425 = vmatpush.bf16.msra.mxu0 %v2275
    %2426 = vmatmul.bf16.gmra.mxu0 %v2351
    %v2427 = vpop.f32.mrf.mxu0
    %v2428 = vadd.f32 0.0, %v2427
    %v2429 = vpop.f32.mrf.mxu0
    %2430 = vdwg.mxu0
    %2431 = vmatpush.bf16.msra.mxu0 0
    %2432 = vmatpush.bf16.msra.mxu0 0
    %2433 = vmatpush.bf16.msra.mxu0 0
    %2434 = vmatpush.bf16.msra.mxu0 %v2308
    %2435 = vmatpush.bf16.msra.mxu0 %v2300
    %2436 = vmatpush.bf16.msra.mxu0 %v2292
    %2437 = vmatpush.bf16.msra.mxu0 %v2284
    %2438 = vmatpush.bf16.msra.mxu0 %v2276
    %2439 = vmatmul.bf16.gmra.mxu0 %v2351
    %v2440 = vpop.f32.mrf.mxu0
    %v2441 = vadd.f32 0.0, %v2440
    %v2442 = vpop.f32.mrf.mxu0
    %2443 = vdwg.mxu0
    %2444 = vmatpush.bf16.msra.mxu0 0
    %2445 = vmatpush.bf16.msra.mxu0 0
    %2446 = vmatpush.bf16.msra.mxu0 0
    %2447 = vmatpush.bf16.msra.mxu0 %v2309
    %2448 = vmatpush.bf16.msra.mxu0 %v2301
    %2449 = vmatpush.bf16.msra.mxu0 %v2293
    %2450 = vmatpush.bf16.msra.mxu0 %v2285
    %2451 = vmatpush.bf16.msra.mxu0 %v2277
    %2452 = vmatmul.bf16.gmra.mxu0 %v2351
    %v2453 = vpop.f32.mrf.mxu0
    %v2454 = vadd.f32 0.0, %v2453
    %v2455 = vpop.f32.mrf.mxu0
    %2456 = vdwg.mxu0
    %v2457 = vadd.f32 %v2100, %v2363
    %v2458 = vadd.f32 %v2101, %v2376
    %v2459 = vadd.f32 %v2102, %v2389
    %v2460 = vadd.f32 %v2103, %v2402
    %v2461 = vadd.f32 %v2104, %v2415
    %v2462 = vadd.f32 %v2105, %v2428
    %v2463 = vadd.f32 %v2106, %v2441
    %v2464 = vadd.f32 %v2107, %v2454
    %v2465 = vmul.f32 %v2457, 0.5
    %v2466 = vmul.f32 %v2458, 0.5
    %v2467 = vmul.f32 %v2459, 0.5
    %v2468 = vmul.f32 %v2460, 0.5
    %v2469 = vmul.f32 %v2461, 0.5
    %v2470 = vmul.f32 %v2462, 0.5
    %v2471 = vmul.f32 %v2463, 0.5
    %v2472 = vmul.f32 %v2464, 0.5
    %v2473 = vmul.f32 %v2457, 0.70710677
    %v2474 = vmul.f32 %v2458, 0.70710677
    %v2475 = vmul.f32 %v2459, 0.70710677
    %v2476 = vmul.f32 %v2460, 0.70710677
    %v2477 = vmul.f32 %v2461, 0.70710677
    %v2478 = vmul.f32 %v2462, 0.70710677
    %v2479 = vmul.f32 %v2463, 0.70710677
    %v2480 = vmul.f32 %v2464, 0.70710677
    %vm2481 = vcmp.lt.f32.partialorder %v2473, 0.0
    %vm2482 = vcmp.lt.f32.partialorder %v2474, 0.0
    %vm2483 = vcmp.lt.f32.partialorder %v2475, 0.0
    %vm2484 = vcmp.lt.f32.partialorder %v2476, 0.0
    %vm2485 = vcmp.lt.f32.partialorder %v2477, 0.0
    %vm2486 = vcmp.lt.f32.partialorder %v2478, 0.0
    %vm2487 = vcmp.lt.f32.partialorder %v2479, 0.0
    %vm2488 = vcmp.lt.f32.partialorder %v2480, 0.0
    %v2489 = vsel %vm2481, -1.0, 1.0
    %v2490 = vsel %vm2482, -1.0, 1.0
    %v2491 = vsel %vm2483, -1.0, 1.0
    %v2492 = vsel %vm2484, -1.0, 1.0
    %v2493 = vsel %vm2485, -1.0, 1.0
    %v2494 = vsel %vm2486, -1.0, 1.0
    %v2495 = vsel %vm2487, -1.0, 1.0
    %v2496 = vsel %vm2488, -1.0, 1.0
    %v2497 = vand.u32 2147483647, %v2473
    %v2498 = vand.u32 2147483647, %v2474
    %v2499 = vand.u32 2147483647, %v2475
    %v2500 = vand.u32 2147483647, %v2476
    %v2501 = vand.u32 2147483647, %v2477
    %v2502 = vand.u32 2147483647, %v2478
    %v2503 = vand.u32 2147483647, %v2479
    %v2504 = vand.u32 2147483647, %v2480
    %v2505 = vmul.f32 %v2497, 0.3275911
    %v2506 = vmul.f32 %v2498, 0.3275911
    %v2507 = vmul.f32 %v2499, 0.3275911
    %v2508 = vmul.f32 %v2500, 0.3275911
    %v2509 = vmul.f32 %v2501, 0.3275911
    %v2510 = vmul.f32 %v2502, 0.3275911
    %v2511 = vmul.f32 %v2503, 0.3275911
    %v2512 = vmul.f32 %v2504, 0.3275911
    %v2513 = vadd.f32 %v2505, 1.0
    %v2514 = vadd.f32 %v2506, 1.0
    %v2515 = vadd.f32 %v2507, 1.0
    %v2516 = vadd.f32 %v2508, 1.0
    %v2517 = vadd.f32 %v2509, 1.0
    %v2518 = vadd.f32 %v2510, 1.0
    %v2519 = vadd.f32 %v2511, 1.0
    %v2520 = vadd.f32 %v2512, 1.0
    %v2521 = vrcp.pop %v2513
    %v2522 = vrcp.pop %v2514
    %v2523 = vrcp.pop %v2515
    %v2524 = vrcp.pop %v2516
    %v2525 = vrcp.pop %v2517
    %v2526 = vrcp.pop %v2518
    %v2527 = vrcp.pop %v2519
    %v2528 = vrcp.pop %v2520
    %v2529 = vmul.f32 %v2521, 1.0614054
    %v2530 = vmul.f32 %v2522, 1.0614054
    %v2531 = vmul.f32 %v2523, 1.0614054
    %v2532 = vmul.f32 %v2524, 1.0614054
    %v2533 = vmul.f32 %v2525, 1.0614054
    %v2534 = vmul.f32 %v2526, 1.0614054
    %v2535 = vmul.f32 %v2527, 1.0614054
    %v2536 = vmul.f32 %v2528, 1.0614054
    %v2537 = vadd.f32 %v2529, -1.4531521
    %v2538 = vadd.f32 %v2530, -1.4531521
    %v2539 = vadd.f32 %v2531, -1.4531521
    %v2540 = vadd.f32 %v2532, -1.4531521
    %v2541 = vadd.f32 %v2533, -1.4531521
    %v2542 = vadd.f32 %v2534, -1.4531521
    %v2543 = vadd.f32 %v2535, -1.4531521
    %v2544 = vadd.f32 %v2536, -1.4531521
    %v2545 = vmul.f32 %v2537, %v2521
    %v2546 = vmul.f32 %v2538, %v2522
    %v2547 = vmul.f32 %v2539, %v2523
    %v2548 = vmul.f32 %v2540, %v2524
    %v2549 = vmul.f32 %v2541, %v2525
    %v2550 = vmul.f32 %v2542, %v2526
    %v2551 = vmul.f32 %v2543, %v2527
    %v2552 = vmul.f32 %v2544, %v2528
    %v2553 = vadd.f32 %v2545, 1.4214138
    %v2554 = vadd.f32 %v2546, 1.4214138
    %v2555 = vadd.f32 %v2547, 1.4214138
    %v2556 = vadd.f32 %v2548, 1.4214138
    %v2557 = vadd.f32 %v2549, 1.4214138
    %v2558 = vadd.f32 %v2550, 1.4214138
    %v2559 = vadd.f32 %v2551, 1.4214138
    %v2560 = vadd.f32 %v2552, 1.4214138
    %v2561 = vmul.f32 %v2553, %v2521
    %v2562 = vmul.f32 %v2554, %v2522
    %v2563 = vmul.f32 %v2555, %v2523
    %v2564 = vmul.f32 %v2556, %v2524
    %v2565 = vmul.f32 %v2557, %v2525
    %v2566 = vmul.f32 %v2558, %v2526
    %v2567 = vmul.f32 %v2559, %v2527
    %v2568 = vmul.f32 %v2560, %v2528
    %v2569 = vadd.f32 %v2561, -0.28449672
    %v2570 = vadd.f32 %v2562, -0.28449672
    %v2571 = vadd.f32 %v2563, -0.28449672
    %v2572 = vadd.f32 %v2564, -0.28449672
    %v2573 = vadd.f32 %v2565, -0.28449672
    %v2574 = vadd.f32 %v2566, -0.28449672
    %v2575 = vadd.f32 %v2567, -0.28449672
    %v2576 = vadd.f32 %v2568, -0.28449672
    %v2577 = vmul.f32 %v2569, %v2521
    %v2578 = vmul.f32 %v2570, %v2522
    %v2579 = vmul.f32 %v2571, %v2523
    %v2580 = vmul.f32 %v2572, %v2524
    %v2581 = vmul.f32 %v2573, %v2525
    %v2582 = vmul.f32 %v2574, %v2526
    %v2583 = vmul.f32 %v2575, %v2527
    %v2584 = vmul.f32 %v2576, %v2528
    %v2585 = vadd.f32 %v2577, 0.2548296
    %v2586 = vadd.f32 %v2578, 0.2548296
    %v2587 = vadd.f32 %v2579, 0.2548296
    %v2588 = vadd.f32 %v2580, 0.2548296
    %v2589 = vadd.f32 %v2581, 0.2548296
    %v2590 = vadd.f32 %v2582, 0.2548296
    %v2591 = vadd.f32 %v2583, 0.2548296
    %v2592 = vadd.f32 %v2584, 0.2548296
    %v2593 = vmul.f32 %v2585, %v2521
    %v2594 = vmul.f32 %v2586, %v2522
    %v2595 = vmul.f32 %v2587, %v2523
    %v2596 = vmul.f32 %v2588, %v2524
    %v2597 = vmul.f32 %v2589, %v2525
    %v2598 = vmul.f32 %v2590, %v2526
    %v2599 = vmul.f32 %v2591, %v2527
    %v2600 = vmul.f32 %v2592, %v2528
    %v2601 = vsub.f32 0.0, %v2497
    %v2602 = vsub.f32 0.0, %v2498
    %v2603 = vsub.f32 0.0, %v2499
    %v2604 = vsub.f32 0.0, %v2500
    %v2605 = vsub.f32 0.0, %v2501
    %v2606 = vsub.f32 0.0, %v2502
    %v2607 = vsub.f32 0.0, %v2503
    %v2608 = vsub.f32 0.0, %v2504
    %v2609 = vmul.f32 %v2601, %v2497
    %v2610 = vmul.f32 %v2602, %v2498
    %v2611 = vmul.f32 %v2603, %v2499
    %v2612 = vmul.f32 %v2604, %v2500
    %v2613 = vmul.f32 %v2605, %v2501
    %v2614 = vmul.f32 %v2606, %v2502
    %v2615 = vmul.f32 %v2607, %v2503
    %v2616 = vmul.f32 %v2608, %v2504
    %v2617 = vmul.f32 %v2609, 1.442695
    %v2618 = vpow.pop %v2617
    %v2619 = vmul.f32 %v2610, 1.442695
    %v2620 = vpow.pop %v2619
    %v2621 = vmul.f32 %v2611, 1.442695
    %v2622 = vpow.pop %v2621
    %v2623 = vmul.f32 %v2612, 1.442695
    %v2624 = vpow.pop %v2623
    %v2625 = vmul.f32 %v2613, 1.442695
    %v2626 = vpow.pop %v2625
    %v2627 = vmul.f32 %v2614, 1.442695
    %v2628 = vpow.pop %v2627
    %v2629 = vmul.f32 %v2615, 1.442695
    %v2630 = vpow.pop %v2629
    %v2631 = vmul.f32 %v2616, 1.442695
    %v2632 = vpow.pop %v2631
    %v2633 = vmul.f32 %v2593, %v2618
    %v2634 = vmul.f32 %v2594, %v2620
    %v2635 = vmul.f32 %v2595, %v2622
    %v2636 = vmul.f32 %v2596, %v2624
    %v2637 = vmul.f32 %v2597, %v2626
    %v2638 = vmul.f32 %v2598, %v2628
    %v2639 = vmul.f32 %v2599, %v2630
    %v2640 = vmul.f32 %v2600, %v2632
    %v2641 = vsub.f32 1.0, %v2633
    %v2642 = vsub.f32 1.0, %v2634
    %v2643 = vsub.f32 1.0, %v2635
    %v2644 = vsub.f32 1.0, %v2636
    %v2645 = vsub.f32 1.0, %v2637
    %v2646 = vsub.f32 1.0, %v2638
    %v2647 = vsub.f32 1.0, %v2639
    %v2648 = vsub.f32 1.0, %v2640
    %v2649 = vmul.f32 %v2489, %v2641
    %v2650 = vmul.f32 %v2490, %v2642
    %v2651 = vmul.f32 %v2491, %v2643
    %v2652 = vmul.f32 %v2492, %v2644
    %v2653 = vmul.f32 %v2493, %v2645
    %v2654 = vmul.f32 %v2494, %v2646
    %v2655 = vmul.f32 %v2495, %v2647
    %v2656 = vmul.f32 %v2496, %v2648
    %v2657 = vadd.f32 %v2649, 1.0
    %v2658 = vadd.f32 %v2650, 1.0
    %v2659 = vadd.f32 %v2651, 1.0
    %v2660 = vadd.f32 %v2652, 1.0
    %v2661 = vadd.f32 %v2653, 1.0
    %v2662 = vadd.f32 %v2654, 1.0
    %v2663 = vadd.f32 %v2655, 1.0
    %v2664 = vadd.f32 %v2656, 1.0
    %v2665 = vmul.f32 %v2465, %v2657
    %v2666 = vmul.f32 %v2466, %v2658
    %v2667 = vmul.f32 %v2467, %v2659
    %v2668 = vmul.f32 %v2468, %v2660
    %v2669 = vmul.f32 %v2469, %v2661
    %v2670 = vmul.f32 %v2470, %v2662
    %v2671 = vmul.f32 %v2471, %v2663
    %v2672 = vmul.f32 %v2472, %v2664
    %s2673 = scalar_lea.vmem [#allocation10], 128
    %v2674 = vld [vmem:[%s2673] sm:$0xff]
    %v2675 = vld [vmem:[%s2673 + $0x8] sm:$0xff]
    %v2676 = vld [vmem:[%s2673 + $0x10] sm:$0xff]
    %v2677 = vld [vmem:[%s2673 + $0x18] sm:$0xff]
    %v2678 = vld [vmem:[%s2673 + $0x20] sm:$0xff]
    %v2679 = vld [vmem:[%s2673 + $0x28] sm:$0xff]
    %v2680 = vld [vmem:[%s2673 + $0x30] sm:$0xff]
    %v2681 = vld [vmem:[%s2673 + $0x38] sm:$0xff]
    %v2682 = vmul.f32 %v2665, %v2674
    %v2683 = vmul.f32 %v2666, %v2675
    %v2684 = vmul.f32 %v2667, %v2676
    %v2685 = vmul.f32 %v2668, %v2677
    %v2686 = vmul.f32 %v2669, %v2678
    %v2687 = vmul.f32 %v2670, %v2679
    %v2688 = vmul.f32 %v2671, %v2680
    %v2689 = vmul.f32 %v2672, %v2681
    %2690 = vrot.lane.b32.xlu0 %v2682, 21
    %v2691 = vpop.permute.xlu0 %2690
    %2692 = vrot.lane.b32.xlu0 %v2683, 21
    %v2693 = vpop.permute.xlu0 %2692
    %2694 = vrot.lane.b32.xlu0 %v2684, 21
    %v2695 = vpop.permute.xlu0 %2694
    %2696 = vrot.lane.b32.xlu0 %v2685, 21
    %v2697 = vpop.permute.xlu0 %2696
    %2698 = vrot.lane.b32.xlu0 %v2686, 21
    %v2699 = vpop.permute.xlu0 %2698
    %2700 = vrot.lane.b32.xlu0 %v2687, 21
    %v2701 = vpop.permute.xlu0 %2700
    %2702 = vrot.lane.b32.xlu0 %v2688, 21
    %v2703 = vpop.permute.xlu0 %2702
    %2704 = vrot.lane.b32.xlu0 %v2689, 21
    %v2705 = vpop.permute.xlu0 %2704
    %v2706 = vsel %vm106, %v2703, %v2705
    %v2707 = vsel %vm106, %v2701, %v2703
    %v2708 = vsel %vm106, %v2699, %v2701
    %v2709 = vsel %vm106, %v2697, %v2699
    %v2710 = vsel %vm106, %v2695, %v2697
    %v2711 = vsel %vm106, %v2693, %v2695
    %v2712 = vsel %vm106, %v2691, %v2693
    %v2713 = vsel %vm106, %v2705, %v2691
    %2714 = vrot.lane.b32.xlu0 %v2682, 20
    %v2715 = vpop.permute.xlu0 %2714
    %2716 = vrot.lane.b32.xlu0 %v2683, 20
    %v2717 = vpop.permute.xlu0 %2716
    %2718 = vrot.lane.b32.xlu0 %v2684, 20
    %v2719 = vpop.permute.xlu0 %2718
    %2720 = vrot.lane.b32.xlu0 %v2685, 20
    %v2721 = vpop.permute.xlu0 %2720
    %2722 = vrot.lane.b32.xlu0 %v2686, 20
    %v2723 = vpop.permute.xlu0 %2722
    %2724 = vrot.lane.b32.xlu0 %v2687, 20
    %v2725 = vpop.permute.xlu0 %2724
    %2726 = vrot.lane.b32.xlu0 %v2688, 20
    %v2727 = vpop.permute.xlu0 %2726
    %2728 = vrot.lane.b32.xlu0 %v2689, 20
    %v2729 = vpop.permute.xlu0 %2728
    %v2730 = vsel %vm131, %v2727, %v2729
    %v2731 = vsel %vm131, %v2725, %v2727
    %v2732 = vsel %vm131, %v2723, %v2725
    %v2733 = vsel %vm131, %v2721, %v2723
    %v2734 = vsel %vm131, %v2719, %v2721
    %v2735 = vsel %vm131, %v2717, %v2719
    %v2736 = vsel %vm131, %v2715, %v2717
    %v2737 = vsel %vm131, %v2729, %v2715
    %v2738 = vpack.c.bf16 %v2712, %v2713
    %v2739 = vpack.c.bf16 %v2710, %v2711
    %v2740 = vpack.c.bf16 %v2708, %v2709
    %v2741 = vpack.c.bf16 %v2706, %v2707
    %v2742 = vpack.c.bf16 %v2736, %v2737
    %v2743 = vpack.c.bf16 %v2734, %v2735
    %v2744 = vpack.c.bf16 %v2732, %v2733
    %v2745 = vpack.c.bf16 %v2730, %v2731
    %2746 = vst [vmem:[#allocation2] sm:$0xff] %v2738
    %2747 = vst [vmem:[#allocation2 + $0x8] sm:$0xff] %v2739
    %2748 = vst [vmem:[#allocation2 + $0x10] sm:$0xff] %v2740
    %2749 = vst [vmem:[#allocation2 + $0x18] sm:$0xff] %v2741
    %2750 = vst [vmem:[#allocation2 + $0x20] sm:$0xff] %v2742
    %2751 = vst [vmem:[#allocation2 + $0x28] sm:$0xff] %v2743
    %2752 = vst [vmem:[#allocation2 + $0x30] sm:$0xff] %v2744
    %2753 = vst [vmem:[#allocation2 + $0x38] sm:$0xff] %v2745
    %2754 = vrot.lane.b32.xlu0 %v2682, 19
    %v2755 = vpop.permute.xlu0 %2754
    %2756 = vrot.lane.b32.xlu0 %v2683, 19
    %v2757 = vpop.permute.xlu0 %2756
    %2758 = vrot.lane.b32.xlu0 %v2684, 19
    %v2759 = vpop.permute.xlu0 %2758
    %2760 = vrot.lane.b32.xlu0 %v2685, 19
    %v2761 = vpop.permute.xlu0 %2760
    %2762 = vrot.lane.b32.xlu0 %v2686, 19
    %v2763 = vpop.permute.xlu0 %2762
    %2764 = vrot.lane.b32.xlu0 %v2687, 19
    %v2765 = vpop.permute.xlu0 %2764
    %2766 = vrot.lane.b32.xlu0 %v2688, 19
    %v2767 = vpop.permute.xlu0 %2766
    %2768 = vrot.lane.b32.xlu0 %v2689, 19
    %v2769 = vpop.permute.xlu0 %2768
    %v2770 = vsel %vm172, %v2767, %v2769
    %v2771 = vsel %vm172, %v2765, %v2767
    %v2772 = vsel %vm172, %v2763, %v2765
    %v2773 = vsel %vm172, %v2761, %v2763
    %v2774 = vsel %vm172, %v2759, %v2761
    %v2775 = vsel %vm172, %v2757, %v2759
    %v2776 = vsel %vm172, %v2755, %v2757
    %v2777 = vsel %vm172, %v2769, %v2755
    %2778 = vrot.lane.b32.xlu0 %v2682, 1
    %v2779 = vpop.permute.xlu0 %2778
    %2780 = vrot.lane.b32.xlu0 %v2683, 1
    %v2781 = vpop.permute.xlu0 %2780
    %2782 = vrot.lane.b32.xlu0 %v2684, 1
    %v2783 = vpop.permute.xlu0 %2782
    %2784 = vrot.lane.b32.xlu0 %v2685, 1
    %v2785 = vpop.permute.xlu0 %2784
    %2786 = vrot.lane.b32.xlu0 %v2686, 1
    %v2787 = vpop.permute.xlu0 %2786
    %2788 = vrot.lane.b32.xlu0 %v2687, 1
    %v2789 = vpop.permute.xlu0 %2788
    %2790 = vrot.lane.b32.xlu0 %v2688, 1
    %v2791 = vpop.permute.xlu0 %2790
    %2792 = vrot.lane.b32.xlu0 %v2689, 1
    %v2793 = vpop.permute.xlu0 %2792
    %v2794 = vsel %vm197, %v2791, %v2793
    %v2795 = vsel %vm197, %v2789, %v2791
    %v2796 = vsel %vm197, %v2787, %v2789
    %v2797 = vsel %vm197, %v2785, %v2787
    %v2798 = vsel %vm197, %v2783, %v2785
    %v2799 = vsel %vm197, %v2781, %v2783
    %v2800 = vsel %vm197, %v2779, %v2781
    %v2801 = vsel %vm197, %v2793, %v2779
    %v2802 = vpack.c.bf16 %v2776, %v2777
    %v2803 = vpack.c.bf16 %v2774, %v2775
    %v2804 = vpack.c.bf16 %v2772, %v2773
    %v2805 = vpack.c.bf16 %v2770, %v2771
    %v2806 = vpack.c.bf16 %v2800, %v2801
    %v2807 = vpack.c.bf16 %v2798, %v2799
    %v2808 = vpack.c.bf16 %v2796, %v2797
    %v2809 = vpack.c.bf16 %v2794, %v2795
    %2810 = vst [vmem:[#allocation2 + $0x40] sm:$0xff] %v2802
    %2811 = vst [vmem:[#allocation2 + $0x48] sm:$0xff] %v2803
    %2812 = vst [vmem:[#allocation2 + $0x50] sm:$0xff] %v2804
    %2813 = vst [vmem:[#allocation2 + $0x58] sm:$0xff] %v2805
    %2814 = vst [vmem:[#allocation2 + $0x60] sm:$0xff] %v2806
    %2815 = vst [vmem:[#allocation2 + $0x68] sm:$0xff] %v2807
    %2816 = vst [vmem:[#allocation2 + $0x70] sm:$0xff] %v2808
    %2817 = vst [vmem:[#allocation2 + $0x78] sm:$0xff] %v2809
    %2818 = vrot.lane.b32.xlu0 %v2682, 127
    %v2819 = vpop.permute.xlu0 %2818
    %2820 = vrot.lane.b32.xlu0 %v2683, 127
    %v2821 = vpop.permute.xlu0 %2820
    %2822 = vrot.lane.b32.xlu0 %v2684, 127
    %v2823 = vpop.permute.xlu0 %2822
    %2824 = vrot.lane.b32.xlu0 %v2685, 127
    %v2825 = vpop.permute.xlu0 %2824
    %2826 = vrot.lane.b32.xlu0 %v2686, 127
    %v2827 = vpop.permute.xlu0 %2826
    %2828 = vrot.lane.b32.xlu0 %v2687, 127
    %v2829 = vpop.permute.xlu0 %2828
    %2830 = vrot.lane.b32.xlu0 %v2688, 127
    %v2831 = vpop.permute.xlu0 %2830
    %2832 = vrot.lane.b32.xlu0 %v2689, 127
    %v2833 = vpop.permute.xlu0 %2832
    %v2834 = vsel %vm238, %v2831, %v2833
    %v2835 = vsel %vm238, %v2829, %v2831
    %v2836 = vsel %vm238, %v2827, %v2829
    %v2837 = vsel %vm238, %v2825, %v2827
    %v2838 = vsel %vm238, %v2823, %v2825
    %v2839 = vsel %vm238, %v2821, %v2823
    %v2840 = vsel %vm238, %v2819, %v2821
    %v2841 = vsel %vm238, %v2833, %v2819
    %v2842 = vpack.c.bf16 %v2683, %v2682
    %v2843 = vpack.c.bf16 %v2685, %v2684
    %v2844 = vpack.c.bf16 %v2687, %v2686
    %v2845 = vpack.c.bf16 %v2689, %v2688
    %v2846 = vpack.c.bf16 %v2839, %v2840
    %v2847 = vpack.c.bf16 %v2837, %v2838
    %v2848 = vpack.c.bf16 %v2835, %v2836
    %v2849 = vpack.c.bf16 %v2841, %v2834
    %2850 = vst [vmem:[#allocation2 + $0x80] sm:$0xff] %v2842
    %2851 = vst [vmem:[#allocation2 + $0x88] sm:$0xff] %v2843
    %2852 = vst [vmem:[#allocation2 + $0x90] sm:$0xff] %v2844
    %2853 = vst [vmem:[#allocation2 + $0x98] sm:$0xff] %v2845
    %2854 = vst [vmem:[#allocation2 + $0xa0] sm:$0xff] %v2846
    %2855 = vst [vmem:[#allocation2 + $0xa8] sm:$0xff] %v2847
    %2856 = vst [vmem:[#allocation2 + $0xb0] sm:$0xff] %v2848
    %2857 = vst [vmem:[#allocation2 + $0xb8] sm:$0xff] %v2849
    %2858 = vrot.lane.b32.xlu0 %v2682, 109
    %v2859 = vpop.permute.xlu0 %2858
    %2860 = vrot.lane.b32.xlu0 %v2683, 109
    %v2861 = vpop.permute.xlu0 %2860
    %2862 = vrot.lane.b32.xlu0 %v2684, 109
    %v2863 = vpop.permute.xlu0 %2862
    %2864 = vrot.lane.b32.xlu0 %v2685, 109
    %v2865 = vpop.permute.xlu0 %2864
    %2866 = vrot.lane.b32.xlu0 %v2686, 109
    %v2867 = vpop.permute.xlu0 %2866
    %2868 = vrot.lane.b32.xlu0 %v2687, 109
    %v2869 = vpop.permute.xlu0 %2868
    %2870 = vrot.lane.b32.xlu0 %v2688, 109
    %v2871 = vpop.permute.xlu0 %2870
    %2872 = vrot.lane.b32.xlu0 %v2689, 109
    %v2873 = vpop.permute.xlu0 %2872
    %v2874 = vsel %vm279, %v2871, %v2873
    %v2875 = vsel %vm279, %v2869, %v2871
    %v2876 = vsel %vm279, %v2867, %v2869
    %v2877 = vsel %vm279, %v2865, %v2867
    %v2878 = vsel %vm279, %v2863, %v2865
    %v2879 = vsel %vm279, %v2861, %v2863
    %v2880 = vsel %vm279, %v2859, %v2861
    %v2881 = vsel %vm279, %v2873, %v2859
    %2882 = vrot.lane.b32.xlu0 %v2682, 108
    %v2883 = vpop.permute.xlu0 %2882
    %2884 = vrot.lane.b32.xlu0 %v2683, 108
    %v2885 = vpop.permute.xlu0 %2884
    %2886 = vrot.lane.b32.xlu0 %v2684, 108
    %v2887 = vpop.permute.xlu0 %2886
    %2888 = vrot.lane.b32.xlu0 %v2685, 108
    %v2889 = vpop.permute.xlu0 %2888
    %2890 = vrot.lane.b32.xlu0 %v2686, 108
    %v2891 = vpop.permute.xlu0 %2890
    %2892 = vrot.lane.b32.xlu0 %v2687, 108
    %v2893 = vpop.permute.xlu0 %2892
    %2894 = vrot.lane.b32.xlu0 %v2688, 108
    %v2895 = vpop.permute.xlu0 %2894
    %2896 = vrot.lane.b32.xlu0 %v2689, 108
    %v2897 = vpop.permute.xlu0 %2896
    %v2898 = vsel %vm304, %v2895, %v2897
    %v2899 = vsel %vm304, %v2893, %v2895
    %v2900 = vsel %vm304, %v2891, %v2893
    %v2901 = vsel %vm304, %v2889, %v2891
    %v2902 = vsel %vm304, %v2887, %v2889
    %v2903 = vsel %vm304, %v2885, %v2887
    %v2904 = vsel %vm304, %v2883, %v2885
    %v2905 = vsel %vm304, %v2897, %v2883
    %v2906 = vpack.c.bf16 %v2879, %v2880
    %v2907 = vpack.c.bf16 %v2877, %v2878
    %v2908 = vpack.c.bf16 %v2875, %v2876
    %v2909 = vpack.c.bf16 %v2881, %v2874
    %v2910 = vpack.c.bf16 %v2903, %v2904
    %v2911 = vpack.c.bf16 %v2901, %v2902
    %v2912 = vpack.c.bf16 %v2899, %v2900
    %v2913 = vpack.c.bf16 %v2905, %v2898
    %2914 = vst [vmem:[#allocation2 + $0xc0] sm:$0xff] %v2906
    %2915 = vst [vmem:[#allocation2 + $0xc8] sm:$0xff] %v2907
    %2916 = vst [vmem:[#allocation2 + $0xd0] sm:$0xff] %v2908
    %2917 = vst [vmem:[#allocation2 + $0xd8] sm:$0xff] %v2909
    %2918 = vst [vmem:[#allocation2 + $0xe0] sm:$0xff] %v2910
    %2919 = vst [vmem:[#allocation2 + $0xe8] sm:$0xff] %v2911
    %2920 = vst [vmem:[#allocation2 + $0xf0] sm:$0xff] %v2912
    %2921 = vst [vmem:[#allocation2 + $0xf8] sm:$0xff] %v2913
    %2922 = vrot.lane.b32.xlu0 %v2682, 107
    %v2923 = vpop.permute.xlu0 %2922
    %2924 = vrot.lane.b32.xlu0 %v2683, 107
    %v2925 = vpop.permute.xlu0 %2924
    %2926 = vrot.lane.b32.xlu0 %v2684, 107
    %v2927 = vpop.permute.xlu0 %2926
    %2928 = vrot.lane.b32.xlu0 %v2685, 107
    %v2929 = vpop.permute.xlu0 %2928
    %2930 = vrot.lane.b32.xlu0 %v2686, 107
    %v2931 = vpop.permute.xlu0 %2930
    %2932 = vrot.lane.b32.xlu0 %v2687, 107
    %v2933 = vpop.permute.xlu0 %2932
    %2934 = vrot.lane.b32.xlu0 %v2688, 107
    %v2935 = vpop.permute.xlu0 %2934
    %2936 = vrot.lane.b32.xlu0 %v2689, 107
    %v2937 = vpop.permute.xlu0 %2936
    %v2938 = vsel %vm345, %v2935, %v2937
    %v2939 = vsel %vm345, %v2933, %v2935
    %v2940 = vsel %vm345, %v2931, %v2933
    %v2941 = vsel %vm345, %v2929, %v2931
    %v2942 = vsel %vm345, %v2927, %v2929
    %v2943 = vsel %vm345, %v2925, %v2927
    %v2944 = vsel %vm345, %v2923, %v2925
    %v2945 = vsel %vm345, %v2937, %v2923
    %v2946 = vpack.c.bf16 %v2943, %v2944
    %v2947 = vpack.c.bf16 %v2941, %v2942
    %v2948 = vpack.c.bf16 %v2939, %v2940
    %v2949 = vpack.c.bf16 %v2945, %v2938
    %2950 = vst [vmem:[#allocation2 + $0x100] sm:$0xff] %v2946
    %2951 = vst [vmem:[#allocation2 + $0x108] sm:$0xff] %v2947
    %2952 = vst [vmem:[#allocation2 + $0x110] sm:$0xff] %v2948
    %2953 = vst [vmem:[#allocation2 + $0x118] sm:$0xff] %v2949
    %2954 = vst [vmem:[#allocation2 + $0x120] sm:$0xff] %v2842
    %2955 = vst [vmem:[#allocation2 + $0x128] sm:$0xff] %v2843
    %2956 = vst [vmem:[#allocation2 + $0x130] sm:$0xff] %v2844
    %2957 = vst [vmem:[#allocation2 + $0x138] sm:$0xff] %v2845
    %s2958 = scalar_lea.vmem [#allocation9], 192
    %v2959 = vld [vmem:[%s2958] sm:$0xff]
    %v2960 = vld [vmem:[%s2958 + $0x8] sm:$0xff]
    %v2961 = vld [vmem:[%s2958 + $0x10] sm:$0xff]
    %v2962 = vld [vmem:[%s2958 + $0x18] sm:$0xff]
    %v2963 = vld [vmem:[%s2958 + $0x20] sm:$0xff]
    %v2964 = vld [vmem:[%s2958 + $0x28] sm:$0xff]
    %v2965 = vld [vmem:[%s2958 + $0x30] sm:$0xff]
    %v2966 = vld [vmem:[%s2958 + $0x38] sm:$0xff]
    %s2967 = scalar_lea.vmem [#allocation7], 12
    %v2968 = vld [vmem:[%s2967] sm:$0xf]
    %v2969 = vld [vmem:[#allocation2] sm:$0xff]
    %v2970 = vld [vmem:[#allocation2 + $0x8] sm:$0xff]
    %v2971 = vld [vmem:[#allocation2 + $0x10] sm:$0xff]
    %v2972 = vld [vmem:[#allocation2 + $0x18] sm:$0xff]
    %v2973 = vld [vmem:[#allocation2 + $0x20] sm:$0xff]
    %v2974 = vld [vmem:[#allocation2 + $0x28] sm:$0xff]
    %v2975 = vld [vmem:[#allocation2 + $0x30] sm:$0xff]
    %v2976 = vld [vmem:[#allocation2 + $0x38] sm:$0xff]
    %v2977 = vld [vmem:[#allocation2 + $0x40] sm:$0xff]
    %v2978 = vld [vmem:[#allocation2 + $0x48] sm:$0xff]
    %v2979 = vld [vmem:[#allocation2 + $0x50] sm:$0xff]
    %v2980 = vld [vmem:[#allocation2 + $0x58] sm:$0xff]
    %v2981 = vld [vmem:[#allocation2 + $0x60] sm:$0xff]
    %v2982 = vld [vmem:[#allocation2 + $0x68] sm:$0xff]
    %v2983 = vld [vmem:[#allocation2 + $0x70] sm:$0xff]
    %v2984 = vld [vmem:[#allocation2 + $0x78] sm:$0xff]
    %v2985 = vld [vmem:[#allocation2 + $0x80] sm:$0xff]
    %v2986 = vld [vmem:[#allocation2 + $0x88] sm:$0xff]
    %v2987 = vld [vmem:[#allocation2 + $0x90] sm:$0xff]
    %v2988 = vld [vmem:[#allocation2 + $0x98] sm:$0xff]
    %v2989 = vld [vmem:[#allocation2 + $0xa0] sm:$0xff]
    %v2990 = vld [vmem:[#allocation2 + $0xa8] sm:$0xff]
    %v2991 = vld [vmem:[#allocation2 + $0xb0] sm:$0xff]
    %v2992 = vld [vmem:[#allocation2 + $0xb8] sm:$0xff]
    %v2993 = vld [vmem:[#allocation2 + $0xc0] sm:$0xff]
    %v2994 = vld [vmem:[#allocation2 + $0xc8] sm:$0xff]
    %v2995 = vld [vmem:[#allocation2 + $0xd0] sm:$0xff]
    %v2996 = vld [vmem:[#allocation2 + $0xd8] sm:$0xff]
    %v2997 = vld [vmem:[#allocation2 + $0xe0] sm:$0xff]
    %v2998 = vld [vmem:[#allocation2 + $0xe8] sm:$0xff]
    %v2999 = vld [vmem:[#allocation2 + $0xf0] sm:$0xff]
    %v3000 = vld [vmem:[#allocation2 + $0xf8] sm:$0xff]
    %v3001 = vld [vmem:[#allocation2 + $0x100] sm:$0xff]
    %v3002 = vld [vmem:[#allocation2 + $0x108] sm:$0xff]
    %v3003 = vld [vmem:[#allocation2 + $0x110] sm:$0xff]
    %v3004 = vld [vmem:[#allocation2 + $0x118] sm:$0xff]
    %v3005 = vld [vmem:[#allocation2 + $0x120] sm:$0xff]
    %v3006 = vld [vmem:[#allocation2 + $0x128] sm:$0xff]
    %v3007 = vld [vmem:[#allocation2 + $0x130] sm:$0xff]
    %v3008 = vld [vmem:[#allocation2 + $0x138] sm:$0xff]
    %v3049 = vunpack.c.l.b16 %v2969
    %v3050 = vunpack.c.h.b16 %v2969
    %v3051 = vunpack.c.l.b16 %v2970
    %v3052 = vunpack.c.h.b16 %v2970
    %v3053 = vunpack.c.l.b16 %v2971
    %v3054 = vunpack.c.h.b16 %v2971
    %v3055 = vunpack.c.l.b16 %v2972
    %v3056 = vunpack.c.h.b16 %v2972
    %v3057 = vunpack.c.l.b16 %v2973
    %v3058 = vunpack.c.h.b16 %v2973
    %v3059 = vunpack.c.l.b16 %v2974
    %v3060 = vunpack.c.h.b16 %v2974
    %v3061 = vunpack.c.l.b16 %v2975
    %v3062 = vunpack.c.h.b16 %v2975
    %v3063 = vunpack.c.l.b16 %v2976
    %v3064 = vunpack.c.h.b16 %v2976
    %v3065 = vunpack.c.l.b16 %v2977
    %v3066 = vunpack.c.h.b16 %v2977
    %v3067 = vunpack.c.l.b16 %v2978
    %v3068 = vunpack.c.h.b16 %v2978
    %v3069 = vunpack.c.l.b16 %v2979
    %v3070 = vunpack.c.h.b16 %v2979
    %v3071 = vunpack.c.l.b16 %v2980
    %v3072 = vunpack.c.h.b16 %v2980
    %v3073 = vunpack.c.l.b16 %v2981
    %v3074 = vunpack.c.h.b16 %v2981
    %v3075 = vunpack.c.l.b16 %v2982
    %v3076 = vunpack.c.h.b16 %v2982
    %v3077 = vunpack.c.l.b16 %v2983
    %v3078 = vunpack.c.h.b16 %v2983
    %v3079 = vunpack.c.l.b16 %v2984
    %v3080 = vunpack.c.h.b16 %v2984
    %v3081 = vunpack.c.l.b16 %v2985
    %v3082 = vunpack.c.h.b16 %v2985
    %v3083 = vunpack.c.l.b16 %v2986
    %v3084 = vunpack.c.h.b16 %v2986
    %v3085 = vunpack.c.l.b16 %v2987
    %v3086 = vunpack.c.h.b16 %v2987
    %v3087 = vunpack.c.l.b16 %v2988
    %v3088 = vunpack.c.h.b16 %v2988
    %v3089 = vunpack.c.l.b16 %v2989
    %v3090 = vunpack.c.h.b16 %v2989
    %v3091 = vunpack.c.l.b16 %v2990
    %v3092 = vunpack.c.h.b16 %v2990
    %v3093 = vunpack.c.l.b16 %v2991
    %v3094 = vunpack.c.h.b16 %v2991
    %v3095 = vunpack.c.l.b16 %v2992
    %v3096 = vunpack.c.h.b16 %v2992
    %v3097 = vunpack.c.l.b16 %v2993
    %v3098 = vunpack.c.h.b16 %v2993
    %v3099 = vunpack.c.l.b16 %v2994
    %v3100 = vunpack.c.h.b16 %v2994
    %v3101 = vunpack.c.l.b16 %v2995
    %v3102 = vunpack.c.h.b16 %v2995
    %v3103 = vunpack.c.l.b16 %v2996
    %v3104 = vunpack.c.h.b16 %v2996
    %v3105 = vunpack.c.l.b16 %v2997
    %v3106 = vunpack.c.h.b16 %v2997
    %v3107 = vunpack.c.l.b16 %v2998
    %v3108 = vunpack.c.h.b16 %v2998
    %v3109 = vunpack.c.l.b16 %v2999
    %v3110 = vunpack.c.h.b16 %v2999
    %v3111 = vunpack.c.l.b16 %v3000
    %v3112 = vunpack.c.h.b16 %v3000
    %v3113 = vunpack.c.l.b16 %v3001
    %v3114 = vunpack.c.h.b16 %v3001
    %v3115 = vunpack.c.l.b16 %v3002
    %v3116 = vunpack.c.h.b16 %v3002
    %v3117 = vunpack.c.l.b16 %v3003
    %v3118 = vunpack.c.h.b16 %v3003
    %v3119 = vunpack.c.l.b16 %v3004
    %v3120 = vunpack.c.h.b16 %v3004
    %v3121 = vunpack.c.l.b16 %v3005
    %v3122 = vunpack.c.h.b16 %v3005
    %v3123 = vunpack.c.l.b16 %v3006
    %v3124 = vunpack.c.h.b16 %v3006
    %v3125 = vunpack.c.l.b16 %v3007
    %v3126 = vunpack.c.h.b16 %v3007
    %v3127 = vunpack.c.l.b16 %v3008
    %v3128 = vunpack.c.h.b16 %v3008
    %v3129 = vpack.c.b16 %v3057, %v3049
    %v3130 = vpack.c.b16 %v3058, %v3050
    %v3131 = vpack.c.b16 %v3059, %v3051
    %v3132 = vpack.c.b16 %v3060, %v3052
    %v3133 = vpack.c.b16 %v3061, %v3053
    %v3134 = vpack.c.b16 %v3062, %v3054
    %v3135 = vpack.c.b16 %v3063, %v3055
    %v3136 = vpack.c.b16 %v3064, %v3056
    %v3137 = vpack.c.b16 %v3073, %v3065
    %v3138 = vpack.c.b16 %v3074, %v3066
    %v3139 = vpack.c.b16 %v3075, %v3067
    %v3140 = vpack.c.b16 %v3076, %v3068
    %v3141 = vpack.c.b16 %v3077, %v3069
    %v3142 = vpack.c.b16 %v3078, %v3070
    %v3143 = vpack.c.b16 %v3079, %v3071
    %v3144 = vpack.c.b16 %v3080, %v3072
    %v3145 = vpack.c.b16 %v3089, %v3081
    %v3146 = vpack.c.b16 %v3090, %v3082
    %v3147 = vpack.c.b16 %v3091, %v3083
    %v3148 = vpack.c.b16 %v3092, %v3084
    %v3149 = vpack.c.b16 %v3093, %v3085
    %v3150 = vpack.c.b16 %v3094, %v3086
    %v3151 = vpack.c.b16 %v3095, %v3087
    %v3152 = vpack.c.b16 %v3096, %v3088
    %v3153 = vpack.c.b16 %v3105, %v3097
    %v3154 = vpack.c.b16 %v3106, %v3098
    %v3155 = vpack.c.b16 %v3107, %v3099
    %v3156 = vpack.c.b16 %v3108, %v3100
    %v3157 = vpack.c.b16 %v3109, %v3101
    %v3158 = vpack.c.b16 %v3110, %v3102
    %v3159 = vpack.c.b16 %v3111, %v3103
    %v3160 = vpack.c.b16 %v3112, %v3104
    %v3161 = vpack.c.b16 %v3121, %v3113
    %v3162 = vpack.c.b16 %v3122, %v3114
    %v3163 = vpack.c.b16 %v3123, %v3115
    %v3164 = vpack.c.b16 %v3124, %v3116
    %v3165 = vpack.c.b16 %v3125, %v3117
    %v3166 = vpack.c.b16 %v3126, %v3118
    %v3167 = vpack.c.b16 %v3127, %v3119
    %v3168 = vpack.c.b16 %v3128, %v3120
    %v3210 = vsel %vm615, %v2968, 0
    %3212 = vmatpush.bf16.msra.mxu0 0
    %3213 = vmatpush.bf16.msra.mxu0 0
    %3214 = vmatpush.bf16.msra.mxu0 0
    %3215 = vmatpush.bf16.msra.mxu0 %v3161
    %3216 = vmatpush.bf16.msra.mxu0 %v3153
    %3217 = vmatpush.bf16.msra.mxu0 %v3145
    %3218 = vmatpush.bf16.msra.mxu0 %v3137
    %3219 = vmatpush.bf16.msra.mxu0 %v3129
    %3220 = vmatmul.bf16.gmra.mxu0 %v3210
    %v3221 = vpop.f32.mrf.mxu0
    %v3222 = vadd.f32 0.0, %v3221
    %v3223 = vpop.f32.mrf.mxu0
    %3224 = vdwg.mxu0
    %3225 = vmatpush.bf16.msra.mxu0 0
    %3226 = vmatpush.bf16.msra.mxu0 0
    %3227 = vmatpush.bf16.msra.mxu0 0
    %3228 = vmatpush.bf16.msra.mxu0 %v3162
    %3229 = vmatpush.bf16.msra.mxu0 %v3154
    %3230 = vmatpush.bf16.msra.mxu0 %v3146
    %3231 = vmatpush.bf16.msra.mxu0 %v3138
    %3232 = vmatpush.bf16.msra.mxu0 %v3130
    %3233 = vmatmul.bf16.gmra.mxu0 %v3210
    %v3234 = vpop.f32.mrf.mxu0
    %v3235 = vadd.f32 0.0, %v3234
    %v3236 = vpop.f32.mrf.mxu0
    %3237 = vdwg.mxu0
    %3238 = vmatpush.bf16.msra.mxu0 0
    %3239 = vmatpush.bf16.msra.mxu0 0
    %3240 = vmatpush.bf16.msra.mxu0 0
    %3241 = vmatpush.bf16.msra.mxu0 %v3163
    %3242 = vmatpush.bf16.msra.mxu0 %v3155
    %3243 = vmatpush.bf16.msra.mxu0 %v3147
    %3244 = vmatpush.bf16.msra.mxu0 %v3139
    %3245 = vmatpush.bf16.msra.mxu0 %v3131
    %3246 = vmatmul.bf16.gmra.mxu0 %v3210
    %v3247 = vpop.f32.mrf.mxu0
    %v3248 = vadd.f32 0.0, %v3247
    %v3249 = vpop.f32.mrf.mxu0
    %3250 = vdwg.mxu0
    %3251 = vmatpush.bf16.msra.mxu0 0
    %3252 = vmatpush.bf16.msra.mxu0 0
    %3253 = vmatpush.bf16.msra.mxu0 0
    %3254 = vmatpush.bf16.msra.mxu0 %v3164
    %3255 = vmatpush.bf16.msra.mxu0 %v3156
    %3256 = vmatpush.bf16.msra.mxu0 %v3148
    %3257 = vmatpush.bf16.msra.mxu0 %v3140
    %3258 = vmatpush.bf16.msra.mxu0 %v3132
    %3259 = vmatmul.bf16.gmra.mxu0 %v3210
    %v3260 = vpop.f32.mrf.mxu0
    %v3261 = vadd.f32 0.0, %v3260
    %v3262 = vpop.f32.mrf.mxu0
    %3263 = vdwg.mxu0
    %3264 = vmatpush.bf16.msra.mxu0 0
    %3265 = vmatpush.bf16.msra.mxu0 0
    %3266 = vmatpush.bf16.msra.mxu0 0
    %3267 = vmatpush.bf16.msra.mxu0 %v3165
    %3268 = vmatpush.bf16.msra.mxu0 %v3157
    %3269 = vmatpush.bf16.msra.mxu0 %v3149
    %3270 = vmatpush.bf16.msra.mxu0 %v3141
    %3271 = vmatpush.bf16.msra.mxu0 %v3133
    %3272 = vmatmul.bf16.gmra.mxu0 %v3210
    %v3273 = vpop.f32.mrf.mxu0
    %v3274 = vadd.f32 0.0, %v3273
    %v3275 = vpop.f32.mrf.mxu0
    %3276 = vdwg.mxu0
    %3277 = vmatpush.bf16.msra.mxu0 0
    %3278 = vmatpush.bf16.msra.mxu0 0
    %3279 = vmatpush.bf16.msra.mxu0 0
    %3280 = vmatpush.bf16.msra.mxu0 %v3166
    %3281 = vmatpush.bf16.msra.mxu0 %v3158
    %3282 = vmatpush.bf16.msra.mxu0 %v3150
    %3283 = vmatpush.bf16.msra.mxu0 %v3142
    %3284 = vmatpush.bf16.msra.mxu0 %v3134
    %3285 = vmatmul.bf16.gmra.mxu0 %v3210
    %v3286 = vpop.f32.mrf.mxu0
    %v3287 = vadd.f32 0.0, %v3286
    %v3288 = vpop.f32.mrf.mxu0
    %3289 = vdwg.mxu0
    %3290 = vmatpush.bf16.msra.mxu0 0
    %3291 = vmatpush.bf16.msra.mxu0 0
    %3292 = vmatpush.bf16.msra.mxu0 0
    %3293 = vmatpush.bf16.msra.mxu0 %v3167
    %3294 = vmatpush.bf16.msra.mxu0 %v3159
    %3295 = vmatpush.bf16.msra.mxu0 %v3151
    %3296 = vmatpush.bf16.msra.mxu0 %v3143
    %3297 = vmatpush.bf16.msra.mxu0 %v3135
    %3298 = vmatmul.bf16.gmra.mxu0 %v3210
    %v3299 = vpop.f32.mrf.mxu0
    %v3300 = vadd.f32 0.0, %v3299
    %v3301 = vpop.f32.mrf.mxu0
    %3302 = vdwg.mxu0
    %3303 = vmatpush.bf16.msra.mxu0 0
    %3304 = vmatpush.bf16.msra.mxu0 0
    %3305 = vmatpush.bf16.msra.mxu0 0
    %3306 = vmatpush.bf16.msra.mxu0 %v3168
    %3307 = vmatpush.bf16.msra.mxu0 %v3160
    %3308 = vmatpush.bf16.msra.mxu0 %v3152
    %3309 = vmatpush.bf16.msra.mxu0 %v3144
    %3310 = vmatpush.bf16.msra.mxu0 %v3136
    %3311 = vmatmul.bf16.gmra.mxu0 %v3210
    %v3312 = vpop.f32.mrf.mxu0
    %v3313 = vadd.f32 0.0, %v3312
    %v3314 = vpop.f32.mrf.mxu0
    %3315 = vdwg.mxu0
    %v3316 = vadd.f32 %v2959, %v3222
    %v3317 = vadd.f32 %v2960, %v3235
    %v3318 = vadd.f32 %v2961, %v3248
    %v3319 = vadd.f32 %v2962, %v3261
    %v3320 = vadd.f32 %v2963, %v3274
    %v3321 = vadd.f32 %v2964, %v3287
    %v3322 = vadd.f32 %v2965, %v3300
    %v3323 = vadd.f32 %v2966, %v3313
    %v3324 = vmul.f32 %v3316, 0.5
    %v3325 = vmul.f32 %v3317, 0.5
    %v3326 = vmul.f32 %v3318, 0.5
    %v3327 = vmul.f32 %v3319, 0.5
    %v3328 = vmul.f32 %v3320, 0.5
    %v3329 = vmul.f32 %v3321, 0.5
    %v3330 = vmul.f32 %v3322, 0.5
    %v3331 = vmul.f32 %v3323, 0.5
    %v3332 = vmul.f32 %v3316, 0.70710677
    %v3333 = vmul.f32 %v3317, 0.70710677
    %v3334 = vmul.f32 %v3318, 0.70710677
    %v3335 = vmul.f32 %v3319, 0.70710677
    %v3336 = vmul.f32 %v3320, 0.70710677
    %v3337 = vmul.f32 %v3321, 0.70710677
    %v3338 = vmul.f32 %v3322, 0.70710677
    %v3339 = vmul.f32 %v3323, 0.70710677
    %vm3340 = vcmp.lt.f32.partialorder %v3332, 0.0
    %vm3341 = vcmp.lt.f32.partialorder %v3333, 0.0
    %vm3342 = vcmp.lt.f32.partialorder %v3334, 0.0
    %vm3343 = vcmp.lt.f32.partialorder %v3335, 0.0
    %vm3344 = vcmp.lt.f32.partialorder %v3336, 0.0
    %vm3345 = vcmp.lt.f32.partialorder %v3337, 0.0
    %vm3346 = vcmp.lt.f32.partialorder %v3338, 0.0
    %vm3347 = vcmp.lt.f32.partialorder %v3339, 0.0
    %v3348 = vsel %vm3340, -1.0, 1.0
    %v3349 = vsel %vm3341, -1.0, 1.0
    %v3350 = vsel %vm3342, -1.0, 1.0
    %v3351 = vsel %vm3343, -1.0, 1.0
    %v3352 = vsel %vm3344, -1.0, 1.0
    %v3353 = vsel %vm3345, -1.0, 1.0
    %v3354 = vsel %vm3346, -1.0, 1.0
    %v3355 = vsel %vm3347, -1.0, 1.0
    %v3356 = vand.u32 2147483647, %v3332
    %v3357 = vand.u32 2147483647, %v3333
    %v3358 = vand.u32 2147483647, %v3334
    %v3359 = vand.u32 2147483647, %v3335
    %v3360 = vand.u32 2147483647, %v3336
    %v3361 = vand.u32 2147483647, %v3337
    %v3362 = vand.u32 2147483647, %v3338
    %v3363 = vand.u32 2147483647, %v3339
    %v3364 = vmul.f32 %v3356, 0.3275911
    %v3365 = vmul.f32 %v3357, 0.3275911
    %v3366 = vmul.f32 %v3358, 0.3275911
    %v3367 = vmul.f32 %v3359, 0.3275911
    %v3368 = vmul.f32 %v3360, 0.3275911
    %v3369 = vmul.f32 %v3361, 0.3275911
    %v3370 = vmul.f32 %v3362, 0.3275911
    %v3371 = vmul.f32 %v3363, 0.3275911
    %v3372 = vadd.f32 %v3364, 1.0
    %v3373 = vadd.f32 %v3365, 1.0
    %v3374 = vadd.f32 %v3366, 1.0
    %v3375 = vadd.f32 %v3367, 1.0
    %v3376 = vadd.f32 %v3368, 1.0
    %v3377 = vadd.f32 %v3369, 1.0
    %v3378 = vadd.f32 %v3370, 1.0
    %v3379 = vadd.f32 %v3371, 1.0
    %v3380 = vrcp.pop %v3372
    %v3381 = vrcp.pop %v3373
    %v3382 = vrcp.pop %v3374
    %v3383 = vrcp.pop %v3375
    %v3384 = vrcp.pop %v3376
    %v3385 = vrcp.pop %v3377
    %v3386 = vrcp.pop %v3378
    %v3387 = vrcp.pop %v3379
    %v3388 = vmul.f32 %v3380, 1.0614054
    %v3389 = vmul.f32 %v3381, 1.0614054
    %v3390 = vmul.f32 %v3382, 1.0614054
    %v3391 = vmul.f32 %v3383, 1.0614054
    %v3392 = vmul.f32 %v3384, 1.0614054
    %v3393 = vmul.f32 %v3385, 1.0614054
    %v3394 = vmul.f32 %v3386, 1.0614054
    %v3395 = vmul.f32 %v3387, 1.0614054
    %v3396 = vadd.f32 %v3388, -1.4531521
    %v3397 = vadd.f32 %v3389, -1.4531521
    %v3398 = vadd.f32 %v3390, -1.4531521
    %v3399 = vadd.f32 %v3391, -1.4531521
    %v3400 = vadd.f32 %v3392, -1.4531521
    %v3401 = vadd.f32 %v3393, -1.4531521
    %v3402 = vadd.f32 %v3394, -1.4531521
    %v3403 = vadd.f32 %v3395, -1.4531521
    %v3404 = vmul.f32 %v3396, %v3380
    %v3405 = vmul.f32 %v3397, %v3381
    %v3406 = vmul.f32 %v3398, %v3382
    %v3407 = vmul.f32 %v3399, %v3383
    %v3408 = vmul.f32 %v3400, %v3384
    %v3409 = vmul.f32 %v3401, %v3385
    %v3410 = vmul.f32 %v3402, %v3386
    %v3411 = vmul.f32 %v3403, %v3387
    %v3412 = vadd.f32 %v3404, 1.4214138
    %v3413 = vadd.f32 %v3405, 1.4214138
    %v3414 = vadd.f32 %v3406, 1.4214138
    %v3415 = vadd.f32 %v3407, 1.4214138
    %v3416 = vadd.f32 %v3408, 1.4214138
    %v3417 = vadd.f32 %v3409, 1.4214138
    %v3418 = vadd.f32 %v3410, 1.4214138
    %v3419 = vadd.f32 %v3411, 1.4214138
    %v3420 = vmul.f32 %v3412, %v3380
    %v3421 = vmul.f32 %v3413, %v3381
    %v3422 = vmul.f32 %v3414, %v3382
    %v3423 = vmul.f32 %v3415, %v3383
    %v3424 = vmul.f32 %v3416, %v3384
    %v3425 = vmul.f32 %v3417, %v3385
    %v3426 = vmul.f32 %v3418, %v3386
    %v3427 = vmul.f32 %v3419, %v3387
    %v3428 = vadd.f32 %v3420, -0.28449672
    %v3429 = vadd.f32 %v3421, -0.28449672
    %v3430 = vadd.f32 %v3422, -0.28449672
    %v3431 = vadd.f32 %v3423, -0.28449672
    %v3432 = vadd.f32 %v3424, -0.28449672
    %v3433 = vadd.f32 %v3425, -0.28449672
    %v3434 = vadd.f32 %v3426, -0.28449672
    %v3435 = vadd.f32 %v3427, -0.28449672
    %v3436 = vmul.f32 %v3428, %v3380
    %v3437 = vmul.f32 %v3429, %v3381
    %v3438 = vmul.f32 %v3430, %v3382
    %v3439 = vmul.f32 %v3431, %v3383
    %v3440 = vmul.f32 %v3432, %v3384
    %v3441 = vmul.f32 %v3433, %v3385
    %v3442 = vmul.f32 %v3434, %v3386
    %v3443 = vmul.f32 %v3435, %v3387
    %v3444 = vadd.f32 %v3436, 0.2548296
    %v3445 = vadd.f32 %v3437, 0.2548296
    %v3446 = vadd.f32 %v3438, 0.2548296
    %v3447 = vadd.f32 %v3439, 0.2548296
    %v3448 = vadd.f32 %v3440, 0.2548296
    %v3449 = vadd.f32 %v3441, 0.2548296
    %v3450 = vadd.f32 %v3442, 0.2548296
    %v3451 = vadd.f32 %v3443, 0.2548296
    %v3452 = vmul.f32 %v3444, %v3380
    %v3453 = vmul.f32 %v3445, %v3381
    %v3454 = vmul.f32 %v3446, %v3382
    %v3455 = vmul.f32 %v3447, %v3383
    %v3456 = vmul.f32 %v3448, %v3384
    %v3457 = vmul.f32 %v3449, %v3385
    %v3458 = vmul.f32 %v3450, %v3386
    %v3459 = vmul.f32 %v3451, %v3387
    %v3460 = vsub.f32 0.0, %v3356
    %v3461 = vsub.f32 0.0, %v3357
    %v3462 = vsub.f32 0.0, %v3358
    %v3463 = vsub.f32 0.0, %v3359
    %v3464 = vsub.f32 0.0, %v3360
    %v3465 = vsub.f32 0.0, %v3361
    %v3466 = vsub.f32 0.0, %v3362
    %v3467 = vsub.f32 0.0, %v3363
    %v3468 = vmul.f32 %v3460, %v3356
    %v3469 = vmul.f32 %v3461, %v3357
    %v3470 = vmul.f32 %v3462, %v3358
    %v3471 = vmul.f32 %v3463, %v3359
    %v3472 = vmul.f32 %v3464, %v3360
    %v3473 = vmul.f32 %v3465, %v3361
    %v3474 = vmul.f32 %v3466, %v3362
    %v3475 = vmul.f32 %v3467, %v3363
    %v3476 = vmul.f32 %v3468, 1.442695
    %v3477 = vpow.pop %v3476
    %v3478 = vmul.f32 %v3469, 1.442695
    %v3479 = vpow.pop %v3478
    %v3480 = vmul.f32 %v3470, 1.442695
    %v3481 = vpow.pop %v3480
    %v3482 = vmul.f32 %v3471, 1.442695
    %v3483 = vpow.pop %v3482
    %v3484 = vmul.f32 %v3472, 1.442695
    %v3485 = vpow.pop %v3484
    %v3486 = vmul.f32 %v3473, 1.442695
    %v3487 = vpow.pop %v3486
    %v3488 = vmul.f32 %v3474, 1.442695
    %v3489 = vpow.pop %v3488
    %v3490 = vmul.f32 %v3475, 1.442695
    %v3491 = vpow.pop %v3490
    %v3492 = vmul.f32 %v3452, %v3477
    %v3493 = vmul.f32 %v3453, %v3479
    %v3494 = vmul.f32 %v3454, %v3481
    %v3495 = vmul.f32 %v3455, %v3483
    %v3496 = vmul.f32 %v3456, %v3485
    %v3497 = vmul.f32 %v3457, %v3487
    %v3498 = vmul.f32 %v3458, %v3489
    %v3499 = vmul.f32 %v3459, %v3491
    %v3500 = vsub.f32 1.0, %v3492
    %v3501 = vsub.f32 1.0, %v3493
    %v3502 = vsub.f32 1.0, %v3494
    %v3503 = vsub.f32 1.0, %v3495
    %v3504 = vsub.f32 1.0, %v3496
    %v3505 = vsub.f32 1.0, %v3497
    %v3506 = vsub.f32 1.0, %v3498
    %v3507 = vsub.f32 1.0, %v3499
    %v3508 = vmul.f32 %v3348, %v3500
    %v3509 = vmul.f32 %v3349, %v3501
    %v3510 = vmul.f32 %v3350, %v3502
    %v3511 = vmul.f32 %v3351, %v3503
    %v3512 = vmul.f32 %v3352, %v3504
    %v3513 = vmul.f32 %v3353, %v3505
    %v3514 = vmul.f32 %v3354, %v3506
    %v3515 = vmul.f32 %v3355, %v3507
    %v3516 = vadd.f32 %v3508, 1.0
    %v3517 = vadd.f32 %v3509, 1.0
    %v3518 = vadd.f32 %v3510, 1.0
    %v3519 = vadd.f32 %v3511, 1.0
    %v3520 = vadd.f32 %v3512, 1.0
    %v3521 = vadd.f32 %v3513, 1.0
    %v3522 = vadd.f32 %v3514, 1.0
    %v3523 = vadd.f32 %v3515, 1.0
    %v3524 = vmul.f32 %v3324, %v3516
    %v3525 = vmul.f32 %v3325, %v3517
    %v3526 = vmul.f32 %v3326, %v3518
    %v3527 = vmul.f32 %v3327, %v3519
    %v3528 = vmul.f32 %v3328, %v3520
    %v3529 = vmul.f32 %v3329, %v3521
    %v3530 = vmul.f32 %v3330, %v3522
    %v3531 = vmul.f32 %v3331, %v3523
    %v3532 = vld [vmem:[%s1822] sm:$0xff]
    %v3533 = vld [vmem:[%s1822 + $0x8] sm:$0xff]
    %v3534 = vld [vmem:[%s1822 + $0x10] sm:$0xff]
    %v3535 = vld [vmem:[%s1822 + $0x18] sm:$0xff]
    %v3536 = vld [vmem:[%s1822 + $0x20] sm:$0xff]
    %v3537 = vld [vmem:[%s1822 + $0x28] sm:$0xff]
    %v3538 = vld [vmem:[%s1822 + $0x30] sm:$0xff]
    %v3539 = vld [vmem:[%s1822 + $0x38] sm:$0xff]
    %v3540 = vmul.f32 %v3532, 0.1
    %v3541 = vmul.f32 %v3533, 0.1
    %v3542 = vmul.f32 %v3534, 0.1
    %v3543 = vmul.f32 %v3535, 0.1
    %v3544 = vmul.f32 %v3536, 0.1
    %v3545 = vmul.f32 %v3537, 0.1
    %v3546 = vmul.f32 %v3538, 0.1
    %v3547 = vmul.f32 %v3539, 0.1
    %v3548 = vadd.f32 %v3524, %v3540
    %v3549 = vadd.f32 %v3525, %v3541
    %v3550 = vadd.f32 %v3526, %v3542
    %v3551 = vadd.f32 %v3527, %v3543
    %v3552 = vadd.f32 %v3528, %v3544
    %v3553 = vadd.f32 %v3529, %v3545
    %v3554 = vadd.f32 %v3530, %v3546
    %v3555 = vadd.f32 %v3531, %v3547
    %3556 = vrot.lane.b32.xlu0 %v3548, 21
    %v3557 = vpop.permute.xlu0 %3556
    %3558 = vrot.lane.b32.xlu0 %v3549, 21
    %v3559 = vpop.permute.xlu0 %3558
    %3560 = vrot.lane.b32.xlu0 %v3550, 21
    %v3561 = vpop.permute.xlu0 %3560
    %3562 = vrot.lane.b32.xlu0 %v3551, 21
    %v3563 = vpop.permute.xlu0 %3562
    %3564 = vrot.lane.b32.xlu0 %v3552, 21
    %v3565 = vpop.permute.xlu0 %3564
    %3566 = vrot.lane.b32.xlu0 %v3553, 21
    %v3567 = vpop.permute.xlu0 %3566
    %3568 = vrot.lane.b32.xlu0 %v3554, 21
    %v3569 = vpop.permute.xlu0 %3568
    %3570 = vrot.lane.b32.xlu0 %v3555, 21
    %v3571 = vpop.permute.xlu0 %3570
    %v3572 = vsel %vm106, %v3569, %v3571
    %v3573 = vsel %vm106, %v3567, %v3569
    %v3574 = vsel %vm106, %v3565, %v3567
    %v3575 = vsel %vm106, %v3563, %v3565
    %v3576 = vsel %vm106, %v3561, %v3563
    %v3577 = vsel %vm106, %v3559, %v3561
    %v3578 = vsel %vm106, %v3557, %v3559
    %v3579 = vsel %vm106, %v3571, %v3557
    %3580 = vrot.lane.b32.xlu0 %v3548, 20
    %v3581 = vpop.permute.xlu0 %3580
    %3582 = vrot.lane.b32.xlu0 %v3549, 20
    %v3583 = vpop.permute.xlu0 %3582
    %3584 = vrot.lane.b32.xlu0 %v3550, 20
    %v3585 = vpop.permute.xlu0 %3584
    %3586 = vrot.lane.b32.xlu0 %v3551, 20
    %v3587 = vpop.permute.xlu0 %3586
    %3588 = vrot.lane.b32.xlu0 %v3552, 20
    %v3589 = vpop.permute.xlu0 %3588
    %3590 = vrot.lane.b32.xlu0 %v3553, 20
    %v3591 = vpop.permute.xlu0 %3590
    %3592 = vrot.lane.b32.xlu0 %v3554, 20
    %v3593 = vpop.permute.xlu0 %3592
    %3594 = vrot.lane.b32.xlu0 %v3555, 20
    %v3595 = vpop.permute.xlu0 %3594
    %v3596 = vsel %vm131, %v3593, %v3595
    %v3597 = vsel %vm131, %v3591, %v3593
    %v3598 = vsel %vm131, %v3589, %v3591
    %v3599 = vsel %vm131, %v3587, %v3589
    %v3600 = vsel %vm131, %v3585, %v3587
    %v3601 = vsel %vm131, %v3583, %v3585
    %v3602 = vsel %vm131, %v3581, %v3583
    %v3603 = vsel %vm131, %v3595, %v3581
    %v3604 = vpack.c.bf16 %v3578, %v3579
    %v3605 = vpack.c.bf16 %v3576, %v3577
    %v3606 = vpack.c.bf16 %v3574, %v3575
    %v3607 = vpack.c.bf16 %v3572, %v3573
    %v3608 = vpack.c.bf16 %v3602, %v3603
    %v3609 = vpack.c.bf16 %v3600, %v3601
    %v3610 = vpack.c.bf16 %v3598, %v3599
    %v3611 = vpack.c.bf16 %v3596, %v3597
    %3612 = vst [vmem:[#allocation2] sm:$0xff] %v3604
    %3613 = vst [vmem:[#allocation2 + $0x8] sm:$0xff] %v3605
    %3614 = vst [vmem:[#allocation2 + $0x10] sm:$0xff] %v3606
    %3615 = vst [vmem:[#allocation2 + $0x18] sm:$0xff] %v3607
    %3616 = vst [vmem:[#allocation2 + $0x20] sm:$0xff] %v3608
    %3617 = vst [vmem:[#allocation2 + $0x28] sm:$0xff] %v3609
    %3618 = vst [vmem:[#allocation2 + $0x30] sm:$0xff] %v3610
    %3619 = vst [vmem:[#allocation2 + $0x38] sm:$0xff] %v3611
    %3620 = vrot.lane.b32.xlu0 %v3548, 19
    %v3621 = vpop.permute.xlu0 %3620
    %3622 = vrot.lane.b32.xlu0 %v3549, 19
    %v3623 = vpop.permute.xlu0 %3622
    %3624 = vrot.lane.b32.xlu0 %v3550, 19
    %v3625 = vpop.permute.xlu0 %3624
    %3626 = vrot.lane.b32.xlu0 %v3551, 19
    %v3627 = vpop.permute.xlu0 %3626
    %3628 = vrot.lane.b32.xlu0 %v3552, 19
    %v3629 = vpop.permute.xlu0 %3628
    %3630 = vrot.lane.b32.xlu0 %v3553, 19
    %v3631 = vpop.permute.xlu0 %3630
    %3632 = vrot.lane.b32.xlu0 %v3554, 19
    %v3633 = vpop.permute.xlu0 %3632
    %3634 = vrot.lane.b32.xlu0 %v3555, 19
    %v3635 = vpop.permute.xlu0 %3634
    %v3636 = vsel %vm172, %v3633, %v3635
    %v3637 = vsel %vm172, %v3631, %v3633
    %v3638 = vsel %vm172, %v3629, %v3631
    %v3639 = vsel %vm172, %v3627, %v3629
    %v3640 = vsel %vm172, %v3625, %v3627
    %v3641 = vsel %vm172, %v3623, %v3625
    %v3642 = vsel %vm172, %v3621, %v3623
    %v3643 = vsel %vm172, %v3635, %v3621
    %3644 = vrot.lane.b32.xlu0 %v3548, 1
    %v3645 = vpop.permute.xlu0 %3644
    %3646 = vrot.lane.b32.xlu0 %v3549, 1
    %v3647 = vpop.permute.xlu0 %3646
    %3648 = vrot.lane.b32.xlu0 %v3550, 1
    %v3649 = vpop.permute.xlu0 %3648
    %3650 = vrot.lane.b32.xlu0 %v3551, 1
    %v3651 = vpop.permute.xlu0 %3650
    %3652 = vrot.lane.b32.xlu0 %v3552, 1
    %v3653 = vpop.permute.xlu0 %3652
    %3654 = vrot.lane.b32.xlu0 %v3553, 1
    %v3655 = vpop.permute.xlu0 %3654
    %3656 = vrot.lane.b32.xlu0 %v3554, 1
    %v3657 = vpop.permute.xlu0 %3656
    %3658 = vrot.lane.b32.xlu0 %v3555, 1
    %v3659 = vpop.permute.xlu0 %3658
    %v3660 = vsel %vm197, %v3657, %v3659
    %v3661 = vsel %vm197, %v3655, %v3657
    %v3662 = vsel %vm197, %v3653, %v3655
    %v3663 = vsel %vm197, %v3651, %v3653
    %v3664 = vsel %vm197, %v3649, %v3651
    %v3665 = vsel %vm197, %v3647, %v3649
    %v3666 = vsel %vm197, %v3645, %v3647
    %v3667 = vsel %vm197, %v3659, %v3645
    %v3668 = vpack.c.bf16 %v3642, %v3643
    %v3669 = vpack.c.bf16 %v3640, %v3641
    %v3670 = vpack.c.bf16 %v3638, %v3639
    %v3671 = vpack.c.bf16 %v3636, %v3637
    %v3672 = vpack.c.bf16 %v3666, %v3667
    %v3673 = vpack.c.bf16 %v3664, %v3665
    %v3674 = vpack.c.bf16 %v3662, %v3663
    %v3675 = vpack.c.bf16 %v3660, %v3661
    %3676 = vst [vmem:[#allocation2 + $0x40] sm:$0xff] %v3668
    %3677 = vst [vmem:[#allocation2 + $0x48] sm:$0xff] %v3669
    %3678 = vst [vmem:[#allocation2 + $0x50] sm:$0xff] %v3670
    %3679 = vst [vmem:[#allocation2 + $0x58] sm:$0xff] %v3671
    %3680 = vst [vmem:[#allocation2 + $0x60] sm:$0xff] %v3672
    %3681 = vst [vmem:[#allocation2 + $0x68] sm:$0xff] %v3673
    %3682 = vst [vmem:[#allocation2 + $0x70] sm:$0xff] %v3674
    %3683 = vst [vmem:[#allocation2 + $0x78] sm:$0xff] %v3675
    %3684 = vrot.lane.b32.xlu0 %v3548, 127
    %v3685 = vpop.permute.xlu0 %3684
    %3686 = vrot.lane.b32.xlu0 %v3549, 127
    %v3687 = vpop.permute.xlu0 %3686
    %3688 = vrot.lane.b32.xlu0 %v3550, 127
    %v3689 = vpop.permute.xlu0 %3688
    %3690 = vrot.lane.b32.xlu0 %v3551, 127
    %v3691 = vpop.permute.xlu0 %3690
    %3692 = vrot.lane.b32.xlu0 %v3552, 127
    %v3693 = vpop.permute.xlu0 %3692
    %3694 = vrot.lane.b32.xlu0 %v3553, 127
    %v3695 = vpop.permute.xlu0 %3694
    %3696 = vrot.lane.b32.xlu0 %v3554, 127
    %v3697 = vpop.permute.xlu0 %3696
    %3698 = vrot.lane.b32.xlu0 %v3555, 127
    %v3699 = vpop.permute.xlu0 %3698
    %v3700 = vsel %vm238, %v3697, %v3699
    %v3701 = vsel %vm238, %v3695, %v3697
    %v3702 = vsel %vm238, %v3693, %v3695
    %v3703 = vsel %vm238, %v3691, %v3693
    %v3704 = vsel %vm238, %v3689, %v3691
    %v3705 = vsel %vm238, %v3687, %v3689
    %v3706 = vsel %vm238, %v3685, %v3687
    %v3707 = vsel %vm238, %v3699, %v3685
    %v3708 = vpack.c.bf16 %v3549, %v3548
    %v3709 = vpack.c.bf16 %v3551, %v3550
    %v3710 = vpack.c.bf16 %v3553, %v3552
    %v3711 = vpack.c.bf16 %v3555, %v3554
    %v3712 = vpack.c.bf16 %v3705, %v3706
    %v3713 = vpack.c.bf16 %v3703, %v3704
    %v3714 = vpack.c.bf16 %v3701, %v3702
    %v3715 = vpack.c.bf16 %v3707, %v3700
    %3716 = vst [vmem:[#allocation2 + $0x80] sm:$0xff] %v3708
    %3717 = vst [vmem:[#allocation2 + $0x88] sm:$0xff] %v3709
    %3718 = vst [vmem:[#allocation2 + $0x90] sm:$0xff] %v3710
    %3719 = vst [vmem:[#allocation2 + $0x98] sm:$0xff] %v3711
    %3720 = vst [vmem:[#allocation2 + $0xa0] sm:$0xff] %v3712
    %3721 = vst [vmem:[#allocation2 + $0xa8] sm:$0xff] %v3713
    %3722 = vst [vmem:[#allocation2 + $0xb0] sm:$0xff] %v3714
    %3723 = vst [vmem:[#allocation2 + $0xb8] sm:$0xff] %v3715
    %3724 = vrot.lane.b32.xlu0 %v3548, 109
    %v3725 = vpop.permute.xlu0 %3724
    %3726 = vrot.lane.b32.xlu0 %v3549, 109
    %v3727 = vpop.permute.xlu0 %3726
    %3728 = vrot.lane.b32.xlu0 %v3550, 109
    %v3729 = vpop.permute.xlu0 %3728
    %3730 = vrot.lane.b32.xlu0 %v3551, 109
    %v3731 = vpop.permute.xlu0 %3730
    %3732 = vrot.lane.b32.xlu0 %v3552, 109
    %v3733 = vpop.permute.xlu0 %3732
    %3734 = vrot.lane.b32.xlu0 %v3553, 109
    %v3735 = vpop.permute.xlu0 %3734
    %3736 = vrot.lane.b32.xlu0 %v3554, 109
    %v3737 = vpop.permute.xlu0 %3736
    %3738 = vrot.lane.b32.xlu0 %v3555, 109
    %v3739 = vpop.permute.xlu0 %3738
    %v3740 = vsel %vm279, %v3737, %v3739
    %v3741 = vsel %vm279, %v3735, %v3737
    %v3742 = vsel %vm279, %v3733, %v3735
    %v3743 = vsel %vm279, %v3731, %v3733
    %v3744 = vsel %vm279, %v3729, %v3731
    %v3745 = vsel %vm279, %v3727, %v3729
    %v3746 = vsel %vm279, %v3725, %v3727
    %v3747 = vsel %vm279, %v3739, %v3725
    %3748 = vrot.lane.b32.xlu0 %v3548, 108
    %v3749 = vpop.permute.xlu0 %3748
    %3750 = vrot.lane.b32.xlu0 %v3549, 108
    %v3751 = vpop.permute.xlu0 %3750
    %3752 = vrot.lane.b32.xlu0 %v3550, 108
    %v3753 = vpop.permute.xlu0 %3752
    %3754 = vrot.lane.b32.xlu0 %v3551, 108
    %v3755 = vpop.permute.xlu0 %3754
    %3756 = vrot.lane.b32.xlu0 %v3552, 108
    %v3757 = vpop.permute.xlu0 %3756
    %3758 = vrot.lane.b32.xlu0 %v3553, 108
    %v3759 = vpop.permute.xlu0 %3758
    %3760 = vrot.lane.b32.xlu0 %v3554, 108
    %v3761 = vpop.permute.xlu0 %3760
    %3762 = vrot.lane.b32.xlu0 %v3555, 108
    %v3763 = vpop.permute.xlu0 %3762
    %v3764 = vsel %vm304, %v3761, %v3763
    %v3765 = vsel %vm304, %v3759, %v3761
    %v3766 = vsel %vm304, %v3757, %v3759
    %v3767 = vsel %vm304, %v3755, %v3757
    %v3768 = vsel %vm304, %v3753, %v3755
    %v3769 = vsel %vm304, %v3751, %v3753
    %v3770 = vsel %vm304, %v3749, %v3751
    %v3771 = vsel %vm304, %v3763, %v3749
    %v3772 = vpack.c.bf16 %v3745, %v3746
    %v3773 = vpack.c.bf16 %v3743, %v3744
    %v3774 = vpack.c.bf16 %v3741, %v3742
    %v3775 = vpack.c.bf16 %v3747, %v3740
    %v3776 = vpack.c.bf16 %v3769, %v3770
    %v3777 = vpack.c.bf16 %v3767, %v3768
    %v3778 = vpack.c.bf16 %v3765, %v3766
    %v3779 = vpack.c.bf16 %v3771, %v3764
    %3780 = vst [vmem:[#allocation2 + $0xc0] sm:$0xff] %v3772
    %3781 = vst [vmem:[#allocation2 + $0xc8] sm:$0xff] %v3773
    %3782 = vst [vmem:[#allocation2 + $0xd0] sm:$0xff] %v3774
    %3783 = vst [vmem:[#allocation2 + $0xd8] sm:$0xff] %v3775
    %3784 = vst [vmem:[#allocation2 + $0xe0] sm:$0xff] %v3776
    %3785 = vst [vmem:[#allocation2 + $0xe8] sm:$0xff] %v3777
    %3786 = vst [vmem:[#allocation2 + $0xf0] sm:$0xff] %v3778
    %3787 = vst [vmem:[#allocation2 + $0xf8] sm:$0xff] %v3779
    %3788 = vrot.lane.b32.xlu0 %v3548, 107
    %v3789 = vpop.permute.xlu0 %3788
    %3790 = vrot.lane.b32.xlu0 %v3549, 107
    %v3791 = vpop.permute.xlu0 %3790
    %3792 = vrot.lane.b32.xlu0 %v3550, 107
    %v3793 = vpop.permute.xlu0 %3792
    %3794 = vrot.lane.b32.xlu0 %v3551, 107
    %v3795 = vpop.permute.xlu0 %3794
    %3796 = vrot.lane.b32.xlu0 %v3552, 107
    %v3797 = vpop.permute.xlu0 %3796
    %3798 = vrot.lane.b32.xlu0 %v3553, 107
    %v3799 = vpop.permute.xlu0 %3798
    %3800 = vrot.lane.b32.xlu0 %v3554, 107
    %v3801 = vpop.permute.xlu0 %3800
    %3802 = vrot.lane.b32.xlu0 %v3555, 107
    %v3803 = vpop.permute.xlu0 %3802
    %v3804 = vsel %vm345, %v3801, %v3803
    %v3805 = vsel %vm345, %v3799, %v3801
    %v3806 = vsel %vm345, %v3797, %v3799
    %v3807 = vsel %vm345, %v3795, %v3797
    %v3808 = vsel %vm345, %v3793, %v3795
    %v3809 = vsel %vm345, %v3791, %v3793
    %v3810 = vsel %vm345, %v3789, %v3791
    %v3811 = vsel %vm345, %v3803, %v3789
    %v3812 = vpack.c.bf16 %v3809, %v3810
    %v3813 = vpack.c.bf16 %v3807, %v3808
    %v3814 = vpack.c.bf16 %v3805, %v3806
    %v3815 = vpack.c.bf16 %v3811, %v3804
    %3816 = vst [vmem:[#allocation2 + $0x100] sm:$0xff] %v3812
    %3817 = vst [vmem:[#allocation2 + $0x108] sm:$0xff] %v3813
    %3818 = vst [vmem:[#allocation2 + $0x110] sm:$0xff] %v3814
    %3819 = vst [vmem:[#allocation2 + $0x118] sm:$0xff] %v3815
    %3820 = vst [vmem:[#allocation2 + $0x120] sm:$0xff] %v3708
    %3821 = vst [vmem:[#allocation2 + $0x128] sm:$0xff] %v3709
    %3822 = vst [vmem:[#allocation2 + $0x130] sm:$0xff] %v3710
    %3823 = vst [vmem:[#allocation2 + $0x138] sm:$0xff] %v3711
    %s3824 = scalar_lea.vmem [#allocation9], 256
    %v3825 = vld [vmem:[%s3824] sm:$0xff]
    %v3826 = vld [vmem:[%s3824 + $0x8] sm:$0xff]
    %v3827 = vld [vmem:[%s3824 + $0x10] sm:$0xff]
    %v3828 = vld [vmem:[%s3824 + $0x18] sm:$0xff]
    %v3829 = vld [vmem:[%s3824 + $0x20] sm:$0xff]
    %v3830 = vld [vmem:[%s3824 + $0x28] sm:$0xff]
    %v3831 = vld [vmem:[%s3824 + $0x30] sm:$0xff]
    %v3832 = vld [vmem:[%s3824 + $0x38] sm:$0xff]
    %s3833 = scalar_lea.vmem [#allocation7], 16
    %v3834 = vld [vmem:[%s3833] sm:$0xf]
    %v3835 = vld [vmem:[#allocation2] sm:$0xff]
    %v3836 = vld [vmem:[#allocation2 + $0x8] sm:$0xff]
    %v3837 = vld [vmem:[#allocation2 + $0x10] sm:$0xff]
    %v3838 = vld [vmem:[#allocation2 + $0x18] sm:$0xff]
    %v3839 = vld [vmem:[#allocation2 + $0x20] sm:$0xff]
    %v3840 = vld [vmem:[#allocation2 + $0x28] sm:$0xff]
    %v3841 = vld [vmem:[#allocation2 + $0x30] sm:$0xff]
    %v3842 = vld [vmem:[#allocation2 + $0x38] sm:$0xff]
    %v3843 = vld [vmem:[#allocation2 + $0x40] sm:$0xff]
    %v3844 = vld [vmem:[#allocation2 + $0x48] sm:$0xff]
    %v3845 = vld [vmem:[#allocation2 + $0x50] sm:$0xff]
    %v3846 = vld [vmem:[#allocation2 + $0x58] sm:$0xff]
    %v3847 = vld [vmem:[#allocation2 + $0x60] sm:$0xff]
    %v3848 = vld [vmem:[#allocation2 + $0x68] sm:$0xff]
    %v3849 = vld [vmem:[#allocation2 + $0x70] sm:$0xff]
    %v3850 = vld [vmem:[#allocation2 + $0x78] sm:$0xff]
    %v3851 = vld [vmem:[#allocation2 + $0x80] sm:$0xff]
    %v3852 = vld [vmem:[#allocation2 + $0x88] sm:$0xff]
    %v3853 = vld [vmem:[#allocation2 + $0x90] sm:$0xff]
    %v3854 = vld [vmem:[#allocation2 + $0x98] sm:$0xff]
    %v3855 = vld [vmem:[#allocation2 + $0xa0] sm:$0xff]
    %v3856 = vld [vmem:[#allocation2 + $0xa8] sm:$0xff]
    %v3857 = vld [vmem:[#allocation2 + $0xb0] sm:$0xff]
    %v3858 = vld [vmem:[#allocation2 + $0xb8] sm:$0xff]
    %v3859 = vld [vmem:[#allocation2 + $0xc0] sm:$0xff]
    %v3860 = vld [vmem:[#allocation2 + $0xc8] sm:$0xff]
    %v3861 = vld [vmem:[#allocation2 + $0xd0] sm:$0xff]
    %v3862 = vld [vmem:[#allocation2 + $0xd8] sm:$0xff]
    %v3863 = vld [vmem:[#allocation2 + $0xe0] sm:$0xff]
    %v3864 = vld [vmem:[#allocation2 + $0xe8] sm:$0xff]
    %v3865 = vld [vmem:[#allocation2 + $0xf0] sm:$0xff]
    %v3866 = vld [vmem:[#allocation2 + $0xf8] sm:$0xff]
    %v3867 = vld [vmem:[#allocation2 + $0x100] sm:$0xff]
    %v3868 = vld [vmem:[#allocation2 + $0x108] sm:$0xff]
    %v3869 = vld [vmem:[#allocation2 + $0x110] sm:$0xff]
    %v3870 = vld [vmem:[#allocation2 + $0x118] sm:$0xff]
    %v3871 = vld [vmem:[#allocation2 + $0x120] sm:$0xff]
    %v3872 = vld [vmem:[#allocation2 + $0x128] sm:$0xff]
    %v3873 = vld [vmem:[#allocation2 + $0x130] sm:$0xff]
    %v3874 = vld [vmem:[#allocation2 + $0x138] sm:$0xff]
    %v3915 = vunpack.c.l.b16 %v3835
    %v3916 = vunpack.c.h.b16 %v3835
    %v3917 = vunpack.c.l.b16 %v3836
    %v3918 = vunpack.c.h.b16 %v3836
    %v3919 = vunpack.c.l.b16 %v3837
    %v3920 = vunpack.c.h.b16 %v3837
    %v3921 = vunpack.c.l.b16 %v3838
    %v3922 = vunpack.c.h.b16 %v3838
    %v3923 = vunpack.c.l.b16 %v3839
    %v3924 = vunpack.c.h.b16 %v3839
    %v3925 = vunpack.c.l.b16 %v3840
    %v3926 = vunpack.c.h.b16 %v3840
    %v3927 = vunpack.c.l.b16 %v3841
    %v3928 = vunpack.c.h.b16 %v3841
    %v3929 = vunpack.c.l.b16 %v3842
    %v3930 = vunpack.c.h.b16 %v3842
    %v3931 = vunpack.c.l.b16 %v3843
    %v3932 = vunpack.c.h.b16 %v3843
    %v3933 = vunpack.c.l.b16 %v3844
    %v3934 = vunpack.c.h.b16 %v3844
    %v3935 = vunpack.c.l.b16 %v3845
    %v3936 = vunpack.c.h.b16 %v3845
    %v3937 = vunpack.c.l.b16 %v3846
    %v3938 = vunpack.c.h.b16 %v3846
    %v3939 = vunpack.c.l.b16 %v3847
    %v3940 = vunpack.c.h.b16 %v3847
    %v3941 = vunpack.c.l.b16 %v3848
    %v3942 = vunpack.c.h.b16 %v3848
    %v3943 = vunpack.c.l.b16 %v3849
    %v3944 = vunpack.c.h.b16 %v3849
    %v3945 = vunpack.c.l.b16 %v3850
    %v3946 = vunpack.c.h.b16 %v3850
    %v3947 = vunpack.c.l.b16 %v3851
    %v3948 = vunpack.c.h.b16 %v3851
    %v3949 = vunpack.c.l.b16 %v3852
    %v3950 = vunpack.c.h.b16 %v3852
    %v3951 = vunpack.c.l.b16 %v3853
    %v3952 = vunpack.c.h.b16 %v3853
    %v3953 = vunpack.c.l.b16 %v3854
    %v3954 = vunpack.c.h.b16 %v3854
    %v3955 = vunpack.c.l.b16 %v3855
    %v3956 = vunpack.c.h.b16 %v3855
    %v3957 = vunpack.c.l.b16 %v3856
    %v3958 = vunpack.c.h.b16 %v3856
    %v3959 = vunpack.c.l.b16 %v3857
    %v3960 = vunpack.c.h.b16 %v3857
    %v3961 = vunpack.c.l.b16 %v3858
    %v3962 = vunpack.c.h.b16 %v3858
    %v3963 = vunpack.c.l.b16 %v3859
    %v3964 = vunpack.c.h.b16 %v3859
    %v3965 = vunpack.c.l.b16 %v3860
    %v3966 = vunpack.c.h.b16 %v3860
    %v3967 = vunpack.c.l.b16 %v3861
    %v3968 = vunpack.c.h.b16 %v3861
    %v3969 = vunpack.c.l.b16 %v3862
    %v3970 = vunpack.c.h.b16 %v3862
    %v3971 = vunpack.c.l.b16 %v3863
    %v3972 = vunpack.c.h.b16 %v3863
    %v3973 = vunpack.c.l.b16 %v3864
    %v3974 = vunpack.c.h.b16 %v3864
    %v3975 = vunpack.c.l.b16 %v3865
    %v3976 = vunpack.c.h.b16 %v3865
    %v3977 = vunpack.c.l.b16 %v3866
    %v3978 = vunpack.c.h.b16 %v3866
    %v3979 = vunpack.c.l.b16 %v3867
    %v3980 = vunpack.c.h.b16 %v3867
    %v3981 = vunpack.c.l.b16 %v3868
    %v3982 = vunpack.c.h.b16 %v3868
    %v3983 = vunpack.c.l.b16 %v3869
    %v3984 = vunpack.c.h.b16 %v3869
    %v3985 = vunpack.c.l.b16 %v3870
    %v3986 = vunpack.c.h.b16 %v3870
    %v3987 = vunpack.c.l.b16 %v3871
    %v3988 = vunpack.c.h.b16 %v3871
    %v3989 = vunpack.c.l.b16 %v3872
    %v3990 = vunpack.c.h.b16 %v3872
    %v3991 = vunpack.c.l.b16 %v3873
    %v3992 = vunpack.c.h.b16 %v3873
    %v3993 = vunpack.c.l.b16 %v3874
    %v3994 = vunpack.c.h.b16 %v3874
    %v3995 = vpack.c.b16 %v3923, %v3915
    %v3996 = vpack.c.b16 %v3924, %v3916
    %v3997 = vpack.c.b16 %v3925, %v3917
    %v3998 = vpack.c.b16 %v3926, %v3918
    %v3999 = vpack.c.b16 %v3927, %v3919
    %v4000 = vpack.c.b16 %v3928, %v3920
    %v4001 = vpack.c.b16 %v3929, %v3921
    %v4002 = vpack.c.b16 %v3930, %v3922
    %v4003 = vpack.c.b16 %v3939, %v3931
    %v4004 = vpack.c.b16 %v3940, %v3932
    %v4005 = vpack.c.b16 %v3941, %v3933
    %v4006 = vpack.c.b16 %v3942, %v3934
    %v4007 = vpack.c.b16 %v3943, %v3935
    %v4008 = vpack.c.b16 %v3944, %v3936
    %v4009 = vpack.c.b16 %v3945, %v3937
    %v4010 = vpack.c.b16 %v3946, %v3938
    %v4011 = vpack.c.b16 %v3955, %v3947
    %v4012 = vpack.c.b16 %v3956, %v3948
    %v4013 = vpack.c.b16 %v3957, %v3949
    %v4014 = vpack.c.b16 %v3958, %v3950
    %v4015 = vpack.c.b16 %v3959, %v3951
    %v4016 = vpack.c.b16 %v3960, %v3952
    %v4017 = vpack.c.b16 %v3961, %v3953
    %v4018 = vpack.c.b16 %v3962, %v3954
    %v4019 = vpack.c.b16 %v3971, %v3963
    %v4020 = vpack.c.b16 %v3972, %v3964
    %v4021 = vpack.c.b16 %v3973, %v3965
    %v4022 = vpack.c.b16 %v3974, %v3966
    %v4023 = vpack.c.b16 %v3975, %v3967
    %v4024 = vpack.c.b16 %v3976, %v3968
    %v4025 = vpack.c.b16 %v3977, %v3969
    %v4026 = vpack.c.b16 %v3978, %v3970
    %v4027 = vpack.c.b16 %v3987, %v3979
    %v4028 = vpack.c.b16 %v3988, %v3980
    %v4029 = vpack.c.b16 %v3989, %v3981
    %v4030 = vpack.c.b16 %v3990, %v3982
    %v4031 = vpack.c.b16 %v3991, %v3983
    %v4032 = vpack.c.b16 %v3992, %v3984
    %v4033 = vpack.c.b16 %v3993, %v3985
    %v4034 = vpack.c.b16 %v3994, %v3986
    %v4076 = vsel %vm615, %v3834, 0
    %4078 = vmatpush.bf16.msra.mxu0 0
    %4079 = vmatpush.bf16.msra.mxu0 0
    %4080 = vmatpush.bf16.msra.mxu0 0
    %4081 = vmatpush.bf16.msra.mxu0 %v4027
    %4082 = vmatpush.bf16.msra.mxu0 %v4019
    %4083 = vmatpush.bf16.msra.mxu0 %v4011
    %4084 = vmatpush.bf16.msra.mxu0 %v4003
    %4085 = vmatpush.bf16.msra.mxu0 %v3995
    %4086 = vmatmul.bf16.gmra.mxu0 %v4076
    %v4087 = vpop.f32.mrf.mxu0
    %v4088 = vadd.f32 0.0, %v4087
    %v4089 = vpop.f32.mrf.mxu0
    %4090 = vdwg.mxu0
    %4091 = vmatpush.bf16.msra.mxu0 0
    %4092 = vmatpush.bf16.msra.mxu0 0
    %4093 = vmatpush.bf16.msra.mxu0 0
    %4094 = vmatpush.bf16.msra.mxu0 %v4028
    %4095 = vmatpush.bf16.msra.mxu0 %v4020
    %4096 = vmatpush.bf16.msra.mxu0 %v4012
    %4097 = vmatpush.bf16.msra.mxu0 %v4004
    %4098 = vmatpush.bf16.msra.mxu0 %v3996
    %4099 = vmatmul.bf16.gmra.mxu0 %v4076
    %v4100 = vpop.f32.mrf.mxu0
    %v4101 = vadd.f32 0.0, %v4100
    %v4102 = vpop.f32.mrf.mxu0
    %4103 = vdwg.mxu0
    %4104 = vmatpush.bf16.msra.mxu0 0
    %4105 = vmatpush.bf16.msra.mxu0 0
    %4106 = vmatpush.bf16.msra.mxu0 0
    %4107 = vmatpush.bf16.msra.mxu0 %v4029
    %4108 = vmatpush.bf16.msra.mxu0 %v4021
    %4109 = vmatpush.bf16.msra.mxu0 %v4013
    %4110 = vmatpush.bf16.msra.mxu0 %v4005
    %4111 = vmatpush.bf16.msra.mxu0 %v3997
    %4112 = vmatmul.bf16.gmra.mxu0 %v4076
    %v4113 = vpop.f32.mrf.mxu0
    %v4114 = vadd.f32 0.0, %v4113
    %v4115 = vpop.f32.mrf.mxu0
    %4116 = vdwg.mxu0
    %4117 = vmatpush.bf16.msra.mxu0 0
    %4118 = vmatpush.bf16.msra.mxu0 0
    %4119 = vmatpush.bf16.msra.mxu0 0
    %4120 = vmatpush.bf16.msra.mxu0 %v4030
    %4121 = vmatpush.bf16.msra.mxu0 %v4022
    %4122 = vmatpush.bf16.msra.mxu0 %v4014
    %4123 = vmatpush.bf16.msra.mxu0 %v4006
    %4124 = vmatpush.bf16.msra.mxu0 %v3998
    %4125 = vmatmul.bf16.gmra.mxu0 %v4076
    %v4126 = vpop.f32.mrf.mxu0
    %v4127 = vadd.f32 0.0, %v4126
    %v4128 = vpop.f32.mrf.mxu0
    %4129 = vdwg.mxu0
    %4130 = vmatpush.bf16.msra.mxu0 0
    %4131 = vmatpush.bf16.msra.mxu0 0
    %4132 = vmatpush.bf16.msra.mxu0 0
    %4133 = vmatpush.bf16.msra.mxu0 %v4031
    %4134 = vmatpush.bf16.msra.mxu0 %v4023
    %4135 = vmatpush.bf16.msra.mxu0 %v4015
    %4136 = vmatpush.bf16.msra.mxu0 %v4007
    %4137 = vmatpush.bf16.msra.mxu0 %v3999
    %4138 = vmatmul.bf16.gmra.mxu0 %v4076
    %v4139 = vpop.f32.mrf.mxu0
    %v4140 = vadd.f32 0.0, %v4139
    %v4141 = vpop.f32.mrf.mxu0
    %4142 = vdwg.mxu0
    %4143 = vmatpush.bf16.msra.mxu0 0
    %4144 = vmatpush.bf16.msra.mxu0 0
    %4145 = vmatpush.bf16.msra.mxu0 0
    %4146 = vmatpush.bf16.msra.mxu0 %v4032
    %4147 = vmatpush.bf16.msra.mxu0 %v4024
    %4148 = vmatpush.bf16.msra.mxu0 %v4016
    %4149 = vmatpush.bf16.msra.mxu0 %v4008
    %4150 = vmatpush.bf16.msra.mxu0 %v4000
    %4151 = vmatmul.bf16.gmra.mxu0 %v4076
    %v4152 = vpop.f32.mrf.mxu0
    %v4153 = vadd.f32 0.0, %v4152
    %v4154 = vpop.f32.mrf.mxu0
    %4155 = vdwg.mxu0
    %4156 = vmatpush.bf16.msra.mxu0 0
    %4157 = vmatpush.bf16.msra.mxu0 0
    %4158 = vmatpush.bf16.msra.mxu0 0
    %4159 = vmatpush.bf16.msra.mxu0 %v4033
    %4160 = vmatpush.bf16.msra.mxu0 %v4025
    %4161 = vmatpush.bf16.msra.mxu0 %v4017
    %4162 = vmatpush.bf16.msra.mxu0 %v4009
    %4163 = vmatpush.bf16.msra.mxu0 %v4001
    %4164 = vmatmul.bf16.gmra.mxu0 %v4076
    %v4165 = vpop.f32.mrf.mxu0
    %v4166 = vadd.f32 0.0, %v4165
    %v4167 = vpop.f32.mrf.mxu0
    %4168 = vdwg.mxu0
    %4169 = vmatpush.bf16.msra.mxu0 0
    %4170 = vmatpush.bf16.msra.mxu0 0
    %4171 = vmatpush.bf16.msra.mxu0 0
    %4172 = vmatpush.bf16.msra.mxu0 %v4034
    %4173 = vmatpush.bf16.msra.mxu0 %v4026
    %4174 = vmatpush.bf16.msra.mxu0 %v4018
    %4175 = vmatpush.bf16.msra.mxu0 %v4010
    %4176 = vmatpush.bf16.msra.mxu0 %v4002
    %4177 = vmatmul.bf16.gmra.mxu0 %v4076
    %v4178 = vpop.f32.mrf.mxu0
    %v4179 = vadd.f32 0.0, %v4178
    %v4180 = vpop.f32.mrf.mxu0
    %4181 = vdwg.mxu0
    %v4182 = vadd.f32 %v3825, %v4088
    %v4183 = vadd.f32 %v3826, %v4101
    %v4184 = vadd.f32 %v3827, %v4114
    %v4185 = vadd.f32 %v3828, %v4127
    %v4186 = vadd.f32 %v3829, %v4140
    %v4187 = vadd.f32 %v3830, %v4153
    %v4188 = vadd.f32 %v3831, %v4166
    %v4189 = vadd.f32 %v3832, %v4179
    %v4190 = vmul.f32 %v4182, 0.5
    %v4191 = vmul.f32 %v4183, 0.5
    %v4192 = vmul.f32 %v4184, 0.5
    %v4193 = vmul.f32 %v4185, 0.5
    %v4194 = vmul.f32 %v4186, 0.5
    %v4195 = vmul.f32 %v4187, 0.5
    %v4196 = vmul.f32 %v4188, 0.5
    %v4197 = vmul.f32 %v4189, 0.5
    %v4198 = vmul.f32 %v4182, 0.70710677
    %v4199 = vmul.f32 %v4183, 0.70710677
    %v4200 = vmul.f32 %v4184, 0.70710677
    %v4201 = vmul.f32 %v4185, 0.70710677
    %v4202 = vmul.f32 %v4186, 0.70710677
    %v4203 = vmul.f32 %v4187, 0.70710677
    %v4204 = vmul.f32 %v4188, 0.70710677
    %v4205 = vmul.f32 %v4189, 0.70710677
    %vm4206 = vcmp.lt.f32.partialorder %v4198, 0.0
    %vm4207 = vcmp.lt.f32.partialorder %v4199, 0.0
    %vm4208 = vcmp.lt.f32.partialorder %v4200, 0.0
    %vm4209 = vcmp.lt.f32.partialorder %v4201, 0.0
    %vm4210 = vcmp.lt.f32.partialorder %v4202, 0.0
    %vm4211 = vcmp.lt.f32.partialorder %v4203, 0.0
    %vm4212 = vcmp.lt.f32.partialorder %v4204, 0.0
    %vm4213 = vcmp.lt.f32.partialorder %v4205, 0.0
    %v4214 = vsel %vm4206, -1.0, 1.0
    %v4215 = vsel %vm4207, -1.0, 1.0
    %v4216 = vsel %vm4208, -1.0, 1.0
    %v4217 = vsel %vm4209, -1.0, 1.0
    %v4218 = vsel %vm4210, -1.0, 1.0
    %v4219 = vsel %vm4211, -1.0, 1.0
    %v4220 = vsel %vm4212, -1.0, 1.0
    %v4221 = vsel %vm4213, -1.0, 1.0
    %v4222 = vand.u32 2147483647, %v4198
    %v4223 = vand.u32 2147483647, %v4199
    %v4224 = vand.u32 2147483647, %v4200
    %v4225 = vand.u32 2147483647, %v4201
    %v4226 = vand.u32 2147483647, %v4202
    %v4227 = vand.u32 2147483647, %v4203
    %v4228 = vand.u32 2147483647, %v4204
    %v4229 = vand.u32 2147483647, %v4205
    %v4230 = vmul.f32 %v4222, 0.3275911
    %v4231 = vmul.f32 %v4223, 0.3275911
    %v4232 = vmul.f32 %v4224, 0.3275911
    %v4233 = vmul.f32 %v4225, 0.3275911
    %v4234 = vmul.f32 %v4226, 0.3275911
    %v4235 = vmul.f32 %v4227, 0.3275911
    %v4236 = vmul.f32 %v4228, 0.3275911
    %v4237 = vmul.f32 %v4229, 0.3275911
    %v4238 = vadd.f32 %v4230, 1.0
    %v4239 = vadd.f32 %v4231, 1.0
    %v4240 = vadd.f32 %v4232, 1.0
    %v4241 = vadd.f32 %v4233, 1.0
    %v4242 = vadd.f32 %v4234, 1.0
    %v4243 = vadd.f32 %v4235, 1.0
    %v4244 = vadd.f32 %v4236, 1.0
    %v4245 = vadd.f32 %v4237, 1.0
    %v4246 = vrcp.pop %v4238
    %v4247 = vrcp.pop %v4239
    %v4248 = vrcp.pop %v4240
    %v4249 = vrcp.pop %v4241
    %v4250 = vrcp.pop %v4242
    %v4251 = vrcp.pop %v4243
    %v4252 = vrcp.pop %v4244
    %v4253 = vrcp.pop %v4245
    %v4254 = vmul.f32 %v4246, 1.0614054
    %v4255 = vmul.f32 %v4247, 1.0614054
    %v4256 = vmul.f32 %v4248, 1.0614054
    %v4257 = vmul.f32 %v4249, 1.0614054
    %v4258 = vmul.f32 %v4250, 1.0614054
    %v4259 = vmul.f32 %v4251, 1.0614054
    %v4260 = vmul.f32 %v4252, 1.0614054
    %v4261 = vmul.f32 %v4253, 1.0614054
    %v4262 = vadd.f32 %v4254, -1.4531521
    %v4263 = vadd.f32 %v4255, -1.4531521
    %v4264 = vadd.f32 %v4256, -1.4531521
    %v4265 = vadd.f32 %v4257, -1.4531521
    %v4266 = vadd.f32 %v4258, -1.4531521
    %v4267 = vadd.f32 %v4259, -1.4531521
    %v4268 = vadd.f32 %v4260, -1.4531521
    %v4269 = vadd.f32 %v4261, -1.4531521
    %v4270 = vmul.f32 %v4262, %v4246
    %v4271 = vmul.f32 %v4263, %v4247
    %v4272 = vmul.f32 %v4264, %v4248
    %v4273 = vmul.f32 %v4265, %v4249
    %v4274 = vmul.f32 %v4266, %v4250
    %v4275 = vmul.f32 %v4267, %v4251
    %v4276 = vmul.f32 %v4268, %v4252
    %v4277 = vmul.f32 %v4269, %v4253
    %v4278 = vadd.f32 %v4270, 1.4214138
    %v4279 = vadd.f32 %v4271, 1.4214138
    %v4280 = vadd.f32 %v4272, 1.4214138
    %v4281 = vadd.f32 %v4273, 1.4214138
    %v4282 = vadd.f32 %v4274, 1.4214138
    %v4283 = vadd.f32 %v4275, 1.4214138
    %v4284 = vadd.f32 %v4276, 1.4214138
    %v4285 = vadd.f32 %v4277, 1.4214138
    %v4286 = vmul.f32 %v4278, %v4246
    %v4287 = vmul.f32 %v4279, %v4247
    %v4288 = vmul.f32 %v4280, %v4248
    %v4289 = vmul.f32 %v4281, %v4249
    %v4290 = vmul.f32 %v4282, %v4250
    %v4291 = vmul.f32 %v4283, %v4251
    %v4292 = vmul.f32 %v4284, %v4252
    %v4293 = vmul.f32 %v4285, %v4253
    %v4294 = vadd.f32 %v4286, -0.28449672
    %v4295 = vadd.f32 %v4287, -0.28449672
    %v4296 = vadd.f32 %v4288, -0.28449672
    %v4297 = vadd.f32 %v4289, -0.28449672
    %v4298 = vadd.f32 %v4290, -0.28449672
    %v4299 = vadd.f32 %v4291, -0.28449672
    %v4300 = vadd.f32 %v4292, -0.28449672
    %v4301 = vadd.f32 %v4293, -0.28449672
    %v4302 = vmul.f32 %v4294, %v4246
    %v4303 = vmul.f32 %v4295, %v4247
    %v4304 = vmul.f32 %v4296, %v4248
    %v4305 = vmul.f32 %v4297, %v4249
    %v4306 = vmul.f32 %v4298, %v4250
    %v4307 = vmul.f32 %v4299, %v4251
    %v4308 = vmul.f32 %v4300, %v4252
    %v4309 = vmul.f32 %v4301, %v4253
    %v4310 = vadd.f32 %v4302, 0.2548296
    %v4311 = vadd.f32 %v4303, 0.2548296
    %v4312 = vadd.f32 %v4304, 0.2548296
    %v4313 = vadd.f32 %v4305, 0.2548296
    %v4314 = vadd.f32 %v4306, 0.2548296
    %v4315 = vadd.f32 %v4307, 0.2548296
    %v4316 = vadd.f32 %v4308, 0.2548296
    %v4317 = vadd.f32 %v4309, 0.2548296
    %v4318 = vmul.f32 %v4310, %v4246
    %v4319 = vmul.f32 %v4311, %v4247
    %v4320 = vmul.f32 %v4312, %v4248
    %v4321 = vmul.f32 %v4313, %v4249
    %v4322 = vmul.f32 %v4314, %v4250
    %v4323 = vmul.f32 %v4315, %v4251
    %v4324 = vmul.f32 %v4316, %v4252
    %v4325 = vmul.f32 %v4317, %v4253
    %v4326 = vsub.f32 0.0, %v4222
    %v4327 = vsub.f32 0.0, %v4223
    %v4328 = vsub.f32 0.0, %v4224
    %v4329 = vsub.f32 0.0, %v4225
    %v4330 = vsub.f32 0.0, %v4226
    %v4331 = vsub.f32 0.0, %v4227
    %v4332 = vsub.f32 0.0, %v4228
    %v4333 = vsub.f32 0.0, %v4229
    %v4334 = vmul.f32 %v4326, %v4222
    %v4335 = vmul.f32 %v4327, %v4223
    %v4336 = vmul.f32 %v4328, %v4224
    %v4337 = vmul.f32 %v4329, %v4225
    %v4338 = vmul.f32 %v4330, %v4226
    %v4339 = vmul.f32 %v4331, %v4227
    %v4340 = vmul.f32 %v4332, %v4228
    %v4341 = vmul.f32 %v4333, %v4229
    %v4342 = vmul.f32 %v4334, 1.442695
    %v4343 = vpow.pop %v4342
    %v4344 = vmul.f32 %v4335, 1.442695
    %v4345 = vpow.pop %v4344
    %v4346 = vmul.f32 %v4336, 1.442695
    %v4347 = vpow.pop %v4346
    %v4348 = vmul.f32 %v4337, 1.442695
    %v4349 = vpow.pop %v4348
    %v4350 = vmul.f32 %v4338, 1.442695
    %v4351 = vpow.pop %v4350
    %v4352 = vmul.f32 %v4339, 1.442695
    %v4353 = vpow.pop %v4352
    %v4354 = vmul.f32 %v4340, 1.442695
    %v4355 = vpow.pop %v4354
    %v4356 = vmul.f32 %v4341, 1.442695
    %v4357 = vpow.pop %v4356
    %v4358 = vmul.f32 %v4318, %v4343
    %v4359 = vmul.f32 %v4319, %v4345
    %v4360 = vmul.f32 %v4320, %v4347
    %v4361 = vmul.f32 %v4321, %v4349
    %v4362 = vmul.f32 %v4322, %v4351
    %v4363 = vmul.f32 %v4323, %v4353
    %v4364 = vmul.f32 %v4324, %v4355
    %v4365 = vmul.f32 %v4325, %v4357
    %v4366 = vsub.f32 1.0, %v4358
    %v4367 = vsub.f32 1.0, %v4359
    %v4368 = vsub.f32 1.0, %v4360
    %v4369 = vsub.f32 1.0, %v4361
    %v4370 = vsub.f32 1.0, %v4362
    %v4371 = vsub.f32 1.0, %v4363
    %v4372 = vsub.f32 1.0, %v4364
    %v4373 = vsub.f32 1.0, %v4365
    %v4374 = vmul.f32 %v4214, %v4366
    %v4375 = vmul.f32 %v4215, %v4367
    %v4376 = vmul.f32 %v4216, %v4368
    %v4377 = vmul.f32 %v4217, %v4369
    %v4378 = vmul.f32 %v4218, %v4370
    %v4379 = vmul.f32 %v4219, %v4371
    %v4380 = vmul.f32 %v4220, %v4372
    %v4381 = vmul.f32 %v4221, %v4373
    %v4382 = vadd.f32 %v4374, 1.0
    %v4383 = vadd.f32 %v4375, 1.0
    %v4384 = vadd.f32 %v4376, 1.0
    %v4385 = vadd.f32 %v4377, 1.0
    %v4386 = vadd.f32 %v4378, 1.0
    %v4387 = vadd.f32 %v4379, 1.0
    %v4388 = vadd.f32 %v4380, 1.0
    %v4389 = vadd.f32 %v4381, 1.0
    %v4390 = vmul.f32 %v4190, %v4382
    %v4391 = vmul.f32 %v4191, %v4383
    %v4392 = vmul.f32 %v4192, %v4384
    %v4393 = vmul.f32 %v4193, %v4385
    %v4394 = vmul.f32 %v4194, %v4386
    %v4395 = vmul.f32 %v4195, %v4387
    %v4396 = vmul.f32 %v4196, %v4388
    %v4397 = vmul.f32 %v4197, %v4389
    %v4398 = vld [vmem:[#allocation3] sm:$0xff]
    %v4399 = vld [vmem:[#allocation3 + $0x8] sm:$0xff]
    %v4400 = vld [vmem:[#allocation3 + $0x10] sm:$0xff]
    %v4401 = vld [vmem:[#allocation3 + $0x18] sm:$0xff]
    %v4402 = vld [vmem:[#allocation3 + $0x20] sm:$0xff]
    %v4403 = vld [vmem:[#allocation3 + $0x28] sm:$0xff]
    %v4404 = vld [vmem:[#allocation3 + $0x30] sm:$0xff]
    %v4405 = vld [vmem:[#allocation3 + $0x38] sm:$0xff]
    %v4406 = vmul.f32 %v4398, 0.1
    %v4407 = vmul.f32 %v4399, 0.1
    %v4408 = vmul.f32 %v4400, 0.1
    %v4409 = vmul.f32 %v4401, 0.1
    %v4410 = vmul.f32 %v4402, 0.1
    %v4411 = vmul.f32 %v4403, 0.1
    %v4412 = vmul.f32 %v4404, 0.1
    %v4413 = vmul.f32 %v4405, 0.1
    %v4414 = vadd.f32 %v4390, %v4406
    %v4415 = vadd.f32 %v4391, %v4407
    %v4416 = vadd.f32 %v4392, %v4408
    %v4417 = vadd.f32 %v4393, %v4409
    %v4418 = vadd.f32 %v4394, %v4410
    %v4419 = vadd.f32 %v4395, %v4411
    %v4420 = vadd.f32 %v4396, %v4412
    %v4421 = vadd.f32 %v4397, %v4413
    %4422 = vrot.lane.b32.xlu0 %v4414, 21
    %v4423 = vpop.permute.xlu0 %4422
    %4424 = vrot.lane.b32.xlu0 %v4415, 21
    %v4425 = vpop.permute.xlu0 %4424
    %4426 = vrot.lane.b32.xlu0 %v4416, 21
    %v4427 = vpop.permute.xlu0 %4426
    %4428 = vrot.lane.b32.xlu0 %v4417, 21
    %v4429 = vpop.permute.xlu0 %4428
    %4430 = vrot.lane.b32.xlu0 %v4418, 21
    %v4431 = vpop.permute.xlu0 %4430
    %4432 = vrot.lane.b32.xlu0 %v4419, 21
    %v4433 = vpop.permute.xlu0 %4432
    %4434 = vrot.lane.b32.xlu0 %v4420, 21
    %v4435 = vpop.permute.xlu0 %4434
    %4436 = vrot.lane.b32.xlu0 %v4421, 21
    %v4437 = vpop.permute.xlu0 %4436
    %v4438 = vsel %vm106, %v4435, %v4437
    %v4439 = vsel %vm106, %v4433, %v4435
    %v4440 = vsel %vm106, %v4431, %v4433
    %v4441 = vsel %vm106, %v4429, %v4431
    %v4442 = vsel %vm106, %v4427, %v4429
    %v4443 = vsel %vm106, %v4425, %v4427
    %v4444 = vsel %vm106, %v4423, %v4425
    %v4445 = vsel %vm106, %v4437, %v4423
    %4446 = vrot.lane.b32.xlu0 %v4414, 20
    %v4447 = vpop.permute.xlu0 %4446
    %4448 = vrot.lane.b32.xlu0 %v4415, 20
    %v4449 = vpop.permute.xlu0 %4448
    %4450 = vrot.lane.b32.xlu0 %v4416, 20
    %v4451 = vpop.permute.xlu0 %4450
    %4452 = vrot.lane.b32.xlu0 %v4417, 20
    %v4453 = vpop.permute.xlu0 %4452
    %4454 = vrot.lane.b32.xlu0 %v4418, 20
    %v4455 = vpop.permute.xlu0 %4454
    %4456 = vrot.lane.b32.xlu0 %v4419, 20
    %v4457 = vpop.permute.xlu0 %4456
    %4458 = vrot.lane.b32.xlu0 %v4420, 20
    %v4459 = vpop.permute.xlu0 %4458
    %4460 = vrot.lane.b32.xlu0 %v4421, 20
    %v4461 = vpop.permute.xlu0 %4460
    %v4462 = vsel %vm131, %v4459, %v4461
    %v4463 = vsel %vm131, %v4457, %v4459
    %v4464 = vsel %vm131, %v4455, %v4457
    %v4465 = vsel %vm131, %v4453, %v4455
    %v4466 = vsel %vm131, %v4451, %v4453
    %v4467 = vsel %vm131, %v4449, %v4451
    %v4468 = vsel %vm131, %v4447, %v4449
    %v4469 = vsel %vm131, %v4461, %v4447
    %v4470 = vpack.c.bf16 %v4444, %v4445
    %v4471 = vpack.c.bf16 %v4442, %v4443
    %v4472 = vpack.c.bf16 %v4440, %v4441
    %v4473 = vpack.c.bf16 %v4438, %v4439
    %v4474 = vpack.c.bf16 %v4468, %v4469
    %v4475 = vpack.c.bf16 %v4466, %v4467
    %v4476 = vpack.c.bf16 %v4464, %v4465
    %v4477 = vpack.c.bf16 %v4462, %v4463
    %4478 = vst [vmem:[#allocation2] sm:$0xff] %v4470
    %4479 = vst [vmem:[#allocation2 + $0x8] sm:$0xff] %v4471
    %4480 = vst [vmem:[#allocation2 + $0x10] sm:$0xff] %v4472
    %4481 = vst [vmem:[#allocation2 + $0x18] sm:$0xff] %v4473
    %4482 = vst [vmem:[#allocation2 + $0x20] sm:$0xff] %v4474
    %4483 = vst [vmem:[#allocation2 + $0x28] sm:$0xff] %v4475
    %4484 = vst [vmem:[#allocation2 + $0x30] sm:$0xff] %v4476
    %4485 = vst [vmem:[#allocation2 + $0x38] sm:$0xff] %v4477
    %4486 = vrot.lane.b32.xlu0 %v4414, 19
    %v4487 = vpop.permute.xlu0 %4486
    %4488 = vrot.lane.b32.xlu0 %v4415, 19
    %v4489 = vpop.permute.xlu0 %4488
    %4490 = vrot.lane.b32.xlu0 %v4416, 19
    %v4491 = vpop.permute.xlu0 %4490
    %4492 = vrot.lane.b32.xlu0 %v4417, 19
    %v4493 = vpop.permute.xlu0 %4492
    %4494 = vrot.lane.b32.xlu0 %v4418, 19
    %v4495 = vpop.permute.xlu0 %4494
    %4496 = vrot.lane.b32.xlu0 %v4419, 19
    %v4497 = vpop.permute.xlu0 %4496
    %4498 = vrot.lane.b32.xlu0 %v4420, 19
    %v4499 = vpop.permute.xlu0 %4498
    %4500 = vrot.lane.b32.xlu0 %v4421, 19
    %v4501 = vpop.permute.xlu0 %4500
    %v4502 = vsel %vm172, %v4499, %v4501
    %v4503 = vsel %vm172, %v4497, %v4499
    %v4504 = vsel %vm172, %v4495, %v4497
    %v4505 = vsel %vm172, %v4493, %v4495
    %v4506 = vsel %vm172, %v4491, %v4493
    %v4507 = vsel %vm172, %v4489, %v4491
    %v4508 = vsel %vm172, %v4487, %v4489
    %v4509 = vsel %vm172, %v4501, %v4487
    %4510 = vrot.lane.b32.xlu0 %v4414, 1
    %v4511 = vpop.permute.xlu0 %4510
    %4512 = vrot.lane.b32.xlu0 %v4415, 1
    %v4513 = vpop.permute.xlu0 %4512
    %4514 = vrot.lane.b32.xlu0 %v4416, 1
    %v4515 = vpop.permute.xlu0 %4514
    %4516 = vrot.lane.b32.xlu0 %v4417, 1
    %v4517 = vpop.permute.xlu0 %4516
    %4518 = vrot.lane.b32.xlu0 %v4418, 1
    %v4519 = vpop.permute.xlu0 %4518
    %4520 = vrot.lane.b32.xlu0 %v4419, 1
    %v4521 = vpop.permute.xlu0 %4520
    %4522 = vrot.lane.b32.xlu0 %v4420, 1
    %v4523 = vpop.permute.xlu0 %4522
    %4524 = vrot.lane.b32.xlu0 %v4421, 1
    %v4525 = vpop.permute.xlu0 %4524
    %v4526 = vsel %vm197, %v4523, %v4525
    %v4527 = vsel %vm197, %v4521, %v4523
    %v4528 = vsel %vm197, %v4519, %v4521
    %v4529 = vsel %vm197, %v4517, %v4519
    %v4530 = vsel %vm197, %v4515, %v4517
    %v4531 = vsel %vm197, %v4513, %v4515
    %v4532 = vsel %vm197, %v4511, %v4513
    %v4533 = vsel %vm197, %v4525, %v4511
    %v4534 = vpack.c.bf16 %v4508, %v4509
    %v4535 = vpack.c.bf16 %v4506, %v4507
    %v4536 = vpack.c.bf16 %v4504, %v4505
    %v4537 = vpack.c.bf16 %v4502, %v4503
    %v4538 = vpack.c.bf16 %v4532, %v4533
    %v4539 = vpack.c.bf16 %v4530, %v4531
    %v4540 = vpack.c.bf16 %v4528, %v4529
    %v4541 = vpack.c.bf16 %v4526, %v4527
    %4542 = vst [vmem:[#allocation2 + $0x40] sm:$0xff] %v4534
    %4543 = vst [vmem:[#allocation2 + $0x48] sm:$0xff] %v4535
    %4544 = vst [vmem:[#allocation2 + $0x50] sm:$0xff] %v4536
    %4545 = vst [vmem:[#allocation2 + $0x58] sm:$0xff] %v4537
    %4546 = vst [vmem:[#allocation2 + $0x60] sm:$0xff] %v4538
    %4547 = vst [vmem:[#allocation2 + $0x68] sm:$0xff] %v4539
    %4548 = vst [vmem:[#allocation2 + $0x70] sm:$0xff] %v4540
    %4549 = vst [vmem:[#allocation2 + $0x78] sm:$0xff] %v4541
    %4550 = vrot.lane.b32.xlu0 %v4414, 127
    %v4551 = vpop.permute.xlu0 %4550
    %4552 = vrot.lane.b32.xlu0 %v4415, 127
    %v4553 = vpop.permute.xlu0 %4552
    %4554 = vrot.lane.b32.xlu0 %v4416, 127
    %v4555 = vpop.permute.xlu0 %4554
    %4556 = vrot.lane.b32.xlu0 %v4417, 127
    %v4557 = vpop.permute.xlu0 %4556
    %4558 = vrot.lane.b32.xlu0 %v4418, 127
    %v4559 = vpop.permute.xlu0 %4558
    %4560 = vrot.lane.b32.xlu0 %v4419, 127
    %v4561 = vpop.permute.xlu0 %4560
    %4562 = vrot.lane.b32.xlu0 %v4420, 127
    %v4563 = vpop.permute.xlu0 %4562
    %4564 = vrot.lane.b32.xlu0 %v4421, 127
    %v4565 = vpop.permute.xlu0 %4564
    %v4566 = vsel %vm238, %v4563, %v4565
    %v4567 = vsel %vm238, %v4561, %v4563
    %v4568 = vsel %vm238, %v4559, %v4561
    %v4569 = vsel %vm238, %v4557, %v4559
    %v4570 = vsel %vm238, %v4555, %v4557
    %v4571 = vsel %vm238, %v4553, %v4555
    %v4572 = vsel %vm238, %v4551, %v4553
    %v4573 = vsel %vm238, %v4565, %v4551
    %v4574 = vpack.c.bf16 %v4415, %v4414
    %v4575 = vpack.c.bf16 %v4417, %v4416
    %v4576 = vpack.c.bf16 %v4419, %v4418
    %v4577 = vpack.c.bf16 %v4421, %v4420
    %v4578 = vpack.c.bf16 %v4571, %v4572
    %v4579 = vpack.c.bf16 %v4569, %v4570
    %v4580 = vpack.c.bf16 %v4567, %v4568
    %v4581 = vpack.c.bf16 %v4573, %v4566
    %4582 = vst [vmem:[#allocation2 + $0x80] sm:$0xff] %v4574
    %4583 = vst [vmem:[#allocation2 + $0x88] sm:$0xff] %v4575
    %4584 = vst [vmem:[#allocation2 + $0x90] sm:$0xff] %v4576
    %4585 = vst [vmem:[#allocation2 + $0x98] sm:$0xff] %v4577
    %4586 = vst [vmem:[#allocation2 + $0xa0] sm:$0xff] %v4578
    %4587 = vst [vmem:[#allocation2 + $0xa8] sm:$0xff] %v4579
    %4588 = vst [vmem:[#allocation2 + $0xb0] sm:$0xff] %v4580
    %4589 = vst [vmem:[#allocation2 + $0xb8] sm:$0xff] %v4581
    %4590 = vrot.lane.b32.xlu0 %v4414, 109
    %v4591 = vpop.permute.xlu0 %4590
    %4592 = vrot.lane.b32.xlu0 %v4415, 109
    %v4593 = vpop.permute.xlu0 %4592
    %4594 = vrot.lane.b32.xlu0 %v4416, 109
    %v4595 = vpop.permute.xlu0 %4594
    %4596 = vrot.lane.b32.xlu0 %v4417, 109
    %v4597 = vpop.permute.xlu0 %4596
    %4598 = vrot.lane.b32.xlu0 %v4418, 109
    %v4599 = vpop.permute.xlu0 %4598
    %4600 = vrot.lane.b32.xlu0 %v4419, 109
    %v4601 = vpop.permute.xlu0 %4600
    %4602 = vrot.lane.b32.xlu0 %v4420, 109
    %v4603 = vpop.permute.xlu0 %4602
    %4604 = vrot.lane.b32.xlu0 %v4421, 109
    %v4605 = vpop.permute.xlu0 %4604
    %v4606 = vsel %vm279, %v4603, %v4605
    %v4607 = vsel %vm279, %v4601, %v4603
    %v4608 = vsel %vm279, %v4599, %v4601
    %v4609 = vsel %vm279, %v4597, %v4599
    %v4610 = vsel %vm279, %v4595, %v4597
    %v4611 = vsel %vm279, %v4593, %v4595
    %v4612 = vsel %vm279, %v4591, %v4593
    %v4613 = vsel %vm279, %v4605, %v4591
    %4614 = vrot.lane.b32.xlu0 %v4414, 108
    %v4615 = vpop.permute.xlu0 %4614
    %4616 = vrot.lane.b32.xlu0 %v4415, 108
    %v4617 = vpop.permute.xlu0 %4616
    %4618 = vrot.lane.b32.xlu0 %v4416, 108
    %v4619 = vpop.permute.xlu0 %4618
    %4620 = vrot.lane.b32.xlu0 %v4417, 108
    %v4621 = vpop.permute.xlu0 %4620
    %4622 = vrot.lane.b32.xlu0 %v4418, 108
    %v4623 = vpop.permute.xlu0 %4622
    %4624 = vrot.lane.b32.xlu0 %v4419, 108
    %v4625 = vpop.permute.xlu0 %4624
    %4626 = vrot.lane.b32.xlu0 %v4420, 108
    %v4627 = vpop.permute.xlu0 %4626
    %4628 = vrot.lane.b32.xlu0 %v4421, 108
    %v4629 = vpop.permute.xlu0 %4628
    %v4630 = vsel %vm304, %v4627, %v4629
    %v4631 = vsel %vm304, %v4625, %v4627
    %v4632 = vsel %vm304, %v4623, %v4625
    %v4633 = vsel %vm304, %v4621, %v4623
    %v4634 = vsel %vm304, %v4619, %v4621
    %v4635 = vsel %vm304, %v4617, %v4619
    %v4636 = vsel %vm304, %v4615, %v4617
    %v4637 = vsel %vm304, %v4629, %v4615
    %v4638 = vpack.c.bf16 %v4611, %v4612
    %v4639 = vpack.c.bf16 %v4609, %v4610
    %v4640 = vpack.c.bf16 %v4607, %v4608
    %v4641 = vpack.c.bf16 %v4613, %v4606
    %v4642 = vpack.c.bf16 %v4635, %v4636
    %v4643 = vpack.c.bf16 %v4633, %v4634
    %v4644 = vpack.c.bf16 %v4631, %v4632
    %v4645 = vpack.c.bf16 %v4637, %v4630
    %4646 = vst [vmem:[#allocation2 + $0xc0] sm:$0xff] %v4638
    %4647 = vst [vmem:[#allocation2 + $0xc8] sm:$0xff] %v4639
    %4648 = vst [vmem:[#allocation2 + $0xd0] sm:$0xff] %v4640
    %4649 = vst [vmem:[#allocation2 + $0xd8] sm:$0xff] %v4641
    %4650 = vst [vmem:[#allocation2 + $0xe0] sm:$0xff] %v4642
    %4651 = vst [vmem:[#allocation2 + $0xe8] sm:$0xff] %v4643
    %4652 = vst [vmem:[#allocation2 + $0xf0] sm:$0xff] %v4644
    %4653 = vst [vmem:[#allocation2 + $0xf8] sm:$0xff] %v4645
    %4654 = vrot.lane.b32.xlu0 %v4414, 107
    %v4655 = vpop.permute.xlu0 %4654
    %4656 = vrot.lane.b32.xlu0 %v4415, 107
    %v4657 = vpop.permute.xlu0 %4656
    %4658 = vrot.lane.b32.xlu0 %v4416, 107
    %v4659 = vpop.permute.xlu0 %4658
    %4660 = vrot.lane.b32.xlu0 %v4417, 107
    %v4661 = vpop.permute.xlu0 %4660
    %4662 = vrot.lane.b32.xlu0 %v4418, 107
    %v4663 = vpop.permute.xlu0 %4662
    %4664 = vrot.lane.b32.xlu0 %v4419, 107
    %v4665 = vpop.permute.xlu0 %4664
    %4666 = vrot.lane.b32.xlu0 %v4420, 107
    %v4667 = vpop.permute.xlu0 %4666
    %4668 = vrot.lane.b32.xlu0 %v4421, 107
    %v4669 = vpop.permute.xlu0 %4668
    %v4670 = vsel %vm345, %v4667, %v4669
    %v4671 = vsel %vm345, %v4665, %v4667
    %v4672 = vsel %vm345, %v4663, %v4665
    %v4673 = vsel %vm345, %v4661, %v4663
    %v4674 = vsel %vm345, %v4659, %v4661
    %v4675 = vsel %vm345, %v4657, %v4659
    %v4676 = vsel %vm345, %v4655, %v4657
    %v4677 = vsel %vm345, %v4669, %v4655
    %v4678 = vpack.c.bf16 %v4675, %v4676
    %v4679 = vpack.c.bf16 %v4673, %v4674
    %v4680 = vpack.c.bf16 %v4671, %v4672
    %v4681 = vpack.c.bf16 %v4677, %v4670
    %4682 = vst [vmem:[#allocation2 + $0x100] sm:$0xff] %v4678
    %4683 = vst [vmem:[#allocation2 + $0x108] sm:$0xff] %v4679
    %4684 = vst [vmem:[#allocation2 + $0x110] sm:$0xff] %v4680
    %4685 = vst [vmem:[#allocation2 + $0x118] sm:$0xff] %v4681
    %4686 = vst [vmem:[#allocation2 + $0x120] sm:$0xff] %v4574
    %4687 = vst [vmem:[#allocation2 + $0x128] sm:$0xff] %v4575
    %4688 = vst [vmem:[#allocation2 + $0x130] sm:$0xff] %v4576
    %4689 = vst [vmem:[#allocation2 + $0x138] sm:$0xff] %v4577
    %s4690 = scalar_lea.vmem [#allocation9], 320
    %v4691 = vld [vmem:[%s4690] sm:$0xff]
    %v4692 = vld [vmem:[%s4690 + $0x8] sm:$0xff]
    %v4693 = vld [vmem:[%s4690 + $0x10] sm:$0xff]
    %v4694 = vld [vmem:[%s4690 + $0x18] sm:$0xff]
    %v4695 = vld [vmem:[%s4690 + $0x20] sm:$0xff]
    %v4696 = vld [vmem:[%s4690 + $0x28] sm:$0xff]
    %v4697 = vld [vmem:[%s4690 + $0x30] sm:$0xff]
    %v4698 = vld [vmem:[%s4690 + $0x38] sm:$0xff]
    %s4699 = scalar_lea.vmem [#allocation7], 20
    %v4700 = vld [vmem:[%s4699] sm:$0xf]
    %v4701 = vld [vmem:[#allocation2] sm:$0xff]
    %v4702 = vld [vmem:[#allocation2 + $0x8] sm:$0xff]
    %v4703 = vld [vmem:[#allocation2 + $0x10] sm:$0xff]
    %v4704 = vld [vmem:[#allocation2 + $0x18] sm:$0xff]
    %v4705 = vld [vmem:[#allocation2 + $0x20] sm:$0xff]
    %v4706 = vld [vmem:[#allocation2 + $0x28] sm:$0xff]
    %v4707 = vld [vmem:[#allocation2 + $0x30] sm:$0xff]
    %v4708 = vld [vmem:[#allocation2 + $0x38] sm:$0xff]
    %v4709 = vld [vmem:[#allocation2 + $0x40] sm:$0xff]
    %v4710 = vld [vmem:[#allocation2 + $0x48] sm:$0xff]
    %v4711 = vld [vmem:[#allocation2 + $0x50] sm:$0xff]
    %v4712 = vld [vmem:[#allocation2 + $0x58] sm:$0xff]
    %v4713 = vld [vmem:[#allocation2 + $0x60] sm:$0xff]
    %v4714 = vld [vmem:[#allocation2 + $0x68] sm:$0xff]
    %v4715 = vld [vmem:[#allocation2 + $0x70] sm:$0xff]
    %v4716 = vld [vmem:[#allocation2 + $0x78] sm:$0xff]
    %v4717 = vld [vmem:[#allocation2 + $0x80] sm:$0xff]
    %v4718 = vld [vmem:[#allocation2 + $0x88] sm:$0xff]
    %v4719 = vld [vmem:[#allocation2 + $0x90] sm:$0xff]
    %v4720 = vld [vmem:[#allocation2 + $0x98] sm:$0xff]
    %v4721 = vld [vmem:[#allocation2 + $0xa0] sm:$0xff]
    %v4722 = vld [vmem:[#allocation2 + $0xa8] sm:$0xff]
    %v4723 = vld [vmem:[#allocation2 + $0xb0] sm:$0xff]
    %v4724 = vld [vmem:[#allocation2 + $0xb8] sm:$0xff]
    %v4725 = vld [vmem:[#allocation2 + $0xc0] sm:$0xff]
    %v4726 = vld [vmem:[#allocation2 + $0xc8] sm:$0xff]
    %v4727 = vld [vmem:[#allocation2 + $0xd0] sm:$0xff]
    %v4728 = vld [vmem:[#allocation2 + $0xd8] sm:$0xff]
    %v4729 = vld [vmem:[#allocation2 + $0xe0] sm:$0xff]
    %v4730 = vld [vmem:[#allocation2 + $0xe8] sm:$0xff]
    %v4731 = vld [vmem:[#allocation2 + $0xf0] sm:$0xff]
    %v4732 = vld [vmem:[#allocation2 + $0xf8] sm:$0xff]
    %v4733 = vld [vmem:[#allocation2 + $0x100] sm:$0xff]
    %v4734 = vld [vmem:[#allocation2 + $0x108] sm:$0xff]
    %v4735 = vld [vmem:[#allocation2 + $0x110] sm:$0xff]
    %v4736 = vld [vmem:[#allocation2 + $0x118] sm:$0xff]
    %v4737 = vld [vmem:[#allocation2 + $0x120] sm:$0xff]
    %v4738 = vld [vmem:[#allocation2 + $0x128] sm:$0xff]
    %v4739 = vld [vmem:[#allocation2 + $0x130] sm:$0xff]
    %v4740 = vld [vmem:[#allocation2 + $0x138] sm:$0xff]
    %v4781 = vunpack.c.l.b16 %v4701
    %v4782 = vunpack.c.h.b16 %v4701
    %v4783 = vunpack.c.l.b16 %v4702
    %v4784 = vunpack.c.h.b16 %v4702
    %v4785 = vunpack.c.l.b16 %v4703
    %v4786 = vunpack.c.h.b16 %v4703
    %v4787 = vunpack.c.l.b16 %v4704
    %v4788 = vunpack.c.h.b16 %v4704
    %v4789 = vunpack.c.l.b16 %v4705
    %v4790 = vunpack.c.h.b16 %v4705
    %v4791 = vunpack.c.l.b16 %v4706
    %v4792 = vunpack.c.h.b16 %v4706
    %v4793 = vunpack.c.l.b16 %v4707
    %v4794 = vunpack.c.h.b16 %v4707
    %v4795 = vunpack.c.l.b16 %v4708
    %v4796 = vunpack.c.h.b16 %v4708
    %v4797 = vunpack.c.l.b16 %v4709
    %v4798 = vunpack.c.h.b16 %v4709
    %v4799 = vunpack.c.l.b16 %v4710
    %v4800 = vunpack.c.h.b16 %v4710
    %v4801 = vunpack.c.l.b16 %v4711
    %v4802 = vunpack.c.h.b16 %v4711
    %v4803 = vunpack.c.l.b16 %v4712
    %v4804 = vunpack.c.h.b16 %v4712
    %v4805 = vunpack.c.l.b16 %v4713
    %v4806 = vunpack.c.h.b16 %v4713
    %v4807 = vunpack.c.l.b16 %v4714
    %v4808 = vunpack.c.h.b16 %v4714
    %v4809 = vunpack.c.l.b16 %v4715
    %v4810 = vunpack.c.h.b16 %v4715
    %v4811 = vunpack.c.l.b16 %v4716
    %v4812 = vunpack.c.h.b16 %v4716
    %v4813 = vunpack.c.l.b16 %v4717
    %v4814 = vunpack.c.h.b16 %v4717
    %v4815 = vunpack.c.l.b16 %v4718
    %v4816 = vunpack.c.h.b16 %v4718
    %v4817 = vunpack.c.l.b16 %v4719
    %v4818 = vunpack.c.h.b16 %v4719
    %v4819 = vunpack.c.l.b16 %v4720
    %v4820 = vunpack.c.h.b16 %v4720
    %v4821 = vunpack.c.l.b16 %v4721
    %v4822 = vunpack.c.h.b16 %v4721
    %v4823 = vunpack.c.l.b16 %v4722
    %v4824 = vunpack.c.h.b16 %v4722
    %v4825 = vunpack.c.l.b16 %v4723
    %v4826 = vunpack.c.h.b16 %v4723
    %v4827 = vunpack.c.l.b16 %v4724
    %v4828 = vunpack.c.h.b16 %v4724
    %v4829 = vunpack.c.l.b16 %v4725
    %v4830 = vunpack.c.h.b16 %v4725
    %v4831 = vunpack.c.l.b16 %v4726
    %v4832 = vunpack.c.h.b16 %v4726
    %v4833 = vunpack.c.l.b16 %v4727
    %v4834 = vunpack.c.h.b16 %v4727
    %v4835 = vunpack.c.l.b16 %v4728
    %v4836 = vunpack.c.h.b16 %v4728
    %v4837 = vunpack.c.l.b16 %v4729
    %v4838 = vunpack.c.h.b16 %v4729
    %v4839 = vunpack.c.l.b16 %v4730
    %v4840 = vunpack.c.h.b16 %v4730
    %v4841 = vunpack.c.l.b16 %v4731
    %v4842 = vunpack.c.h.b16 %v4731
    %v4843 = vunpack.c.l.b16 %v4732
    %v4844 = vunpack.c.h.b16 %v4732
    %v4845 = vunpack.c.l.b16 %v4733
    %v4846 = vunpack.c.h.b16 %v4733
    %v4847 = vunpack.c.l.b16 %v4734
    %v4848 = vunpack.c.h.b16 %v4734
    %v4849 = vunpack.c.l.b16 %v4735
    %v4850 = vunpack.c.h.b16 %v4735
    %v4851 = vunpack.c.l.b16 %v4736
    %v4852 = vunpack.c.h.b16 %v4736
    %v4853 = vunpack.c.l.b16 %v4737
    %v4854 = vunpack.c.h.b16 %v4737
    %v4855 = vunpack.c.l.b16 %v4738
    %v4856 = vunpack.c.h.b16 %v4738
    %v4857 = vunpack.c.l.b16 %v4739
    %v4858 = vunpack.c.h.b16 %v4739
    %v4859 = vunpack.c.l.b16 %v4740
    %v4860 = vunpack.c.h.b16 %v4740
    %v4861 = vpack.c.b16 %v4789, %v4781
    %v4862 = vpack.c.b16 %v4790, %v4782
    %v4863 = vpack.c.b16 %v4791, %v4783
    %v4864 = vpack.c.b16 %v4792, %v4784
    %v4865 = vpack.c.b16 %v4793, %v4785
    %v4866 = vpack.c.b16 %v4794, %v4786
    %v4867 = vpack.c.b16 %v4795, %v4787
    %v4868 = vpack.c.b16 %v4796, %v4788
    %v4869 = vpack.c.b16 %v4805, %v4797
    %v4870 = vpack.c.b16 %v4806, %v4798
    %v4871 = vpack.c.b16 %v4807, %v4799
    %v4872 = vpack.c.b16 %v4808, %v4800
    %v4873 = vpack.c.b16 %v4809, %v4801
    %v4874 = vpack.c.b16 %v4810, %v4802
    %v4875 = vpack.c.b16 %v4811, %v4803
    %v4876 = vpack.c.b16 %v4812, %v4804
    %v4877 = vpack.c.b16 %v4821, %v4813
    %v4878 = vpack.c.b16 %v4822, %v4814
    %v4879 = vpack.c.b16 %v4823, %v4815
    %v4880 = vpack.c.b16 %v4824, %v4816
    %v4881 = vpack.c.b16 %v4825, %v4817
    %v4882 = vpack.c.b16 %v4826, %v4818
    %v4883 = vpack.c.b16 %v4827, %v4819
    %v4884 = vpack.c.b16 %v4828, %v4820
    %v4885 = vpack.c.b16 %v4837, %v4829
    %v4886 = vpack.c.b16 %v4838, %v4830
    %v4887 = vpack.c.b16 %v4839, %v4831
    %v4888 = vpack.c.b16 %v4840, %v4832
    %v4889 = vpack.c.b16 %v4841, %v4833
    %v4890 = vpack.c.b16 %v4842, %v4834
    %v4891 = vpack.c.b16 %v4843, %v4835
    %v4892 = vpack.c.b16 %v4844, %v4836
    %v4893 = vpack.c.b16 %v4853, %v4845
    %v4894 = vpack.c.b16 %v4854, %v4846
    %v4895 = vpack.c.b16 %v4855, %v4847
    %v4896 = vpack.c.b16 %v4856, %v4848
    %v4897 = vpack.c.b16 %v4857, %v4849
    %v4898 = vpack.c.b16 %v4858, %v4850
    %v4899 = vpack.c.b16 %v4859, %v4851
    %v4900 = vpack.c.b16 %v4860, %v4852
    %v4942 = vsel %vm615, %v4700, 0
    %4944 = vmatpush.bf16.msra.mxu0 0
    %4945 = vmatpush.bf16.msra.mxu0 0
    %4946 = vmatpush.bf16.msra.mxu0 0
    %4947 = vmatpush.bf16.msra.mxu0 %v4893
    %4948 = vmatpush.bf16.msra.mxu0 %v4885
    %4949 = vmatpush.bf16.msra.mxu0 %v4877
    %4950 = vmatpush.bf16.msra.mxu0 %v4869
    %4951 = vmatpush.bf16.msra.mxu0 %v4861
    %4952 = vmatmul.bf16.gmra.mxu0 %v4942
    %v4953 = vpop.f32.mrf.mxu0
    %v4954 = vadd.f32 0.0, %v4953
    %v4955 = vpop.f32.mrf.mxu0
    %4956 = vdwg.mxu0
    %4957 = vmatpush.bf16.msra.mxu0 0
    %4958 = vmatpush.bf16.msra.mxu0 0
    %4959 = vmatpush.bf16.msra.mxu0 0
    %4960 = vmatpush.bf16.msra.mxu0 %v4894
    %4961 = vmatpush.bf16.msra.mxu0 %v4886
    %4962 = vmatpush.bf16.msra.mxu0 %v4878
    %4963 = vmatpush.bf16.msra.mxu0 %v4870
    %4964 = vmatpush.bf16.msra.mxu0 %v4862
    %4965 = vmatmul.bf16.gmra.mxu0 %v4942
    %v4966 = vpop.f32.mrf.mxu0
    %v4967 = vadd.f32 0.0, %v4966
    %v4968 = vpop.f32.mrf.mxu0
    %4969 = vdwg.mxu0
    %4970 = vmatpush.bf16.msra.mxu0 0
    %4971 = vmatpush.bf16.msra.mxu0 0
    %4972 = vmatpush.bf16.msra.mxu0 0
    %4973 = vmatpush.bf16.msra.mxu0 %v4895
    %4974 = vmatpush.bf16.msra.mxu0 %v4887
    %4975 = vmatpush.bf16.msra.mxu0 %v4879
    %4976 = vmatpush.bf16.msra.mxu0 %v4871
    %4977 = vmatpush.bf16.msra.mxu0 %v4863
    %4978 = vmatmul.bf16.gmra.mxu0 %v4942
    %v4979 = vpop.f32.mrf.mxu0
    %v4980 = vadd.f32 0.0, %v4979
    %v4981 = vpop.f32.mrf.mxu0
    %4982 = vdwg.mxu0
    %4983 = vmatpush.bf16.msra.mxu0 0
    %4984 = vmatpush.bf16.msra.mxu0 0
    %4985 = vmatpush.bf16.msra.mxu0 0
    %4986 = vmatpush.bf16.msra.mxu0 %v4896
    %4987 = vmatpush.bf16.msra.mxu0 %v4888
    %4988 = vmatpush.bf16.msra.mxu0 %v4880
    %4989 = vmatpush.bf16.msra.mxu0 %v4872
    %4990 = vmatpush.bf16.msra.mxu0 %v4864
    %4991 = vmatmul.bf16.gmra.mxu0 %v4942
    %v4992 = vpop.f32.mrf.mxu0
    %v4993 = vadd.f32 0.0, %v4992
    %v4994 = vpop.f32.mrf.mxu0
    %4995 = vdwg.mxu0
    %4996 = vmatpush.bf16.msra.mxu0 0
    %4997 = vmatpush.bf16.msra.mxu0 0
    %4998 = vmatpush.bf16.msra.mxu0 0
    %4999 = vmatpush.bf16.msra.mxu0 %v4897
    %5000 = vmatpush.bf16.msra.mxu0 %v4889
    %5001 = vmatpush.bf16.msra.mxu0 %v4881
    %5002 = vmatpush.bf16.msra.mxu0 %v4873
    %5003 = vmatpush.bf16.msra.mxu0 %v4865
    %5004 = vmatmul.bf16.gmra.mxu0 %v4942
    %v5005 = vpop.f32.mrf.mxu0
    %v5006 = vadd.f32 0.0, %v5005
    %v5007 = vpop.f32.mrf.mxu0
    %5008 = vdwg.mxu0
    %5009 = vmatpush.bf16.msra.mxu0 0
    %5010 = vmatpush.bf16.msra.mxu0 0
    %5011 = vmatpush.bf16.msra.mxu0 0
    %5012 = vmatpush.bf16.msra.mxu0 %v4898
    %5013 = vmatpush.bf16.msra.mxu0 %v4890
    %5014 = vmatpush.bf16.msra.mxu0 %v4882
    %5015 = vmatpush.bf16.msra.mxu0 %v4874
    %5016 = vmatpush.bf16.msra.mxu0 %v4866
    %5017 = vmatmul.bf16.gmra.mxu0 %v4942
    %v5018 = vpop.f32.mrf.mxu0
    %v5019 = vadd.f32 0.0, %v5018
    %v5020 = vpop.f32.mrf.mxu0
    %5021 = vdwg.mxu0
    %5022 = vmatpush.bf16.msra.mxu0 0
    %5023 = vmatpush.bf16.msra.mxu0 0
    %5024 = vmatpush.bf16.msra.mxu0 0
    %5025 = vmatpush.bf16.msra.mxu0 %v4899
    %5026 = vmatpush.bf16.msra.mxu0 %v4891
    %5027 = vmatpush.bf16.msra.mxu0 %v4883
    %5028 = vmatpush.bf16.msra.mxu0 %v4875
    %5029 = vmatpush.bf16.msra.mxu0 %v4867
    %5030 = vmatmul.bf16.gmra.mxu0 %v4942
    %v5031 = vpop.f32.mrf.mxu0
    %v5032 = vadd.f32 0.0, %v5031
    %v5033 = vpop.f32.mrf.mxu0
    %5034 = vdwg.mxu0
    %5035 = vmatpush.bf16.msra.mxu0 0
    %5036 = vmatpush.bf16.msra.mxu0 0
    %5037 = vmatpush.bf16.msra.mxu0 0
    %5038 = vmatpush.bf16.msra.mxu0 %v4900
    %5039 = vmatpush.bf16.msra.mxu0 %v4892
    %5040 = vmatpush.bf16.msra.mxu0 %v4884
    %5041 = vmatpush.bf16.msra.mxu0 %v4876
    %5042 = vmatpush.bf16.msra.mxu0 %v4868
    %5043 = vmatmul.bf16.gmra.mxu0 %v4942
    %v5044 = vpop.f32.mrf.mxu0
    %v5045 = vadd.f32 0.0, %v5044
    %v5046 = vpop.f32.mrf.mxu0
    %5047 = vdwg.mxu0
    %v5048 = vadd.f32 %v4691, %v4954
    %v5049 = vadd.f32 %v4692, %v4967
    %v5050 = vadd.f32 %v4693, %v4980
    %v5051 = vadd.f32 %v4694, %v4993
    %v5052 = vadd.f32 %v4695, %v5006
    %v5053 = vadd.f32 %v4696, %v5019
    %v5054 = vadd.f32 %v4697, %v5032
    %v5055 = vadd.f32 %v4698, %v5045
    %5056 = vst [vmem:[#allocation12] sm:$0xff] %v5048
    %5057 = vst [vmem:[#allocation12 + $0x8] sm:$0xff] %v5049
    %5058 = vst [vmem:[#allocation12 + $0x10] sm:$0xff] %v5050
    %5059 = vst [vmem:[#allocation12 + $0x18] sm:$0xff] %v5051
    %5060 = vst [vmem:[#allocation12 + $0x20] sm:$0xff] %v5052
    %5061 = vst [vmem:[#allocation12 + $0x28] sm:$0xff] %v5053
    %5062 = vst [vmem:[#allocation12 + $0x30] sm:$0xff] %v5054
    %5063 = vst [vmem:[#allocation12 + $0x38] sm:$0xff] %v5055
    // Predicated region
    $region34: #{tpu_custom_call.1} parent=1 // pred_check
      _
    $region35: #{tpu_custom_call.1} parent=1 // pred_check_branch
      %5065 = sbr.rel (0) target = $region37
    $region36: #{tpu_custom_call.1} parent=1 // pred_region
      %5067 = vsyncadd [#allocation6], 0
      %s5069 = sshll.u32 [#allocation12], 4
      %s5070 = int_to_ptr.vmem [resolvable:$true] %s5069
      %s5071 = sshll.u32 %s4, 4
      %s5072 = int_to_ptr.hbm [resolvable:$true] %s5071
      %5074 = dma.vmem_to_hbm [thread:$0]  %s5070, 1024, %s5072, [#allocation6]
    $region37: #{tpu_custom_call.1} parent=1 // pred_fallthru
      _
    // Predicated region
    $region38: #{tpu_custom_call.1} parent=1 // pred_check
      _
    $region39: #{tpu_custom_call.1} parent=1 // pred_check_branch
      %5076 = sbr.rel (0) target = $region41
    $region40: #{tpu_custom_call.1} parent=1 // pred_region
      %5078 = dma.done [#allocation6], 1024
    $region41: #{tpu_custom_call.1} parent=1 // pred_fallthru
      _
    %5079 = vsyncpa [#allocation5], 1
    %5080 = vsyncpa [#allocation8], 1
    %5081 = vsyncpa [#allocation11], 1
    %5082 = vsyncpa [#allocation6], 1

</llo_original>
